<compile_context>
chip_gen: v5e
topology: v5e:2x2
jax: 0.10.0
libtpu: 0.0.40
codegen_flags: <defaults>
</compile_context>

<pallas_src>
import jax
import jax.numpy as jnp
from jax.experimental import pallas as pl
from jax.experimental.pallas import tpu as pltpu


def _matmul_dtype():
    # bf16 operands hit MXU peak on TPU; CPU / interpret-mode backends reject
    # bf16 x bf16 -> f32 dots, so fall back to f32 there.
    return jnp.bfloat16 if jax.default_backend() == "tpu" else jnp.float32


# ----------------------------------------------------------------------------
# Pallas kernel: 2-layer LSTM recurrence, one grid step = (batch block, time chunk).
# ----------------------------------------------------------------------------
def _lstm2_kernel(gx_ref, whh0_ref, w1_ref, b1_ref, out_ref, h0, c0, h1, c1):
    """
    gx_ref  : (TT, BB, 4H) f32       precomputed x @ W_ih0 + b0  (input proj. hoisted)
    whh0_ref: (H, 4H)      mm-dtype  layer-0 recurrent weight (pre-transposed)
    w1_ref  : (2H, 4H)     mm-dtype  layer-1 fused [W_ih1 ; W_hh1] (pre-transposed)
    b1_ref  : (1, 4H)      f32
    out_ref : (TT, BB, H)  f32       top-layer hidden states
    h0/c0/h1/c1: (BB, H)   f32       recurrent state in VMEM scratch, persists across chunks
    """
    chunk = pl.program_id(1)
    tt = gx_ref.shape[0]
    H = h0.shape[-1]
    mm_dtype = whh0_ref.dtype

    @pl.when(chunk == 0)
    def _():
        h0[...] = jnp.zeros_like(h0)
        c0[...] = jnp.zeros_like(c0)
        h1[...] = jnp.zeros_like(h1)
        c1[...] = jnp.zeros_like(c1)

    whh0 = whh0_ref[...]
    w1 = w1_ref[...]
    b1 = b1_ref[...]

    def gate_math(gates, c_prev):
        # PyTorch gate order i, f, g, o.  H is a multiple of 128 -> lane-aligned slices.
        i = jax.nn.sigmoid(gates[:, 0 * H:1 * H])
        f = jax.nn.sigmoid(gates[:, 1 * H:2 * H])
        g = jnp.tanh(gates[:, 2 * H:3 * H])
        o = jax.nn.sigmoid(gates[:, 3 * H:4 * H])
        c_new = f * c_prev + i * g
        h_new = o * jnp.tanh(c_new)
        return h_new, c_new

    def step(t, carry):
        h0v, c0v, h1v, c1v = carry
        # layer 0: input projection hoisted out; only the recurrent matmul remains.
        g0 = gx_ref[t] + jnp.dot(h0v.astype(mm_dtype), whh0,
                                 preferred_element_type=jnp.float32)
        h0n, c0n = gate_math(g0, c0v)
        # layer 1: single fused matmul over [h0_new, h1].
        xin1 = jnp.concatenate([h0n, h1v], axis=-1).astype(mm_dtype)  # (BB, 2H)
        g1 = jnp.dot(xin1, w1, preferred_element_type=jnp.float32) + b1
        h1n, c1n = gate_math(g1, c1v)
        out_ref[t] = h1n                       # contiguous (BB, H) store
        return (h0n, c0n, h1n, c1n)

    carry = (h0[...], c0[...], h1[...], c1[...])
    carry = jax.lax.fori_loop(0, tt, step, carry, unroll=True)
    h0[...], c0[...], h1[...], c1[...] = carry


def _pick_batch_block(batch):
    # v7x has 2 TensorCores: split the batch across them via the "parallel" grid axis
    # when the batch is large enough.  v5e/v6e have 1 TC -> single block is best there.
    if batch >= 16 and batch % 2 == 0 and (batch // 2) % 8 == 0:
        return batch // 2
    return batch


def lstm2_forward(x_btd, params, *, tt=8):
    """2-layer LSTM, batch_first semantics (like nn.LSTM(..., num_layers=2, batch_first=True)).

    x_btd: (B, T, D) float32
    returns: (B, T, H) float32 (top-layer hidden states for every timestep)
    """
    wih0, whh0, b0, wih1, whh1, b1 = params
    B, T, D = x_btd.shape
    H = whh0.shape[1]            # whh0 is (4H, H)
    assert H % 128 == 0, "hidden size must be a multiple of 128 for lane-aligned gates"
    mm = _matmul_dtype()

    # Hoisted input projection (no time dependence): one large matmul, emitted
    # time-major so the recurrent kernel reads contiguous (BB, 4H) slabs.
    gx = jnp.einsum('btd,dg->tbg', x_btd.astype(mm), wih0.T.astype(mm),
                    preferred_element_type=jnp.float32) + b0[None, None, :]   # (T, B, 4H)

    # Recurrent weights in the matmul dtype; fuse layer-1's two matmuls into one weight.
    whh0_t = whh0.T.astype(mm)                                   # (H, 4H)
    w1 = jnp.concatenate([wih1.T, whh1.T], axis=0).astype(mm)    # (2H, 4H)
    b1_2d = b1.reshape(1, 4 * H).astype(jnp.float32)

    # Chunk the time axis to amortize per-grid-step overhead (pad T to a multiple of tt;
    # padded steps see zero gate inputs and their outputs are sliced off below).
    n_chunks = pl.cdiv(T, tt)
    T_pad = n_chunks * tt
    if T_pad != T:
        gx = jnp.pad(gx, ((0, T_pad - T), (0, 0), (0, 0)))

    BB = _pick_batch_block(B)

    grid_spec = pltpu.PrefetchScalarGridSpec(
        num_scalar_prefetch=0,
        grid=(B // BB, n_chunks),                   # batch blocks x time chunks
        in_specs=[
            pl.BlockSpec((tt, BB, 4 * H), lambda b, c: (c, b, 0)),   # gx chunk
            pl.BlockSpec((H, 4 * H), lambda b, c: (0, 0)),           # W_hh layer 0
            pl.BlockSpec((2 * H, 4 * H), lambda b, c: (0, 0)),       # fused layer-1 weight
            pl.BlockSpec((1, 4 * H), lambda b, c: (0, 0)),           # layer-1 bias
        ],
        out_specs=pl.BlockSpec((tt, BB, H), lambda b, c: (c, b, 0)),
        scratch_shapes=[pltpu.VMEM((BB, H), jnp.float32)] * 4,       # h0, c0, h1, c1
    )

    h_tbh = pl.pallas_call(
        _lstm2_kernel,
        out_shape=jax.ShapeDtypeStruct((T_pad, B, H), jnp.float32),
        grid_spec=grid_spec,
        compiler_params=pltpu.CompilerParams(
            dimension_semantics=("parallel", "arbitrary"),   # batch parallel, time recurrent
        ),
    )(gx, whh0_t, w1, b1_2d)

    return jnp.transpose(h_tbh[:T], (1, 0, 2))               # back to (B, T, H)


# ----------------------------------------------------------------------------
# Pure-JAX reference (same matmul operand dtype / f32 accumulation as kernel).
# ----------------------------------------------------------------------------
def lstm2_reference(x_btd, params):
    wih0, whh0, b0, wih1, whh1, b1 = params
    B, T, D = x_btd.shape
    H = whh0.shape[1]
    mm = _matmul_dtype()

    def cell(x, h, c, wih, whh, bias):
        gates = (jnp.dot(x.astype(mm), wih.T.astype(mm), preferred_element_type=jnp.float32)
                 + jnp.dot(h.astype(mm), whh.T.astype(mm), preferred_element_type=jnp.float32)
                 + bias)
        i = jax.nn.sigmoid(gates[:, 0 * H:1 * H])
        f = jax.nn.sigmoid(gates[:, 1 * H:2 * H])
        g = jnp.tanh(gates[:, 2 * H:3 * H])
        o = jax.nn.sigmoid(gates[:, 3 * H:4 * H])
        c_new = f * c + i * g
        return o * jnp.tanh(c_new), c_new

    def step(carry, x_t):
        h0, c0, h1, c1 = carry
        h0, c0 = cell(x_t, h0, c0, wih0, whh0, b0)
        h1, c1 = cell(h0, h1, c1, wih1, whh1, b1)
        return (h0, c0, h1, c1), h1

    zeros = jnp.zeros((B, H), jnp.float32)
    _, h_seq = jax.lax.scan(step, (zeros, zeros, zeros, zeros),
                            jnp.transpose(x_btd, (1, 0, 2)))
    return jnp.transpose(h_seq, (1, 0, 2))


# ----------------------------------------------------------------------------
# DecoderLSTM forward (glue in plain JAX, LSTM hot path in Pallas).
# ----------------------------------------------------------------------------
def decoder_lstm_forward(encoder_out, encoded_captions, caption_lengths,
                         embedding_table, lstm_params):
    """
    encoder_out:      (B, num_pixels, encoder_dim)   -- only reordered (as in reference)
    encoded_captions: (B, max_caption_length) int32
    caption_lengths:  (B, 1) int32
    returns (predictions, sorted_encoded_captions, decode_lengths, sort_ind)
    """
    cap_len = caption_lengths.squeeze(1)
    # NOTE: argsort tie-breaking may differ from torch.sort(descending=True) for equal
    # lengths; per-row values remain correct.
    sort_ind = jnp.argsort(-cap_len)
    cap_len_sorted = cap_len[sort_ind]
    encoder_out = encoder_out[sort_ind]
    encoded_captions = encoded_captions[sort_ind]

    decode_lengths = cap_len_sorted - 1
    max_dec = int(jnp.max(decode_lengths))           # concrete (not under jit)

    # TODO(synk): self.decode_step / f_beta / sigmoid gate / fc / dropout /
    # attention_weighted_encoding are undefined in the reference module; we drive
    # the defined 2-layer self.LSTM with deterministic embeddings of the captions.
    embeddings = embedding_table[encoded_captions]           # (B, T_cap, D)
    x = embeddings[:, :max_dec, :].astype(jnp.float32)       # (B, max_dec, D)

    h_seq = lstm2_forward(x, lstm_params)                    # (B, max_dec, H) Pallas

    # predictions are zero-initialized and only written for t < decode_length
    mask = (jnp.arange(max_dec)[None, :] < decode_lengths[:, None])[..., None]
    predictions = jnp.where(mask, h_seq, 0.0)

    return predictions, encoded_captions, decode_lengths, sort_ind


# ----------------------------------------------------------------------------
# Deterministic parameter init (PyTorch nn.LSTM default: U(-1/sqrt(H), 1/sqrt(H)))
# ----------------------------------------------------------------------------
def init_lstm_params(key, input_dim, hidden):
    bound = 1.0 / jnp.sqrt(hidden)
    ks = jax.random.split(key, 8)
    u = lambda k, shape: jax.random.uniform(k, shape, jnp.float32, -bound, bound)
    wih0 = u(ks[0], (4 * hidden, input_dim))
    whh0 = u(ks[1], (4 * hidden, hidden))
    b0 = u(ks[2], (4 * hidden,)) + u(ks[3], (4 * hidden,))   # b_ih + b_hh folded
    wih1 = u(ks[4], (4 * hidden, hidden))
    whh1 = u(ks[5], (4 * hidden, hidden))
    b1 = u(ks[6], (4 * hidden,)) + u(ks[7], (4 * hidden,))
    return (wih0, whh0, b0, wih1, whh1, b1)


if __name__ == "__main__":
    key = jax.random.PRNGKey(0)
    k_enc, k_cap, k_len, k_emb, k_par = jax.random.split(key, 5)

    # Small shapes consistent with the module (scaled-down dims; H kept a multiple
    # of 128 so gate slices are lane-aligned, like the real config H=256).
    B, num_pixels, encoder_dim = 8, 16, 32
    max_caption_len, vocab = 10, 20
    input_dim, hidden = 128, 128          # reference defaults: 300 / 256

    encoder_out = jax.random.normal(k_enc, (B, num_pixels, encoder_dim), jnp.float32)
    encoded_captions = jax.random.randint(k_cap, (B, max_caption_len), 0, vocab, jnp.int32)
    caption_lengths = jax.random.randint(k_len, (B, 1), 2, max_caption_len + 1, jnp.int32)
    embedding_table = jax.random.normal(k_emb, (vocab, input_dim), jnp.float32)

    lstm_params = init_lstm_params(k_par, input_dim, hidden)

    preds, sorted_caps, decode_lengths, sort_ind = decoder_lstm_forward(
        encoder_out, encoded_captions, caption_lengths, embedding_table, lstm_params)
    jax.block_until_ready(preds)

    # Sanity check the Pallas LSTM against a pure-JAX reference (same matmul precision).
    cap_sorted = encoded_captions[sort_ind]
    max_dec = int(jnp.max(caption_lengths.squeeze(1)[sort_ind] - 1))
    x_check = embedding_table[cap_sorted][:, :max_dec, :]
    ref = lstm2_reference(x_check, lstm_params)
    got = lstm2_forward(x_check, lstm_params)
    jax.block_until_ready((ref, got))
    err = float(jnp.max(jnp.abs(ref - got)))
    assert err < 2e-2, f"Pallas LSTM mismatch vs reference: max abs err {err}"

    assert preds.shape == (B, max_dec, hidden)
    print("KERNEL_OK")
</pallas_src>

<mosaic_0001>
module attributes {stable_mosaic.version = 11 : i64} {
  func.func @_lstm2_kernel(%arg0: i32, %arg1: i32, %arg2: memref<8x8x512xf32, #tpu.memory_space<vmem>>, %arg3: memref<128x512xf32, #tpu.memory_space<vmem>>, %arg4: memref<256x512xf32, #tpu.memory_space<vmem>>, %arg5: memref<1x512xf32, #tpu.memory_space<vmem>>, %arg6: memref<8x8x128xf32, #tpu.memory_space<vmem>>, %arg7: memref<8x128xf32, #tpu.memory_space<vmem>>, %arg8: memref<8x128xf32, #tpu.memory_space<vmem>>, %arg9: memref<8x128xf32, #tpu.memory_space<vmem>>, %arg10: memref<8x128xf32, #tpu.memory_space<vmem>>) attributes {dimension_semantics = [#tpu.dimension_semantics<parallel>, #tpu.dimension_semantics<arbitrary>], iteration_bounds = array<i64: 1, 1>, scalar_prefetch = 0 : i64, scratch_operands = 4 : i64, tpu.core_type = #tpu.core_type<tc>, window_params = [{transform_indices = @transform_0, window_bounds = array<i64: 8, 8, 512>}, {pipeline_mode = #tpu.pipeline_mode<synchronous>, transform_indices = @transform_1, window_bounds = array<i64: 128, 512>}, {pipeline_mode = #tpu.pipeline_mode<synchronous>, transform_indices = @transform_2, window_bounds = array<i64: 256, 512>}, {pipeline_mode = #tpu.pipeline_mode<synchronous>, transform_indices = @transform_3, window_bounds = array<i64: 1, 512>}, {transform_indices = @transform_4, window_bounds = array<i64: 8, 8, 128>}]} {
    %c0_i32 = arith.constant 0 : i32
    %0 = arith.cmpi eq, %arg1, %c0_i32 : i32
    %1 = arith.extui %0 : i1 to i32
    %c0_i32_0 = arith.constant 0 : i32
    %2 = arith.cmpi ne, %1, %c0_i32_0 : i32
    scf.if %2 {
      %cst_118 = arith.constant 0.000000e+00 : f32
      %518 = vector.broadcast %cst_118 : f32 to vector<8x128xf32>
      %c0_119 = arith.constant 0 : index
      %c0_120 = arith.constant 0 : index
      %519 = vector.load %arg7[%c0_119, %c0_120] : memref<8x128xf32, #tpu.memory_space<vmem>>, vector<8x128xf32>
      tpu.vector_store %arg7[%c0_119, %c0_120], %518 {strides = array<i32>} : memref<8x128xf32, #tpu.memory_space<vmem>>, vector<8x128xf32>,
      %cst_121 = arith.constant 0.000000e+00 : f32
      %520 = vector.broadcast %cst_121 : f32 to vector<8x128xf32>
      %c0_122 = arith.constant 0 : index
      %c0_123 = arith.constant 0 : index
      %521 = vector.load %arg8[%c0_122, %c0_123] : memref<8x128xf32, #tpu.memory_space<vmem>>, vector<8x128xf32>
      tpu.vector_store %arg8[%c0_122, %c0_123], %520 {strides = array<i32>} : memref<8x128xf32, #tpu.memory_space<vmem>>, vector<8x128xf32>,
      %cst_124 = arith.constant 0.000000e+00 : f32
      %522 = vector.broadcast %cst_124 : f32 to vector<8x128xf32>
      %c0_125 = arith.constant 0 : index
      %c0_126 = arith.constant 0 : index
      %523 = vector.load %arg9[%c0_125, %c0_126] : memref<8x128xf32, #tpu.memory_space<vmem>>, vector<8x128xf32>
      tpu.vector_store %arg9[%c0_125, %c0_126], %522 {strides = array<i32>} : memref<8x128xf32, #tpu.memory_space<vmem>>, vector<8x128xf32>,
      %cst_127 = arith.constant 0.000000e+00 : f32
      %524 = vector.broadcast %cst_127 : f32 to vector<8x128xf32>
      %c0_128 = arith.constant 0 : index
      %c0_129 = arith.constant 0 : index
      %525 = vector.load %arg10[%c0_128, %c0_129] : memref<8x128xf32, #tpu.memory_space<vmem>>, vector<8x128xf32>
      tpu.vector_store %arg10[%c0_128, %c0_129], %524 {strides = array<i32>} : memref<8x128xf32, #tpu.memory_space<vmem>>, vector<8x128xf32>,
    } else {
    }
    %c0 = arith.constant 0 : index
    %c0_1 = arith.constant 0 : index
    %3 = vector.load %arg3[%c0, %c0_1] : memref<128x512xf32, #tpu.memory_space<vmem>>, vector<128x512xf32>
    %c0_2 = arith.constant 0 : index
    %c0_3 = arith.constant 0 : index
    %4 = vector.load %arg4[%c0_2, %c0_3] : memref<256x512xf32, #tpu.memory_space<vmem>>, vector<256x512xf32>
    %c0_4 = arith.constant 0 : index
    %c0_5 = arith.constant 0 : index
    %5 = vector.load %arg5[%c0_4, %c0_5] : memref<1x512xf32, #tpu.memory_space<vmem>>, vector<1x512xf32>
    %c0_6 = arith.constant 0 : index
    %c0_7 = arith.constant 0 : index
    %6 = vector.load %arg7[%c0_6, %c0_7] : memref<8x128xf32, #tpu.memory_space<vmem>>, vector<8x128xf32>
    %c0_8 = arith.constant 0 : index
    %c0_9 = arith.constant 0 : index
    %7 = vector.load %arg8[%c0_8, %c0_9] : memref<8x128xf32, #tpu.memory_space<vmem>>, vector<8x128xf32>
    %c0_10 = arith.constant 0 : index
    %c0_11 = arith.constant 0 : index
    %8 = vector.load %arg9[%c0_10, %c0_11] : memref<8x128xf32, #tpu.memory_space<vmem>>, vector<8x128xf32>
    %c0_12 = arith.constant 0 : index
    %c0_13 = arith.constant 0 : index
    %9 = vector.load %arg10[%c0_12, %c0_13] : memref<8x128xf32, #tpu.memory_space<vmem>>, vector<8x128xf32>
    %c0_i32_14 = arith.constant 0 : i32
    %10 = arith.index_cast %c0_i32_14 : i32 to index
    %c0_15 = arith.constant 0 : index
    %c0_16 = arith.constant 0 : index
    %11 = vector.load %arg2[%10, %c0_15, %c0_16] : memref<8x8x512xf32, #tpu.memory_space<vmem>>, vector<1x8x512xf32>
    %12 = vector.shape_cast %11 : vector<1x8x512xf32> to vector<8x512xf32>
    %cst = arith.constant dense<0.000000e+00> : vector<8x512xf32>
    %13 = tpu.matmul %6, %3, %cst {dimension_numbers = #tpu.dot_dimension_numbers<[1], [0], [0], [1], [0, 0, 1, 1], [], []>} : vector<8x128xf32>, vector<128x512xf32>, vector<8x512xf32> -> vector<8x512xf32>
    %14 = arith.addf %12, %13 : vector<8x512xf32>
    %15 = vector.extract_strided_slice %14 {offsets = [0, 0], sizes = [8, 128], strides = [1, 1]} : vector<8x512xf32> to vector<8x128xf32>
    %16 = arith.negf %15 : vector<8x128xf32>
    %17 = math.exp %16 : vector<8x128xf32>
    %cst_17 = arith.constant 1.000000e+00 : f32
    %18 = vector.broadcast %cst_17 : f32 to vector<8x128xf32>
    %19 = arith.addf %18, %17 : vector<8x128xf32>
    %20 = arith.divf %18, %19 : vector<8x128xf32>
    %21 = vector.extract_strided_slice %14 {offsets = [0, 128], sizes = [8, 128], strides = [1, 1]} : vector<8x512xf32> to vector<8x128xf32>
    %22 = arith.negf %21 : vector<8x128xf32>
    %23 = math.exp %22 : vector<8x128xf32>
    %cst_18 = arith.constant 1.000000e+00 : f32
    %24 = vector.broadcast %cst_18 : f32 to vector<8x128xf32>
    %25 = arith.addf %24, %23 : vector<8x128xf32>
    %26 = arith.divf %24, %25 : vector<8x128xf32>
    %27 = vector.extract_strided_slice %14 {offsets = [0, 256], sizes = [8, 128], strides = [1, 1]} : vector<8x512xf32> to vector<8x128xf32>
    %28 = math.tanh %27 : vector<8x128xf32>
    %29 = vector.extract_strided_slice %14 {offsets = [0, 384], sizes = [8, 128], strides = [1, 1]} : vector<8x512xf32> to vector<8x128xf32>
    %30 = arith.negf %29 : vector<8x128xf32>
    %31 = math.exp %30 : vector<8x128xf32>
    %cst_19 = arith.constant 1.000000e+00 : f32
    %32 = vector.broadcast %cst_19 : f32 to vector<8x128xf32>
    %33 = arith.addf %32, %31 : vector<8x128xf32>
    %34 = arith.divf %32, %33 : vector<8x128xf32>
    %35 = arith.mulf %26, %7 : vector<8x128xf32>
    %36 = arith.mulf %20, %28 : vector<8x128xf32>
    %37 = arith.addf %35, %36 : vector<8x128xf32>
    %38 = math.tanh %37 : vector<8x128xf32>
    %39 = arith.mulf %34, %38 : vector<8x128xf32>
    %40 = tpu.concatenate %39, %8 in 1 : vector<8x128xf32>, vector<8x128xf32> -> vector<8x256xf32>
    %cst_20 = arith.constant dense<0.000000e+00> : vector<8x512xf32>
    %41 = tpu.matmul %40, %4, %cst_20 {dimension_numbers = #tpu.dot_dimension_numbers<[1], [0], [0], [1], [0, 0, 1, 1], [], []>} : vector<8x256xf32>, vector<256x512xf32>, vector<8x512xf32> -> vector<8x512xf32>
    %42 = vector.broadcast %5 : vector<1x512xf32> to vector<8x512xf32>
    %43 = arith.addf %41, %42 : vector<8x512xf32>
    %44 = vector.extract_strided_slice %43 {offsets = [0, 0], sizes = [8, 128], strides = [1, 1]} : vector<8x512xf32> to vector<8x128xf32>
    %45 = arith.negf %44 : vector<8x128xf32>
    %46 = math.exp %45 : vector<8x128xf32>
    %cst_21 = arith.constant 1.000000e+00 : f32
    %47 = vector.broadcast %cst_21 : f32 to vector<8x128xf32>
    %48 = arith.addf %47, %46 : vector<8x128xf32>
    %49 = arith.divf %47, %48 : vector<8x128xf32>
    %50 = vector.extract_strided_slice %43 {offsets = [0, 128], sizes = [8, 128], strides = [1, 1]} : vector<8x512xf32> to vector<8x128xf32>
    %51 = arith.negf %50 : vector<8x128xf32>
    %52 = math.exp %51 : vector<8x128xf32>
    %cst_22 = arith.constant 1.000000e+00 : f32
    %53 = vector.broadcast %cst_22 : f32 to vector<8x128xf32>
    %54 = arith.addf %53, %52 : vector<8x128xf32>
    %55 = arith.divf %53, %54 : vector<8x128xf32>
    %56 = vector.extract_strided_slice %43 {offsets = [0, 256], sizes = [8, 128], strides = [1, 1]} : vector<8x512xf32> to vector<8x128xf32>
    %57 = math.tanh %56 : vector<8x128xf32>
    %58 = vector.extract_strided_slice %43 {offsets = [0, 384], sizes = [8, 128], strides = [1, 1]} : vector<8x512xf32> to vector<8x128xf32>
    %59 = arith.negf %58 : vector<8x128xf32>
    %60 = math.exp %59 : vector<8x128xf32>
    %cst_23 = arith.constant 1.000000e+00 : f32
    %61 = vector.broadcast %cst_23 : f32 to vector<8x128xf32>
    %62 = arith.addf %61, %60 : vector<8x128xf32>
    %63 = arith.divf %61, %62 : vector<8x128xf32>
    %64 = arith.mulf %55, %9 : vector<8x128xf32>
    %65 = arith.mulf %49, %57 : vector<8x128xf32>
    %66 = arith.addf %64, %65 : vector<8x128xf32>
    %67 = math.tanh %66 : vector<8x128xf32>
    %68 = arith.mulf %63, %67 : vector<8x128xf32>
    %69 = arith.index_cast %c0_i32_14 : i32 to index
    %c0_24 = arith.constant 0 : index
    %c0_25 = arith.constant 0 : index
    %70 = vector.load %arg6[%69, %c0_24, %c0_25] : memref<8x8x128xf32, #tpu.memory_space<vmem>>, vector<1x8x128xf32>
    %71 = vector.shape_cast %70 : vector<1x8x128xf32> to vector<8x128xf32>
    %72 = vector.shape_cast %68 : vector<8x128xf32> to vector<1x8x128xf32>
    tpu.vector_store %arg6[%69, %c0_24, %c0_25], %72 {strides = array<i32>} : memref<8x8x128xf32, #tpu.memory_space<vmem>>, vector<1x8x128xf32>,
    %c1_i32 = arith.constant 1 : i32
    %73 = arith.index_cast %c1_i32 : i32 to index
    %c0_26 = arith.constant 0 : index
    %c0_27 = arith.constant 0 : index
    %74 = vector.load %arg2[%73, %c0_26, %c0_27] : memref<8x8x512xf32, #tpu.memory_space<vmem>>, vector<1x8x512xf32>
    %75 = vector.shape_cast %74 : vector<1x8x512xf32> to vector<8x512xf32>
    %cst_28 = arith.constant dense<0.000000e+00> : vector<8x512xf32>
    %76 = tpu.matmul %39, %3, %cst_28 {dimension_numbers = #tpu.dot_dimension_numbers<[1], [0], [0], [1], [0, 0, 1, 1], [], []>} : vector<8x128xf32>, vector<128x512xf32>, vector<8x512xf32> -> vector<8x512xf32>
    %77 = arith.addf %75, %76 : vector<8x512xf32>
    %78 = vector.extract_strided_slice %77 {offsets = [0, 0], sizes = [8, 128], strides = [1, 1]} : vector<8x512xf32> to vector<8x128xf32>
    %79 = arith.negf %78 : vector<8x128xf32>
    %80 = math.exp %79 : vector<8x128xf32>
    %cst_29 = arith.constant 1.000000e+00 : f32
    %81 = vector.broadcast %cst_29 : f32 to vector<8x128xf32>
    %82 = arith.addf %81, %80 : vector<8x128xf32>
    %83 = arith.divf %81, %82 : vector<8x128xf32>
    %84 = vector.extract_strided_slice %77 {offsets = [0, 128], sizes = [8, 128], strides = [1, 1]} : vector<8x512xf32> to vector<8x128xf32>
    %85 = arith.negf %84 : vector<8x128xf32>
    %86 = math.exp %85 : vector<8x128xf32>
    %cst_30 = arith.constant 1.000000e+00 : f32
    %87 = vector.broadcast %cst_30 : f32 to vector<8x128xf32>
    %88 = arith.addf %87, %86 : vector<8x128xf32>
    %89 = arith.divf %87, %88 : vector<8x128xf32>
    %90 = vector.extract_strided_slice %77 {offsets = [0, 256], sizes = [8, 128], strides = [1, 1]} : vector<8x512xf32> to vector<8x128xf32>
    %91 = math.tanh %90 : vector<8x128xf32>
    %92 = vector.extract_strided_slice %77 {offsets = [0, 384], sizes = [8, 128], strides = [1, 1]} : vector<8x512xf32> to vector<8x128xf32>
    %93 = arith.negf %92 : vector<8x128xf32>
    %94 = math.exp %93 : vector<8x128xf32>
    %cst_31 = arith.constant 1.000000e+00 : f32
    %95 = vector.broadcast %cst_31 : f32 to vector<8x128xf32>
    %96 = arith.addf %95, %94 : vector<8x128xf32>
    %97 = arith.divf %95, %96 : vector<8x128xf32>
    %98 = arith.mulf %89, %37 : vector<8x128xf32>
    %99 = arith.mulf %83, %91 : vector<8x128xf32>
    %100 = arith.addf %98, %99 : vector<8x128xf32>
    %101 = math.tanh %100 : vector<8x128xf32>
    %102 = arith.mulf %97, %101 : vector<8x128xf32>
    %103 = tpu.concatenate %102, %68 in 1 : vector<8x128xf32>, vector<8x128xf32> -> vector<8x256xf32>
    %cst_32 = arith.constant dense<0.000000e+00> : vector<8x512xf32>
    %104 = tpu.matmul %103, %4, %cst_32 {dimension_numbers = #tpu.dot_dimension_numbers<[1], [0], [0], [1], [0, 0, 1, 1], [], []>} : vector<8x256xf32>, vector<256x512xf32>, vector<8x512xf32> -> vector<8x512xf32>
    %105 = vector.broadcast %5 : vector<1x512xf32> to vector<8x512xf32>
    %106 = arith.addf %104, %105 : vector<8x512xf32>
    %107 = vector.extract_strided_slice %106 {offsets = [0, 0], sizes = [8, 128], strides = [1, 1]} : vector<8x512xf32> to vector<8x128xf32>
    %108 = arith.negf %107 : vector<8x128xf32>
    %109 = math.exp %108 : vector<8x128xf32>
    %cst_33 = arith.constant 1.000000e+00 : f32
    %110 = vector.broadcast %cst_33 : f32 to vector<8x128xf32>
    %111 = arith.addf %110, %109 : vector<8x128xf32>
    %112 = arith.divf %110, %111 : vector<8x128xf32>
    %113 = vector.extract_strided_slice %106 {offsets = [0, 128], sizes = [8, 128], strides = [1, 1]} : vector<8x512xf32> to vector<8x128xf32>
    %114 = arith.negf %113 : vector<8x128xf32>
    %115 = math.exp %114 : vector<8x128xf32>
    %cst_34 = arith.constant 1.000000e+00 : f32
    %116 = vector.broadcast %cst_34 : f32 to vector<8x128xf32>
    %117 = arith.addf %116, %115 : vector<8x128xf32>
    %118 = arith.divf %116, %117 : vector<8x128xf32>
    %119 = vector.extract_strided_slice %106 {offsets = [0, 256], sizes = [8, 128], strides = [1, 1]} : vector<8x512xf32> to vector<8x128xf32>
    %120 = math.tanh %119 : vector<8x128xf32>
    %121 = vector.extract_strided_slice %106 {offsets = [0, 384], sizes = [8, 128], strides = [1, 1]} : vector<8x512xf32> to vector<8x128xf32>
    %122 = arith.negf %121 : vector<8x128xf32>
    %123 = math.exp %122 : vector<8x128xf32>
    %cst_35 = arith.constant 1.000000e+00 : f32
    %124 = vector.broadcast %cst_35 : f32 to vector<8x128xf32>
    %125 = arith.addf %124, %123 : vector<8x128xf32>
    %126 = arith.divf %124, %125 : vector<8x128xf32>
    %127 = arith.mulf %118, %66 : vector<8x128xf32>
    %128 = arith.mulf %112, %120 : vector<8x128xf32>
    %129 = arith.addf %127, %128 : vector<8x128xf32>
    %130 = math.tanh %129 : vector<8x128xf32>
    %131 = arith.mulf %126, %130 : vector<8x128xf32>
    %132 = arith.index_cast %c1_i32 : i32 to index
    %c0_36 = arith.constant 0 : index
    %c0_37 = arith.constant 0 : index
    %133 = vector.load %arg6[%132, %c0_36, %c0_37] : memref<8x8x128xf32, #tpu.memory_space<vmem>>, vector<1x8x128xf32>
    %134 = vector.shape_cast %133 : vector<1x8x128xf32> to vector<8x128xf32>
    %135 = vector.shape_cast %131 : vector<8x128xf32> to vector<1x8x128xf32>
    tpu.vector_store %arg6[%132, %c0_36, %c0_37], %135 {strides = array<i32>} : memref<8x8x128xf32, #tpu.memory_space<vmem>>, vector<1x8x128xf32>,
    %c2_i32 = arith.constant 2 : i32
    %136 = arith.index_cast %c2_i32 : i32 to index
    %c0_38 = arith.constant 0 : index
    %c0_39 = arith.constant 0 : index
    %137 = vector.load %arg2[%136, %c0_38, %c0_39] : memref<8x8x512xf32, #tpu.memory_space<vmem>>, vector<1x8x512xf32>
    %138 = vector.shape_cast %137 : vector<1x8x512xf32> to vector<8x512xf32>
    %cst_40 = arith.constant dense<0.000000e+00> : vector<8x512xf32>
    %139 = tpu.matmul %102, %3, %cst_40 {dimension_numbers = #tpu.dot_dimension_numbers<[1], [0], [0], [1], [0, 0, 1, 1], [], []>} : vector<8x128xf32>, vector<128x512xf32>, vector<8x512xf32> -> vector<8x512xf32>
    %140 = arith.addf %138, %139 : vector<8x512xf32>
    %141 = vector.extract_strided_slice %140 {offsets = [0, 0], sizes = [8, 128], strides = [1, 1]} : vector<8x512xf32> to vector<8x128xf32>
    %142 = arith.negf %141 : vector<8x128xf32>
    %143 = math.exp %142 : vector<8x128xf32>
    %cst_41 = arith.constant 1.000000e+00 : f32
    %144 = vector.broadcast %cst_41 : f32 to vector<8x128xf32>
    %145 = arith.addf %144, %143 : vector<8x128xf32>
    %146 = arith.divf %144, %145 : vector<8x128xf32>
    %147 = vector.extract_strided_slice %140 {offsets = [0, 128], sizes = [8, 128], strides = [1, 1]} : vector<8x512xf32> to vector<8x128xf32>
    %148 = arith.negf %147 : vector<8x128xf32>
    %149 = math.exp %148 : vector<8x128xf32>
    %cst_42 = arith.constant 1.000000e+00 : f32
    %150 = vector.broadcast %cst_42 : f32 to vector<8x128xf32>
    %151 = arith.addf %150, %149 : vector<8x128xf32>
    %152 = arith.divf %150, %151 : vector<8x128xf32>
    %153 = vector.extract_strided_slice %140 {offsets = [0, 256], sizes = [8, 128], strides = [1, 1]} : vector<8x512xf32> to vector<8x128xf32>
    %154 = math.tanh %153 : vector<8x128xf32>
    %155 = vector.extract_strided_slice %140 {offsets = [0, 384], sizes = [8, 128], strides = [1, 1]} : vector<8x512xf32> to vector<8x128xf32>
    %156 = arith.negf %155 : vector<8x128xf32>
    %157 = math.exp %156 : vector<8x128xf32>
    %cst_43 = arith.constant 1.000000e+00 : f32
    %158 = vector.broadcast %cst_43 : f32 to vector<8x128xf32>
    %159 = arith.addf %158, %157 : vector<8x128xf32>
    %160 = arith.divf %158, %159 : vector<8x128xf32>
    %161 = arith.mulf %152, %100 : vector<8x128xf32>
    %162 = arith.mulf %146, %154 : vector<8x128xf32>
    %163 = arith.addf %161, %162 : vector<8x128xf32>
    %164 = math.tanh %163 : vector<8x128xf32>
    %165 = arith.mulf %160, %164 : vector<8x128xf32>
    %166 = tpu.concatenate %165, %131 in 1 : vector<8x128xf32>, vector<8x128xf32> -> vector<8x256xf32>
    %cst_44 = arith.constant dense<0.000000e+00> : vector<8x512xf32>
    %167 = tpu.matmul %166, %4, %cst_44 {dimension_numbers = #tpu.dot_dimension_numbers<[1], [0], [0], [1], [0, 0, 1, 1], [], []>} : vector<8x256xf32>, vector<256x512xf32>, vector<8x512xf32> -> vector<8x512xf32>
    %168 = vector.broadcast %5 : vector<1x512xf32> to vector<8x512xf32>
    %169 = arith.addf %167, %168 : vector<8x512xf32>
    %170 = vector.extract_strided_slice %169 {offsets = [0, 0], sizes = [8, 128], strides = [1, 1]} : vector<8x512xf32> to vector<8x128xf32>
    %171 = arith.negf %170 : vector<8x128xf32>
    %172 = math.exp %171 : vector<8x128xf32>
    %cst_45 = arith.constant 1.000000e+00 : f32
    %173 = vector.broadcast %cst_45 : f32 to vector<8x128xf32>
    %174 = arith.addf %173, %172 : vector<8x128xf32>
    %175 = arith.divf %173, %174 : vector<8x128xf32>
    %176 = vector.extract_strided_slice %169 {offsets = [0, 128], sizes = [8, 128], strides = [1, 1]} : vector<8x512xf32> to vector<8x128xf32>
    %177 = arith.negf %176 : vector<8x128xf32>
    %178 = math.exp %177 : vector<8x128xf32>
    %cst_46 = arith.constant 1.000000e+00 : f32
    %179 = vector.broadcast %cst_46 : f32 to vector<8x128xf32>
    %180 = arith.addf %179, %178 : vector<8x128xf32>
    %181 = arith.divf %179, %180 : vector<8x128xf32>
    %182 = vector.extract_strided_slice %169 {offsets = [0, 256], sizes = [8, 128], strides = [1, 1]} : vector<8x512xf32> to vector<8x128xf32>
    %183 = math.tanh %182 : vector<8x128xf32>
    %184 = vector.extract_strided_slice %169 {offsets = [0, 384], sizes = [8, 128], strides = [1, 1]} : vector<8x512xf32> to vector<8x128xf32>
    %185 = arith.negf %184 : vector<8x128xf32>
    %186 = math.exp %185 : vector<8x128xf32>
    %cst_47 = arith.constant 1.000000e+00 : f32
    %187 = vector.broadcast %cst_47 : f32 to vector<8x128xf32>
    %188 = arith.addf %187, %186 : vector<8x128xf32>
    %189 = arith.divf %187, %188 : vector<8x128xf32>
    %190 = arith.mulf %181, %129 : vector<8x128xf32>
    %191 = arith.mulf %175, %183 : vector<8x128xf32>
    %192 = arith.addf %190, %191 : vector<8x128xf32>
    %193 = math.tanh %192 : vector<8x128xf32>
    %194 = arith.mulf %189, %193 : vector<8x128xf32>
    %195 = arith.index_cast %c2_i32 : i32 to index
    %c0_48 = arith.constant 0 : index
    %c0_49 = arith.constant 0 : index
    %196 = vector.load %arg6[%195, %c0_48, %c0_49] : memref<8x8x128xf32, #tpu.memory_space<vmem>>, vector<1x8x128xf32>
    %197 = vector.shape_cast %196 : vector<1x8x128xf32> to vector<8x128xf32>
    %198 = vector.shape_cast %194 : vector<8x128xf32> to vector<1x8x128xf32>
    tpu.vector_store %arg6[%195, %c0_48, %c0_49], %198 {strides = array<i32>} : memref<8x8x128xf32, #tpu.memory_space<vmem>>, vector<1x8x128xf32>,
    %c3_i32 = arith.constant 3 : i32
    %199 = arith.index_cast %c3_i32 : i32 to index
    %c0_50 = arith.constant 0 : index
    %c0_51 = arith.constant 0 : index
    %200 = vector.load %arg2[%199, %c0_50, %c0_51] : memref<8x8x512xf32, #tpu.memory_space<vmem>>, vector<1x8x512xf32>
    %201 = vector.shape_cast %200 : vector<1x8x512xf32> to vector<8x512xf32>
    %cst_52 = arith.constant dense<0.000000e+00> : vector<8x512xf32>
    %202 = tpu.matmul %165, %3, %cst_52 {dimension_numbers = #tpu.dot_dimension_numbers<[1], [0], [0], [1], [0, 0, 1, 1], [], []>} : vector<8x128xf32>, vector<128x512xf32>, vector<8x512xf32> -> vector<8x512xf32>
    %203 = arith.addf %201, %202 : vector<8x512xf32>
    %204 = vector.extract_strided_slice %203 {offsets = [0, 0], sizes = [8, 128], strides = [1, 1]} : vector<8x512xf32> to vector<8x128xf32>
    %205 = arith.negf %204 : vector<8x128xf32>
    %206 = math.exp %205 : vector<8x128xf32>
    %cst_53 = arith.constant 1.000000e+00 : f32
    %207 = vector.broadcast %cst_53 : f32 to vector<8x128xf32>
    %208 = arith.addf %207, %206 : vector<8x128xf32>
    %209 = arith.divf %207, %208 : vector<8x128xf32>
    %210 = vector.extract_strided_slice %203 {offsets = [0, 128], sizes = [8, 128], strides = [1, 1]} : vector<8x512xf32> to vector<8x128xf32>
    %211 = arith.negf %210 : vector<8x128xf32>
    %212 = math.exp %211 : vector<8x128xf32>
    %cst_54 = arith.constant 1.000000e+00 : f32
    %213 = vector.broadcast %cst_54 : f32 to vector<8x128xf32>
    %214 = arith.addf %213, %212 : vector<8x128xf32>
    %215 = arith.divf %213, %214 : vector<8x128xf32>
    %216 = vector.extract_strided_slice %203 {offsets = [0, 256], sizes = [8, 128], strides = [1, 1]} : vector<8x512xf32> to vector<8x128xf32>
    %217 = math.tanh %216 : vector<8x128xf32>
    %218 = vector.extract_strided_slice %203 {offsets = [0, 384], sizes = [8, 128], strides = [1, 1]} : vector<8x512xf32> to vector<8x128xf32>
    %219 = arith.negf %218 : vector<8x128xf32>
    %220 = math.exp %219 : vector<8x128xf32>
    %cst_55 = arith.constant 1.000000e+00 : f32
    %221 = vector.broadcast %cst_55 : f32 to vector<8x128xf32>
    %222 = arith.addf %221, %220 : vector<8x128xf32>
    %223 = arith.divf %221, %222 : vector<8x128xf32>
    %224 = arith.mulf %215, %163 : vector<8x128xf32>
    %225 = arith.mulf %209, %217 : vector<8x128xf32>
    %226 = arith.addf %224, %225 : vector<8x128xf32>
    %227 = math.tanh %226 : vector<8x128xf32>
    %228 = arith.mulf %223, %227 : vector<8x128xf32>
    %229 = tpu.concatenate %228, %194 in 1 : vector<8x128xf32>, vector<8x128xf32> -> vector<8x256xf32>
    %cst_56 = arith.constant dense<0.000000e+00> : vector<8x512xf32>
    %230 = tpu.matmul %229, %4, %cst_56 {dimension_numbers = #tpu.dot_dimension_numbers<[1], [0], [0], [1], [0, 0, 1, 1], [], []>} : vector<8x256xf32>, vector<256x512xf32>, vector<8x512xf32> -> vector<8x512xf32>
    %231 = vector.broadcast %5 : vector<1x512xf32> to vector<8x512xf32>
    %232 = arith.addf %230, %231 : vector<8x512xf32>
    %233 = vector.extract_strided_slice %232 {offsets = [0, 0], sizes = [8, 128], strides = [1, 1]} : vector<8x512xf32> to vector<8x128xf32>
    %234 = arith.negf %233 : vector<8x128xf32>
    %235 = math.exp %234 : vector<8x128xf32>
    %cst_57 = arith.constant 1.000000e+00 : f32
    %236 = vector.broadcast %cst_57 : f32 to vector<8x128xf32>
    %237 = arith.addf %236, %235 : vector<8x128xf32>
    %238 = arith.divf %236, %237 : vector<8x128xf32>
    %239 = vector.extract_strided_slice %232 {offsets = [0, 128], sizes = [8, 128], strides = [1, 1]} : vector<8x512xf32> to vector<8x128xf32>
    %240 = arith.negf %239 : vector<8x128xf32>
    %241 = math.exp %240 : vector<8x128xf32>
    %cst_58 = arith.constant 1.000000e+00 : f32
    %242 = vector.broadcast %cst_58 : f32 to vector<8x128xf32>
    %243 = arith.addf %242, %241 : vector<8x128xf32>
    %244 = arith.divf %242, %243 : vector<8x128xf32>
    %245 = vector.extract_strided_slice %232 {offsets = [0, 256], sizes = [8, 128], strides = [1, 1]} : vector<8x512xf32> to vector<8x128xf32>
    %246 = math.tanh %245 : vector<8x128xf32>
    %247 = vector.extract_strided_slice %232 {offsets = [0, 384], sizes = [8, 128], strides = [1, 1]} : vector<8x512xf32> to vector<8x128xf32>
    %248 = arith.negf %247 : vector<8x128xf32>
    %249 = math.exp %248 : vector<8x128xf32>
    %cst_59 = arith.constant 1.000000e+00 : f32
    %250 = vector.broadcast %cst_59 : f32 to vector<8x128xf32>
    %251 = arith.addf %250, %249 : vector<8x128xf32>
    %252 = arith.divf %250, %251 : vector<8x128xf32>
    %253 = arith.mulf %244, %192 : vector<8x128xf32>
    %254 = arith.mulf %238, %246 : vector<8x128xf32>
    %255 = arith.addf %253, %254 : vector<8x128xf32>
    %256 = math.tanh %255 : vector<8x128xf32>
    %257 = arith.mulf %252, %256 : vector<8x128xf32>
    %258 = arith.index_cast %c3_i32 : i32 to index
    %c0_60 = arith.constant 0 : index
    %c0_61 = arith.constant 0 : index
    %259 = vector.load %arg6[%258, %c0_60, %c0_61] : memref<8x8x128xf32, #tpu.memory_space<vmem>>, vector<1x8x128xf32>
    %260 = vector.shape_cast %259 : vector<1x8x128xf32> to vector<8x128xf32>
    %261 = vector.shape_cast %257 : vector<8x128xf32> to vector<1x8x128xf32>
    tpu.vector_store %arg6[%258, %c0_60, %c0_61], %261 {strides = array<i32>} : memref<8x8x128xf32, #tpu.memory_space<vmem>>, vector<1x8x128xf32>,
    %c4_i32 = arith.constant 4 : i32
    %262 = arith.index_cast %c4_i32 : i32 to index
    %c0_62 = arith.constant 0 : index
    %c0_63 = arith.constant 0 : index
    %263 = vector.load %arg2[%262, %c0_62, %c0_63] : memref<8x8x512xf32, #tpu.memory_space<vmem>>, vector<1x8x512xf32>
    %264 = vector.shape_cast %263 : vector<1x8x512xf32> to vector<8x512xf32>
    %cst_64 = arith.constant dense<0.000000e+00> : vector<8x512xf32>
    %265 = tpu.matmul %228, %3, %cst_64 {dimension_numbers = #tpu.dot_dimension_numbers<[1], [0], [0], [1], [0, 0, 1, 1], [], []>} : vector<8x128xf32>, vector<128x512xf32>, vector<8x512xf32> -> vector<8x512xf32>
    %266 = arith.addf %264, %265 : vector<8x512xf32>
    %267 = vector.extract_strided_slice %266 {offsets = [0, 0], sizes = [8, 128], strides = [1, 1]} : vector<8x512xf32> to vector<8x128xf32>
    %268 = arith.negf %267 : vector<8x128xf32>
    %269 = math.exp %268 : vector<8x128xf32>
    %cst_65 = arith.constant 1.000000e+00 : f32
    %270 = vector.broadcast %cst_65 : f32 to vector<8x128xf32>
    %271 = arith.addf %270, %269 : vector<8x128xf32>
    %272 = arith.divf %270, %271 : vector<8x128xf32>
    %273 = vector.extract_strided_slice %266 {offsets = [0, 128], sizes = [8, 128], strides = [1, 1]} : vector<8x512xf32> to vector<8x128xf32>
    %274 = arith.negf %273 : vector<8x128xf32>
    %275 = math.exp %274 : vector<8x128xf32>
    %cst_66 = arith.constant 1.000000e+00 : f32
    %276 = vector.broadcast %cst_66 : f32 to vector<8x128xf32>
    %277 = arith.addf %276, %275 : vector<8x128xf32>
    %278 = arith.divf %276, %277 : vector<8x128xf32>
    %279 = vector.extract_strided_slice %266 {offsets = [0, 256], sizes = [8, 128], strides = [1, 1]} : vector<8x512xf32> to vector<8x128xf32>
    %280 = math.tanh %279 : vector<8x128xf32>
    %281 = vector.extract_strided_slice %266 {offsets = [0, 384], sizes = [8, 128], strides = [1, 1]} : vector<8x512xf32> to vector<8x128xf32>
    %282 = arith.negf %281 : vector<8x128xf32>
    %283 = math.exp %282 : vector<8x128xf32>
    %cst_67 = arith.constant 1.000000e+00 : f32
    %284 = vector.broadcast %cst_67 : f32 to vector<8x128xf32>
    %285 = arith.addf %284, %283 : vector<8x128xf32>
    %286 = arith.divf %284, %285 : vector<8x128xf32>
    %287 = arith.mulf %278, %226 : vector<8x128xf32>
    %288 = arith.mulf %272, %280 : vector<8x128xf32>
    %289 = arith.addf %287, %288 : vector<8x128xf32>
    %290 = math.tanh %289 : vector<8x128xf32>
    %291 = arith.mulf %286, %290 : vector<8x128xf32>
    %292 = tpu.concatenate %291, %257 in 1 : vector<8x128xf32>, vector<8x128xf32> -> vector<8x256xf32>
    %cst_68 = arith.constant dense<0.000000e+00> : vector<8x512xf32>
    %293 = tpu.matmul %292, %4, %cst_68 {dimension_numbers = #tpu.dot_dimension_numbers<[1], [0], [0], [1], [0, 0, 1, 1], [], []>} : vector<8x256xf32>, vector<256x512xf32>, vector<8x512xf32> -> vector<8x512xf32>
    %294 = vector.broadcast %5 : vector<1x512xf32> to vector<8x512xf32>
    %295 = arith.addf %293, %294 : vector<8x512xf32>
    %296 = vector.extract_strided_slice %295 {offsets = [0, 0], sizes = [8, 128], strides = [1, 1]} : vector<8x512xf32> to vector<8x128xf32>
    %297 = arith.negf %296 : vector<8x128xf32>
    %298 = math.exp %297 : vector<8x128xf32>
    %cst_69 = arith.constant 1.000000e+00 : f32
    %299 = vector.broadcast %cst_69 : f32 to vector<8x128xf32>
    %300 = arith.addf %299, %298 : vector<8x128xf32>
    %301 = arith.divf %299, %300 : vector<8x128xf32>
    %302 = vector.extract_strided_slice %295 {offsets = [0, 128], sizes = [8, 128], strides = [1, 1]} : vector<8x512xf32> to vector<8x128xf32>
    %303 = arith.negf %302 : vector<8x128xf32>
    %304 = math.exp %303 : vector<8x128xf32>
    %cst_70 = arith.constant 1.000000e+00 : f32
    %305 = vector.broadcast %cst_70 : f32 to vector<8x128xf32>
    %306 = arith.addf %305, %304 : vector<8x128xf32>
    %307 = arith.divf %305, %306 : vector<8x128xf32>
    %308 = vector.extract_strided_slice %295 {offsets = [0, 256], sizes = [8, 128], strides = [1, 1]} : vector<8x512xf32> to vector<8x128xf32>
    %309 = math.tanh %308 : vector<8x128xf32>
    %310 = vector.extract_strided_slice %295 {offsets = [0, 384], sizes = [8, 128], strides = [1, 1]} : vector<8x512xf32> to vector<8x128xf32>
    %311 = arith.negf %310 : vector<8x128xf32>
    %312 = math.exp %311 : vector<8x128xf32>
    %cst_71 = arith.constant 1.000000e+00 : f32
    %313 = vector.broadcast %cst_71 : f32 to vector<8x128xf32>
    %314 = arith.addf %313, %312 : vector<8x128xf32>
    %315 = arith.divf %313, %314 : vector<8x128xf32>
    %316 = arith.mulf %307, %255 : vector<8x128xf32>
    %317 = arith.mulf %301, %309 : vector<8x128xf32>
    %318 = arith.addf %316, %317 : vector<8x128xf32>
    %319 = math.tanh %318 : vector<8x128xf32>
    %320 = arith.mulf %315, %319 : vector<8x128xf32>
    %321 = arith.index_cast %c4_i32 : i32 to index
    %c0_72 = arith.constant 0 : index
    %c0_73 = arith.constant 0 : index
    %322 = vector.load %arg6[%321, %c0_72, %c0_73] : memref<8x8x128xf32, #tpu.memory_space<vmem>>, vector<1x8x128xf32>
    %323 = vector.shape_cast %322 : vector<1x8x128xf32> to vector<8x128xf32>
    %324 = vector.shape_cast %320 : vector<8x128xf32> to vector<1x8x128xf32>
    tpu.vector_store %arg6[%321, %c0_72, %c0_73], %324 {strides = array<i32>} : memref<8x8x128xf32, #tpu.memory_space<vmem>>, vector<1x8x128xf32>,
    %c5_i32 = arith.constant 5 : i32
    %325 = arith.index_cast %c5_i32 : i32 to index
    %c0_74 = arith.constant 0 : index
    %c0_75 = arith.constant 0 : index
    %326 = vector.load %arg2[%325, %c0_74, %c0_75] : memref<8x8x512xf32, #tpu.memory_space<vmem>>, vector<1x8x512xf32>
    %327 = vector.shape_cast %326 : vector<1x8x512xf32> to vector<8x512xf32>
    %cst_76 = arith.constant dense<0.000000e+00> : vector<8x512xf32>
    %328 = tpu.matmul %291, %3, %cst_76 {dimension_numbers = #tpu.dot_dimension_numbers<[1], [0], [0], [1], [0, 0, 1, 1], [], []>} : vector<8x128xf32>, vector<128x512xf32>, vector<8x512xf32> -> vector<8x512xf32>
    %329 = arith.addf %327, %328 : vector<8x512xf32>
    %330 = vector.extract_strided_slice %329 {offsets = [0, 0], sizes = [8, 128], strides = [1, 1]} : vector<8x512xf32> to vector<8x128xf32>
    %331 = arith.negf %330 : vector<8x128xf32>
    %332 = math.exp %331 : vector<8x128xf32>
    %cst_77 = arith.constant 1.000000e+00 : f32
    %333 = vector.broadcast %cst_77 : f32 to vector<8x128xf32>
    %334 = arith.addf %333, %332 : vector<8x128xf32>
    %335 = arith.divf %333, %334 : vector<8x128xf32>
    %336 = vector.extract_strided_slice %329 {offsets = [0, 128], sizes = [8, 128], strides = [1, 1]} : vector<8x512xf32> to vector<8x128xf32>
    %337 = arith.negf %336 : vector<8x128xf32>
    %338 = math.exp %337 : vector<8x128xf32>
    %cst_78 = arith.constant 1.000000e+00 : f32
    %339 = vector.broadcast %cst_78 : f32 to vector<8x128xf32>
    %340 = arith.addf %339, %338 : vector<8x128xf32>
    %341 = arith.divf %339, %340 : vector<8x128xf32>
    %342 = vector.extract_strided_slice %329 {offsets = [0, 256], sizes = [8, 128], strides = [1, 1]} : vector<8x512xf32> to vector<8x128xf32>
    %343 = math.tanh %342 : vector<8x128xf32>
    %344 = vector.extract_strided_slice %329 {offsets = [0, 384], sizes = [8, 128], strides = [1, 1]} : vector<8x512xf32> to vector<8x128xf32>
    %345 = arith.negf %344 : vector<8x128xf32>
    %346 = math.exp %345 : vector<8x128xf32>
    %cst_79 = arith.constant 1.000000e+00 : f32
    %347 = vector.broadcast %cst_79 : f32 to vector<8x128xf32>
    %348 = arith.addf %347, %346 : vector<8x128xf32>
    %349 = arith.divf %347, %348 : vector<8x128xf32>
    %350 = arith.mulf %341, %289 : vector<8x128xf32>
    %351 = arith.mulf %335, %343 : vector<8x128xf32>
    %352 = arith.addf %350, %351 : vector<8x128xf32>
    %353 = math.tanh %352 : vector<8x128xf32>
    %354 = arith.mulf %349, %353 : vector<8x128xf32>
    %355 = tpu.concatenate %354, %320 in 1 : vector<8x128xf32>, vector<8x128xf32> -> vector<8x256xf32>
    %cst_80 = arith.constant dense<0.000000e+00> : vector<8x512xf32>
    %356 = tpu.matmul %355, %4, %cst_80 {dimension_numbers = #tpu.dot_dimension_numbers<[1], [0], [0], [1], [0, 0, 1, 1], [], []>} : vector<8x256xf32>, vector<256x512xf32>, vector<8x512xf32> -> vector<8x512xf32>
    %357 = vector.broadcast %5 : vector<1x512xf32> to vector<8x512xf32>
    %358 = arith.addf %356, %357 : vector<8x512xf32>
    %359 = vector.extract_strided_slice %358 {offsets = [0, 0], sizes = [8, 128], strides = [1, 1]} : vector<8x512xf32> to vector<8x128xf32>
    %360 = arith.negf %359 : vector<8x128xf32>
    %361 = math.exp %360 : vector<8x128xf32>
    %cst_81 = arith.constant 1.000000e+00 : f32
    %362 = vector.broadcast %cst_81 : f32 to vector<8x128xf32>
    %363 = arith.addf %362, %361 : vector<8x128xf32>
    %364 = arith.divf %362, %363 : vector<8x128xf32>
    %365 = vector.extract_strided_slice %358 {offsets = [0, 128], sizes = [8, 128], strides = [1, 1]} : vector<8x512xf32> to vector<8x128xf32>
    %366 = arith.negf %365 : vector<8x128xf32>
    %367 = math.exp %366 : vector<8x128xf32>
    %cst_82 = arith.constant 1.000000e+00 : f32
    %368 = vector.broadcast %cst_82 : f32 to vector<8x128xf32>
    %369 = arith.addf %368, %367 : vector<8x128xf32>
    %370 = arith.divf %368, %369 : vector<8x128xf32>
    %371 = vector.extract_strided_slice %358 {offsets = [0, 256], sizes = [8, 128], strides = [1, 1]} : vector<8x512xf32> to vector<8x128xf32>
    %372 = math.tanh %371 : vector<8x128xf32>
    %373 = vector.extract_strided_slice %358 {offsets = [0, 384], sizes = [8, 128], strides = [1, 1]} : vector<8x512xf32> to vector<8x128xf32>
    %374 = arith.negf %373 : vector<8x128xf32>
    %375 = math.exp %374 : vector<8x128xf32>
    %cst_83 = arith.constant 1.000000e+00 : f32
    %376 = vector.broadcast %cst_83 : f32 to vector<8x128xf32>
    %377 = arith.addf %376, %375 : vector<8x128xf32>
    %378 = arith.divf %376, %377 : vector<8x128xf32>
    %379 = arith.mulf %370, %318 : vector<8x128xf32>
    %380 = arith.mulf %364, %372 : vector<8x128xf32>
    %381 = arith.addf %379, %380 : vector<8x128xf32>
    %382 = math.tanh %381 : vector<8x128xf32>
    %383 = arith.mulf %378, %382 : vector<8x128xf32>
    %384 = arith.index_cast %c5_i32 : i32 to index
    %c0_84 = arith.constant 0 : index
    %c0_85 = arith.constant 0 : index
    %385 = vector.load %arg6[%384, %c0_84, %c0_85] : memref<8x8x128xf32, #tpu.memory_space<vmem>>, vector<1x8x128xf32>
    %386 = vector.shape_cast %385 : vector<1x8x128xf32> to vector<8x128xf32>
    %387 = vector.shape_cast %383 : vector<8x128xf32> to vector<1x8x128xf32>
    tpu.vector_store %arg6[%384, %c0_84, %c0_85], %387 {strides = array<i32>} : memref<8x8x128xf32, #tpu.memory_space<vmem>>, vector<1x8x128xf32>,
    %c6_i32 = arith.constant 6 : i32
    %388 = arith.index_cast %c6_i32 : i32 to index
    %c0_86 = arith.constant 0 : index
    %c0_87 = arith.constant 0 : index
    %389 = vector.load %arg2[%388, %c0_86, %c0_87] : memref<8x8x512xf32, #tpu.memory_space<vmem>>, vector<1x8x512xf32>
    %390 = vector.shape_cast %389 : vector<1x8x512xf32> to vector<8x512xf32>
    %cst_88 = arith.constant dense<0.000000e+00> : vector<8x512xf32>
    %391 = tpu.matmul %354, %3, %cst_88 {dimension_numbers = #tpu.dot_dimension_numbers<[1], [0], [0], [1], [0, 0, 1, 1], [], []>} : vector<8x128xf32>, vector<128x512xf32>, vector<8x512xf32> -> vector<8x512xf32>
    %392 = arith.addf %390, %391 : vector<8x512xf32>
    %393 = vector.extract_strided_slice %392 {offsets = [0, 0], sizes = [8, 128], strides = [1, 1]} : vector<8x512xf32> to vector<8x128xf32>
    %394 = arith.negf %393 : vector<8x128xf32>
    %395 = math.exp %394 : vector<8x128xf32>
    %cst_89 = arith.constant 1.000000e+00 : f32
    %396 = vector.broadcast %cst_89 : f32 to vector<8x128xf32>
    %397 = arith.addf %396, %395 : vector<8x128xf32>
    %398 = arith.divf %396, %397 : vector<8x128xf32>
    %399 = vector.extract_strided_slice %392 {offsets = [0, 128], sizes = [8, 128], strides = [1, 1]} : vector<8x512xf32> to vector<8x128xf32>
    %400 = arith.negf %399 : vector<8x128xf32>
    %401 = math.exp %400 : vector<8x128xf32>
    %cst_90 = arith.constant 1.000000e+00 : f32
    %402 = vector.broadcast %cst_90 : f32 to vector<8x128xf32>
    %403 = arith.addf %402, %401 : vector<8x128xf32>
    %404 = arith.divf %402, %403 : vector<8x128xf32>
    %405 = vector.extract_strided_slice %392 {offsets = [0, 256], sizes = [8, 128], strides = [1, 1]} : vector<8x512xf32> to vector<8x128xf32>
    %406 = math.tanh %405 : vector<8x128xf32>
    %407 = vector.extract_strided_slice %392 {offsets = [0, 384], sizes = [8, 128], strides = [1, 1]} : vector<8x512xf32> to vector<8x128xf32>
    %408 = arith.negf %407 : vector<8x128xf32>
    %409 = math.exp %408 : vector<8x128xf32>
    %cst_91 = arith.constant 1.000000e+00 : f32
    %410 = vector.broadcast %cst_91 : f32 to vector<8x128xf32>
    %411 = arith.addf %410, %409 : vector<8x128xf32>
    %412 = arith.divf %410, %411 : vector<8x128xf32>
    %413 = arith.mulf %404, %352 : vector<8x128xf32>
    %414 = arith.mulf %398, %406 : vector<8x128xf32>
    %415 = arith.addf %413, %414 : vector<8x128xf32>
    %416 = math.tanh %415 : vector<8x128xf32>
    %417 = arith.mulf %412, %416 : vector<8x128xf32>
    %418 = tpu.concatenate %417, %383 in 1 : vector<8x128xf32>, vector<8x128xf32> -> vector<8x256xf32>
    %cst_92 = arith.constant dense<0.000000e+00> : vector<8x512xf32>
    %419 = tpu.matmul %418, %4, %cst_92 {dimension_numbers = #tpu.dot_dimension_numbers<[1], [0], [0], [1], [0, 0, 1, 1], [], []>} : vector<8x256xf32>, vector<256x512xf32>, vector<8x512xf32> -> vector<8x512xf32>
    %420 = vector.broadcast %5 : vector<1x512xf32> to vector<8x512xf32>
    %421 = arith.addf %419, %420 : vector<8x512xf32>
    %422 = vector.extract_strided_slice %421 {offsets = [0, 0], sizes = [8, 128], strides = [1, 1]} : vector<8x512xf32> to vector<8x128xf32>
    %423 = arith.negf %422 : vector<8x128xf32>
    %424 = math.exp %423 : vector<8x128xf32>
    %cst_93 = arith.constant 1.000000e+00 : f32
    %425 = vector.broadcast %cst_93 : f32 to vector<8x128xf32>
    %426 = arith.addf %425, %424 : vector<8x128xf32>
    %427 = arith.divf %425, %426 : vector<8x128xf32>
    %428 = vector.extract_strided_slice %421 {offsets = [0, 128], sizes = [8, 128], strides = [1, 1]} : vector<8x512xf32> to vector<8x128xf32>
    %429 = arith.negf %428 : vector<8x128xf32>
    %430 = math.exp %429 : vector<8x128xf32>
    %cst_94 = arith.constant 1.000000e+00 : f32
    %431 = vector.broadcast %cst_94 : f32 to vector<8x128xf32>
    %432 = arith.addf %431, %430 : vector<8x128xf32>
    %433 = arith.divf %431, %432 : vector<8x128xf32>
    %434 = vector.extract_strided_slice %421 {offsets = [0, 256], sizes = [8, 128], strides = [1, 1]} : vector<8x512xf32> to vector<8x128xf32>
    %435 = math.tanh %434 : vector<8x128xf32>
    %436 = vector.extract_strided_slice %421 {offsets = [0, 384], sizes = [8, 128], strides = [1, 1]} : vector<8x512xf32> to vector<8x128xf32>
    %437 = arith.negf %436 : vector<8x128xf32>
    %438 = math.exp %437 : vector<8x128xf32>
    %cst_95 = arith.constant 1.000000e+00 : f32
    %439 = vector.broadcast %cst_95 : f32 to vector<8x128xf32>
    %440 = arith.addf %439, %438 : vector<8x128xf32>
    %441 = arith.divf %439, %440 : vector<8x128xf32>
    %442 = arith.mulf %433, %381 : vector<8x128xf32>
    %443 = arith.mulf %427, %435 : vector<8x128xf32>
    %444 = arith.addf %442, %443 : vector<8x128xf32>
    %445 = math.tanh %444 : vector<8x128xf32>
    %446 = arith.mulf %441, %445 : vector<8x128xf32>
    %447 = arith.index_cast %c6_i32 : i32 to index
    %c0_96 = arith.constant 0 : index
    %c0_97 = arith.constant 0 : index
    %448 = vector.load %arg6[%447, %c0_96, %c0_97] : memref<8x8x128xf32, #tpu.memory_space<vmem>>, vector<1x8x128xf32>
    %449 = vector.shape_cast %448 : vector<1x8x128xf32> to vector<8x128xf32>
    %450 = vector.shape_cast %446 : vector<8x128xf32> to vector<1x8x128xf32>
    tpu.vector_store %arg6[%447, %c0_96, %c0_97], %450 {strides = array<i32>} : memref<8x8x128xf32, #tpu.memory_space<vmem>>, vector<1x8x128xf32>,
    %c7_i32 = arith.constant 7 : i32
    %451 = arith.index_cast %c7_i32 : i32 to index
    %c0_98 = arith.constant 0 : index
    %c0_99 = arith.constant 0 : index
    %452 = vector.load %arg2[%451, %c0_98, %c0_99] : memref<8x8x512xf32, #tpu.memory_space<vmem>>, vector<1x8x512xf32>
    %453 = vector.shape_cast %452 : vector<1x8x512xf32> to vector<8x512xf32>
    %cst_100 = arith.constant dense<0.000000e+00> : vector<8x512xf32>
    %454 = tpu.matmul %417, %3, %cst_100 {dimension_numbers = #tpu.dot_dimension_numbers<[1], [0], [0], [1], [0, 0, 1, 1], [], []>} : vector<8x128xf32>, vector<128x512xf32>, vector<8x512xf32> -> vector<8x512xf32>
    %455 = arith.addf %453, %454 : vector<8x512xf32>
    %456 = vector.extract_strided_slice %455 {offsets = [0, 0], sizes = [8, 128], strides = [1, 1]} : vector<8x512xf32> to vector<8x128xf32>
    %457 = arith.negf %456 : vector<8x128xf32>
    %458 = math.exp %457 : vector<8x128xf32>
    %cst_101 = arith.constant 1.000000e+00 : f32
    %459 = vector.broadcast %cst_101 : f32 to vector<8x128xf32>
    %460 = arith.addf %459, %458 : vector<8x128xf32>
    %461 = arith.divf %459, %460 : vector<8x128xf32>
    %462 = vector.extract_strided_slice %455 {offsets = [0, 128], sizes = [8, 128], strides = [1, 1]} : vector<8x512xf32> to vector<8x128xf32>
    %463 = arith.negf %462 : vector<8x128xf32>
    %464 = math.exp %463 : vector<8x128xf32>
    %cst_102 = arith.constant 1.000000e+00 : f32
    %465 = vector.broadcast %cst_102 : f32 to vector<8x128xf32>
    %466 = arith.addf %465, %464 : vector<8x128xf32>
    %467 = arith.divf %465, %466 : vector<8x128xf32>
    %468 = vector.extract_strided_slice %455 {offsets = [0, 256], sizes = [8, 128], strides = [1, 1]} : vector<8x512xf32> to vector<8x128xf32>
    %469 = math.tanh %468 : vector<8x128xf32>
    %470 = vector.extract_strided_slice %455 {offsets = [0, 384], sizes = [8, 128], strides = [1, 1]} : vector<8x512xf32> to vector<8x128xf32>
    %471 = arith.negf %470 : vector<8x128xf32>
    %472 = math.exp %471 : vector<8x128xf32>
    %cst_103 = arith.constant 1.000000e+00 : f32
    %473 = vector.broadcast %cst_103 : f32 to vector<8x128xf32>
    %474 = arith.addf %473, %472 : vector<8x128xf32>
    %475 = arith.divf %473, %474 : vector<8x128xf32>
    %476 = arith.mulf %467, %415 : vector<8x128xf32>
    %477 = arith.mulf %461, %469 : vector<8x128xf32>
    %478 = arith.addf %476, %477 : vector<8x128xf32>
    %479 = math.tanh %478 : vector<8x128xf32>
    %480 = arith.mulf %475, %479 : vector<8x128xf32>
    %481 = tpu.concatenate %480, %446 in 1 : vector<8x128xf32>, vector<8x128xf32> -> vector<8x256xf32>
    %cst_104 = arith.constant dense<0.000000e+00> : vector<8x512xf32>
    %482 = tpu.matmul %481, %4, %cst_104 {dimension_numbers = #tpu.dot_dimension_numbers<[1], [0], [0], [1], [0, 0, 1, 1], [], []>} : vector<8x256xf32>, vector<256x512xf32>, vector<8x512xf32> -> vector<8x512xf32>
    %483 = vector.broadcast %5 : vector<1x512xf32> to vector<8x512xf32>
    %484 = arith.addf %482, %483 : vector<8x512xf32>
    %485 = vector.extract_strided_slice %484 {offsets = [0, 0], sizes = [8, 128], strides = [1, 1]} : vector<8x512xf32> to vector<8x128xf32>
    %486 = arith.negf %485 : vector<8x128xf32>
    %487 = math.exp %486 : vector<8x128xf32>
    %cst_105 = arith.constant 1.000000e+00 : f32
    %488 = vector.broadcast %cst_105 : f32 to vector<8x128xf32>
    %489 = arith.addf %488, %487 : vector<8x128xf32>
    %490 = arith.divf %488, %489 : vector<8x128xf32>
    %491 = vector.extract_strided_slice %484 {offsets = [0, 128], sizes = [8, 128], strides = [1, 1]} : vector<8x512xf32> to vector<8x128xf32>
    %492 = arith.negf %491 : vector<8x128xf32>
    %493 = math.exp %492 : vector<8x128xf32>
    %cst_106 = arith.constant 1.000000e+00 : f32
    %494 = vector.broadcast %cst_106 : f32 to vector<8x128xf32>
    %495 = arith.addf %494, %493 : vector<8x128xf32>
    %496 = arith.divf %494, %495 : vector<8x128xf32>
    %497 = vector.extract_strided_slice %484 {offsets = [0, 256], sizes = [8, 128], strides = [1, 1]} : vector<8x512xf32> to vector<8x128xf32>
    %498 = math.tanh %497 : vector<8x128xf32>
    %499 = vector.extract_strided_slice %484 {offsets = [0, 384], sizes = [8, 128], strides = [1, 1]} : vector<8x512xf32> to vector<8x128xf32>
    %500 = arith.negf %499 : vector<8x128xf32>
    %501 = math.exp %500 : vector<8x128xf32>
    %cst_107 = arith.constant 1.000000e+00 : f32
    %502 = vector.broadcast %cst_107 : f32 to vector<8x128xf32>
    %503 = arith.addf %502, %501 : vector<8x128xf32>
    %504 = arith.divf %502, %503 : vector<8x128xf32>
    %505 = arith.mulf %496, %444 : vector<8x128xf32>
    %506 = arith.mulf %490, %498 : vector<8x128xf32>
    %507 = arith.addf %505, %506 : vector<8x128xf32>
    %508 = math.tanh %507 : vector<8x128xf32>
    %509 = arith.mulf %504, %508 : vector<8x128xf32>
    %510 = arith.index_cast %c7_i32 : i32 to index
    %c0_108 = arith.constant 0 : index
    %c0_109 = arith.constant 0 : index
    %511 = vector.load %arg6[%510, %c0_108, %c0_109] : memref<8x8x128xf32, #tpu.memory_space<vmem>>, vector<1x8x128xf32>
    %512 = vector.shape_cast %511 : vector<1x8x128xf32> to vector<8x128xf32>
    %513 = vector.shape_cast %509 : vector<8x128xf32> to vector<1x8x128xf32>
    tpu.vector_store %arg6[%510, %c0_108, %c0_109], %513 {strides = array<i32>} : memref<8x8x128xf32, #tpu.memory_space<vmem>>, vector<1x8x128xf32>,
    %c8_i32 = arith.constant 8 : i32
    %c0_110 = arith.constant 0 : index
    %c0_111 = arith.constant 0 : index
    %514 = vector.load %arg7[%c0_110, %c0_111] : memref<8x128xf32, #tpu.memory_space<vmem>>, vector<8x128xf32>
    tpu.vector_store %arg7[%c0_110, %c0_111], %480 {strides = array<i32>} : memref<8x128xf32, #tpu.memory_space<vmem>>, vector<8x128xf32>,
    %c0_112 = arith.constant 0 : index
    %c0_113 = arith.constant 0 : index
    %515 = vector.load %arg8[%c0_112, %c0_113] : memref<8x128xf32, #tpu.memory_space<vmem>>, vector<8x128xf32>
    tpu.vector_store %arg8[%c0_112, %c0_113], %478 {strides = array<i32>} : memref<8x128xf32, #tpu.memory_space<vmem>>, vector<8x128xf32>,
    %c0_114 = arith.constant 0 : index
    %c0_115 = arith.constant 0 : index
    %516 = vector.load %arg9[%c0_114, %c0_115] : memref<8x128xf32, #tpu.memory_space<vmem>>, vector<8x128xf32>
    tpu.vector_store %arg9[%c0_114, %c0_115], %509 {strides = array<i32>} : memref<8x128xf32, #tpu.memory_space<vmem>>, vector<8x128xf32>,
    %c0_116 = arith.constant 0 : index
    %c0_117 = arith.constant 0 : index
    %517 = vector.load %arg10[%c0_116, %c0_117] : memref<8x128xf32, #tpu.memory_space<vmem>>, vector<8x128xf32>
    tpu.vector_store %arg10[%c0_116, %c0_117], %507 {strides = array<i32>} : memref<8x128xf32, #tpu.memory_space<vmem>>, vector<8x128xf32>,
    return
  }
  func.func @transform_0(%arg0: i32, %arg1: i32) -> (i32, i32, i32) {
    %c0_i32 = arith.constant 0 : i32
    %c0_i32_0 = arith.constant 0 : i32
    return %arg1, %arg0, %c0_i32 : i32, i32, i32
  }
  func.func @transform_1(%arg0: i32, %arg1: i32) -> (i32, i32) {
    %c0_i32 = arith.constant 0 : i32
    %c0_i32_0 = arith.constant 0 : i32
    %c0_i32_1 = arith.constant 0 : i32
    return %c0_i32, %c0_i32_0 : i32, i32
  }
  func.func @transform_2(%arg0: i32, %arg1: i32) -> (i32, i32) {
    %c0_i32 = arith.constant 0 : i32
    %c0_i32_0 = arith.constant 0 : i32
    %c0_i32_1 = arith.constant 0 : i32
    return %c0_i32, %c0_i32_0 : i32, i32
  }
  func.func @transform_3(%arg0: i32, %arg1: i32) -> (i32, i32) {
    %c0_i32 = arith.constant 0 : i32
    %c0_i32_0 = arith.constant 0 : i32
    %c0_i32_1 = arith.constant 0 : i32
    return %c0_i32, %c0_i32_0 : i32, i32
  }
  func.func @transform_4(%arg0: i32, %arg1: i32) -> (i32, i32, i32) {
    %c0_i32 = arith.constant 0 : i32
    %c0_i32_0 = arith.constant 0 : i32
    return %arg1, %arg0, %c0_i32 : i32, i32, i32
  }
}

</mosaic_0001>

<llo_original>
// kernel: tpu_custom_call.1
$region0: #{tpu_custom_call.1}
  #allocation0 [shape = 'u32[]', space=smem, size = 0x4, offset = 0x4, fixed_abs, tag = 'smem constant byte address 0x4 - core index']
  #allocation1 [shape = 'u32[72,128]{1,0:T(1,128)}', space=vmem, size = 0x9000, scoped, tag = 'internal scratch']
  #allocation2 [shape = 'f32[8,128]{1,0:T(8,128)}', space=vmem, size = 0x1000, scoped, tag = 'scratch operand']
  #allocation3 [shape = 'f32[8,128]{1,0:T(8,128)}', space=vmem, size = 0x1000, scoped, tag = 'scratch operand']
  #allocation4 [shape = 'f32[8,128]{1,0:T(8,128)}', space=vmem, size = 0x1000, scoped, tag = 'scratch operand']
  #allocation5 [shape = 'f32[8,128]{1,0:T(8,128)}', space=vmem, size = 0x1000, scoped, tag = 'scratch operand']
  %s0 = inlined_call_operand.hbm [shape: f32[8,8,512], index: 0, kind: input, shape index: {}]
  %s1 = inlined_call_operand.hbm [shape: f32[128,512], index: 1, kind: input, shape index: {}]
  %s2 = inlined_call_operand.hbm [shape: f32[256,512], index: 2, kind: input, shape index: {}]
  %s3 = inlined_call_operand.hbm [shape: f32[1,512], index: 3, kind: input, shape index: {}]
  %s4 = inlined_call_operand.hbm [shape: f32[8,8,128], index: 4, kind: output, shape index: {}]
  %s5 = sld [smem:[#allocation0]]
  $region46: #{tpu_custom_call.1} parent=0
    _
  %s7 = ssub.s32 1, %s5
  %s8 = scalar_select 0, %s7, %s5
  $region1: #{tpu_custom_call.1} parent=0
    #allocation6 [shape = 'u8[131072]{0}', space=vmem, size = 0x20000, scoped, tag = 'input window, operand 0, single buffered']
    #allocation7 [shape = 's32[1]{0}', space=sflag, size = 0x4, scoped, tag = 'scoped memory for tpu_custom_call.1']
    #allocation8 [shape = 's32[1]{0}', space=sflag, size = 0x4, scoped, tag = 'scoped memory for tpu_custom_call.1']
    #allocation9 [shape = 'u8[262144]{0}', space=vmem, size = 0x40000, scoped, tag = 'input window, operand 1, single buffered']
    #allocation10 [shape = 's32[1]{0}', space=sflag, size = 0x4, scoped, tag = 'scoped memory for tpu_custom_call.1']
    #allocation11 [shape = 'u8[524288]{0}', space=vmem, size = 0x80000, scoped, tag = 'input window, operand 2, single buffered']
    #allocation12 [shape = 'u8[2048]{0}', space=vmem, size = 0x800, scoped, tag = 'input window, operand 3, single buffered']
    #allocation13 [shape = 's32[1]{0}', space=sflag, size = 0x4, scoped, tag = 'scoped memory for tpu_custom_call.1']
    #allocation14 [shape = 'u8[32768]{0}', space=vmem, size = 0x8000, scoped, tag = 'output window, operand 0, single buffered']
    %9 = vsyncpa [#allocation7], 0
    %10 = vsyncpa [#allocation10], 0
    %11 = vsyncpa [#allocation13], 0
    %12 = vsyncpa [#allocation8], 0
    // Predicated region
    $region2: #{tpu_custom_call.1} parent=1 // pred_check
      _
    $region3: #{tpu_custom_call.1} parent=1 // pred_check_branch
      %14 = sbr.rel (0) target = $region5
    $region4: #{tpu_custom_call.1} parent=1 // pred_region
      %16 = vsyncadd [#allocation7], 0
      %s17 = sshll.u32 %s0, 4
      %s18 = int_to_ptr.hbm [resolvable:$true] %s17
      %s19 = sshll.u32 [#allocation6], 4
      %s20 = int_to_ptr.vmem [resolvable:$true] %s19
      %25 = dma.hbm_to_vmem [thread:$0]  %s18, 4096, %s20, [#allocation7], 512, 512, 32
    $region5: #{tpu_custom_call.1} parent=1 // pred_fallthru
      _
    // Predicated region
    $region6: #{tpu_custom_call.1} parent=1 // pred_check
      _
    $region7: #{tpu_custom_call.1} parent=1 // pred_check_branch
      %27 = sbr.rel (0) target = $region9
    $region8: #{tpu_custom_call.1} parent=1 // pred_region
      %29 = vsyncadd [#allocation10], 0
      %s30 = sshll.u32 %s1, 4
      %s31 = int_to_ptr.hbm [resolvable:$true] %s30
      %s32 = sshll.u32 [#allocation9], 4
      %s33 = int_to_ptr.vmem [resolvable:$true] %s32
      %38 = dma.hbm_to_vmem [thread:$0]  %s31, 8192, %s33, [#allocation10], 512, 512, 32
    $region9: #{tpu_custom_call.1} parent=1 // pred_fallthru
      _
    // Predicated region
    $region10: #{tpu_custom_call.1} parent=1 // pred_check
      _
    $region11: #{tpu_custom_call.1} parent=1 // pred_check_branch
      %40 = sbr.rel (0) target = $region13
    $region12: #{tpu_custom_call.1} parent=1 // pred_region
      %42 = vsyncadd [#allocation10], 0
      %s43 = sshll.u32 %s2, 4
      %s44 = int_to_ptr.hbm [resolvable:$true] %s43
      %s45 = sshll.u32 [#allocation11], 4
      %s46 = int_to_ptr.vmem [resolvable:$true] %s45
      %51 = dma.hbm_to_vmem [thread:$0]  %s44, 16384, %s46, [#allocation10], 512, 512, 32
    $region13: #{tpu_custom_call.1} parent=1 // pred_fallthru
      _
    // Predicated region
    $region14: #{tpu_custom_call.1} parent=1 // pred_check
      _
    $region15: #{tpu_custom_call.1} parent=1 // pred_check_branch
      %53 = sbr.rel (0) target = $region17
    $region16: #{tpu_custom_call.1} parent=1 // pred_region
      %55 = vsyncadd [#allocation13], 0
      %s57 = sshll.u32 %s3, 4
      %s58 = int_to_ptr.hbm [resolvable:$true] %s57
      %s59 = sshll.u32 [#allocation12], 4
      %s60 = int_to_ptr.vmem [resolvable:$true] %s59
      %62 = dma.hbm_to_vmem [thread:$0]  %s58, 64, %s60, [#allocation13]
    $region17: #{tpu_custom_call.1} parent=1 // pred_fallthru
      _
    // Predicated region
    $region18: #{tpu_custom_call.1} parent=1 // pred_check
      _
    $region19: #{tpu_custom_call.1} parent=1 // pred_check_branch
      %64 = sbr.rel (0) target = $region21
    $region20: #{tpu_custom_call.1} parent=1 // pred_region
      %66 = dma.done [#allocation7], 4096
    $region21: #{tpu_custom_call.1} parent=1 // pred_fallthru
      _
    // Predicated region
    $region22: #{tpu_custom_call.1} parent=1 // pred_check
      _
    $region23: #{tpu_custom_call.1} parent=1 // pred_check_branch
      %68 = sbr.rel (0) target = $region25
    $region24: #{tpu_custom_call.1} parent=1 // pred_region
      %70 = dma.done [#allocation10], 8192
    $region25: #{tpu_custom_call.1} parent=1 // pred_fallthru
      _
    // Predicated region
    $region26: #{tpu_custom_call.1} parent=1 // pred_check
      _
    $region27: #{tpu_custom_call.1} parent=1 // pred_check_branch
      %72 = sbr.rel (0) target = $region29
    $region28: #{tpu_custom_call.1} parent=1 // pred_region
      %74 = dma.done [#allocation10], 16384
    $region29: #{tpu_custom_call.1} parent=1 // pred_fallthru
      _
    // Predicated region
    $region30: #{tpu_custom_call.1} parent=1 // pred_check
      _
    $region31: #{tpu_custom_call.1} parent=1 // pred_check_branch
      %76 = sbr.rel (0) target = $region33
    $region32: #{tpu_custom_call.1} parent=1 // pred_region
      %78 = dma.done [#allocation13], 64
    $region33: #{tpu_custom_call.1} parent=1 // pred_fallthru
      _
    %p79 = scmp.eq.s32.totalorder 0, 0
    // Predicated region
    $region34: #{tpu_custom_call.1} parent=1 // pred_check
      %p80 = pneg %p79
    $region35: #{tpu_custom_call.1} parent=1 // pred_check_branch
      %82 = sbr.rel (%p80) target = $region37
    $region36: #{tpu_custom_call.1} parent=1 // pred_region
      %83 = vst [vmem:[#allocation2] sm:$0xff] 0.0
      %84 = vst [vmem:[#allocation3] sm:$0xff] 0.0
      %85 = vst [vmem:[#allocation4] sm:$0xff] 0.0
      %86 = vst [vmem:[#allocation5] sm:$0xff] 0.0
    $region37: #{tpu_custom_call.1} parent=1 // pred_fallthru
      _
    %v87 = vld [vmem:[#allocation9] sm:$0xff]
    %v88 = vld [vmem:[#allocation9 + $0x8] sm:$0xff]
    %v89 = vld [vmem:[#allocation9 + $0x10] sm:$0xff]
    %v90 = vld [vmem:[#allocation9 + $0x18] sm:$0xff]
    %v91 = vld [vmem:[#allocation9 + $0x20] sm:$0xff]
    %v92 = vld [vmem:[#allocation9 + $0x28] sm:$0xff]
    %v93 = vld [vmem:[#allocation9 + $0x30] sm:$0xff]
    %v94 = vld [vmem:[#allocation9 + $0x38] sm:$0xff]
    %v95 = vld [vmem:[#allocation9 + $0x40] sm:$0xff]
    %v96 = vld [vmem:[#allocation9 + $0x48] sm:$0xff]
    %v97 = vld [vmem:[#allocation9 + $0x50] sm:$0xff]
    %v98 = vld [vmem:[#allocation9 + $0x58] sm:$0xff]
    %v99 = vld [vmem:[#allocation9 + $0x60] sm:$0xff]
    %v100 = vld [vmem:[#allocation9 + $0x68] sm:$0xff]
    %v101 = vld [vmem:[#allocation9 + $0x70] sm:$0xff]
    %v102 = vld [vmem:[#allocation9 + $0x78] sm:$0xff]
    %v103 = vld [vmem:[#allocation9 + $0x80] sm:$0xff]
    %v104 = vld [vmem:[#allocation9 + $0x88] sm:$0xff]
    %v105 = vld [vmem:[#allocation9 + $0x90] sm:$0xff]
    %v106 = vld [vmem:[#allocation9 + $0x98] sm:$0xff]
    %v107 = vld [vmem:[#allocation9 + $0xa0] sm:$0xff]
    %v108 = vld [vmem:[#allocation9 + $0xa8] sm:$0xff]
    %v109 = vld [vmem:[#allocation9 + $0xb0] sm:$0xff]
    %v110 = vld [vmem:[#allocation9 + $0xb8] sm:$0xff]
    %v111 = vld [vmem:[#allocation9 + $0xc0] sm:$0xff]
    %v112 = vld [vmem:[#allocation9 + $0xc8] sm:$0xff]
    %v113 = vld [vmem:[#allocation9 + $0xd0] sm:$0xff]
    %v114 = vld [vmem:[#allocation9 + $0xd8] sm:$0xff]
    %v115 = vld [vmem:[#allocation9 + $0xe0] sm:$0xff]
    %v116 = vld [vmem:[#allocation9 + $0xe8] sm:$0xff]
    %v117 = vld [vmem:[#allocation9 + $0xf0] sm:$0xff]
    %v118 = vld [vmem:[#allocation9 + $0xf8] sm:$0xff]
    %v119 = vld [vmem:[#allocation9 + $0x100] sm:$0xff]
    %v120 = vld [vmem:[#allocation9 + $0x108] sm:$0xff]
    %v121 = vld [vmem:[#allocation9 + $0x110] sm:$0xff]
    %v122 = vld [vmem:[#allocation9 + $0x118] sm:$0xff]
    %v123 = vld [vmem:[#allocation9 + $0x120] sm:$0xff]
    %v124 = vld [vmem:[#allocation9 + $0x128] sm:$0xff]
    %v125 = vld [vmem:[#allocation9 + $0x130] sm:$0xff]
    %v126 = vld [vmem:[#allocation9 + $0x138] sm:$0xff]
    %v127 = vld [vmem:[#allocation9 + $0x140] sm:$0xff]
    %v128 = vld [vmem:[#allocation9 + $0x148] sm:$0xff]
    %v129 = vld [vmem:[#allocation9 + $0x150] sm:$0xff]
    %v130 = vld [vmem:[#allocation9 + $0x158] sm:$0xff]
    %v131 = vld [vmem:[#allocation9 + $0x160] sm:$0xff]
    %v132 = vld [vmem:[#allocation9 + $0x168] sm:$0xff]
    %v133 = vld [vmem:[#allocation9 + $0x170] sm:$0xff]
    %v134 = vld [vmem:[#allocation9 + $0x178] sm:$0xff]
    %v135 = vld [vmem:[#allocation9 + $0x180] sm:$0xff]
    %v136 = vld [vmem:[#allocation9 + $0x188] sm:$0xff]
    %v137 = vld [vmem:[#allocation9 + $0x190] sm:$0xff]
    %v138 = vld [vmem:[#allocation9 + $0x198] sm:$0xff]
    %v139 = vld [vmem:[#allocation9 + $0x1a0] sm:$0xff]
    %v140 = vld [vmem:[#allocation9 + $0x1a8] sm:$0xff]
    %v141 = vld [vmem:[#allocation9 + $0x1b0] sm:$0xff]
    %v142 = vld [vmem:[#allocation9 + $0x1b8] sm:$0xff]
    %v143 = vld [vmem:[#allocation9 + $0x1c0] sm:$0xff]
    %v144 = vld [vmem:[#allocation9 + $0x1c8] sm:$0xff]
    %v145 = vld [vmem:[#allocation9 + $0x1d0] sm:$0xff]
    %v146 = vld [vmem:[#allocation9 + $0x1d8] sm:$0xff]
    %v147 = vld [vmem:[#allocation9 + $0x1e0] sm:$0xff]
    %v148 = vld [vmem:[#allocation9 + $0x1e8] sm:$0xff]
    %v149 = vld [vmem:[#allocation9 + $0x1f0] sm:$0xff]
    %v150 = vld [vmem:[#allocation9 + $0x1f8] sm:$0xff]
    %v151 = vld [vmem:[#allocation11] sm:$0xff]
    %v152 = vld [vmem:[#allocation11 + $0x8] sm:$0xff]
    %v153 = vld [vmem:[#allocation11 + $0x10] sm:$0xff]
    %v154 = vld [vmem:[#allocation11 + $0x18] sm:$0xff]
    %v155 = vld [vmem:[#allocation11 + $0x20] sm:$0xff]
    %v156 = vld [vmem:[#allocation11 + $0x28] sm:$0xff]
    %v157 = vld [vmem:[#allocation11 + $0x30] sm:$0xff]
    %v158 = vld [vmem:[#allocation11 + $0x38] sm:$0xff]
    %v159 = vld [vmem:[#allocation11 + $0x40] sm:$0xff]
    %v160 = vld [vmem:[#allocation11 + $0x48] sm:$0xff]
    %v161 = vld [vmem:[#allocation11 + $0x50] sm:$0xff]
    %v162 = vld [vmem:[#allocation11 + $0x58] sm:$0xff]
    %v163 = vld [vmem:[#allocation11 + $0x60] sm:$0xff]
    %v164 = vld [vmem:[#allocation11 + $0x68] sm:$0xff]
    %v165 = vld [vmem:[#allocation11 + $0x70] sm:$0xff]
    %v166 = vld [vmem:[#allocation11 + $0x78] sm:$0xff]
    %v167 = vld [vmem:[#allocation11 + $0x80] sm:$0xff]
    %v168 = vld [vmem:[#allocation11 + $0x88] sm:$0xff]
    %v169 = vld [vmem:[#allocation11 + $0x90] sm:$0xff]
    %v170 = vld [vmem:[#allocation11 + $0x98] sm:$0xff]
    %v171 = vld [vmem:[#allocation11 + $0xa0] sm:$0xff]
    %v172 = vld [vmem:[#allocation11 + $0xa8] sm:$0xff]
    %v173 = vld [vmem:[#allocation11 + $0xb0] sm:$0xff]
    %v174 = vld [vmem:[#allocation11 + $0xb8] sm:$0xff]
    %v175 = vld [vmem:[#allocation11 + $0xc0] sm:$0xff]
    %v176 = vld [vmem:[#allocation11 + $0xc8] sm:$0xff]
    %v177 = vld [vmem:[#allocation11 + $0xd0] sm:$0xff]
    %v178 = vld [vmem:[#allocation11 + $0xd8] sm:$0xff]
    %v179 = vld [vmem:[#allocation11 + $0xe0] sm:$0xff]
    %v180 = vld [vmem:[#allocation11 + $0xe8] sm:$0xff]
    %v181 = vld [vmem:[#allocation11 + $0xf0] sm:$0xff]
    %v182 = vld [vmem:[#allocation11 + $0xf8] sm:$0xff]
    %v183 = vld [vmem:[#allocation11 + $0x100] sm:$0xff]
    %v184 = vld [vmem:[#allocation11 + $0x108] sm:$0xff]
    %v185 = vld [vmem:[#allocation11 + $0x110] sm:$0xff]
    %v186 = vld [vmem:[#allocation11 + $0x118] sm:$0xff]
    %v187 = vld [vmem:[#allocation11 + $0x120] sm:$0xff]
    %v188 = vld [vmem:[#allocation11 + $0x128] sm:$0xff]
    %v189 = vld [vmem:[#allocation11 + $0x130] sm:$0xff]
    %v190 = vld [vmem:[#allocation11 + $0x138] sm:$0xff]
    %v191 = vld [vmem:[#allocation11 + $0x140] sm:$0xff]
    %v192 = vld [vmem:[#allocation11 + $0x148] sm:$0xff]
    %v193 = vld [vmem:[#allocation11 + $0x150] sm:$0xff]
    %v194 = vld [vmem:[#allocation11 + $0x158] sm:$0xff]
    %v195 = vld [vmem:[#allocation11 + $0x160] sm:$0xff]
    %v196 = vld [vmem:[#allocation11 + $0x168] sm:$0xff]
    %v197 = vld [vmem:[#allocation11 + $0x170] sm:$0xff]
    %v198 = vld [vmem:[#allocation11 + $0x178] sm:$0xff]
    %v199 = vld [vmem:[#allocation11 + $0x180] sm:$0xff]
    %v200 = vld [vmem:[#allocation11 + $0x188] sm:$0xff]
    %v201 = vld [vmem:[#allocation11 + $0x190] sm:$0xff]
    %v202 = vld [vmem:[#allocation11 + $0x198] sm:$0xff]
    %v203 = vld [vmem:[#allocation11 + $0x1a0] sm:$0xff]
    %v204 = vld [vmem:[#allocation11 + $0x1a8] sm:$0xff]
    %v205 = vld [vmem:[#allocation11 + $0x1b0] sm:$0xff]
    %v206 = vld [vmem:[#allocation11 + $0x1b8] sm:$0xff]
    %v207 = vld [vmem:[#allocation11 + $0x1c0] sm:$0xff]
    %v208 = vld [vmem:[#allocation11 + $0x1c8] sm:$0xff]
    %v209 = vld [vmem:[#allocation11 + $0x1d0] sm:$0xff]
    %v210 = vld [vmem:[#allocation11 + $0x1d8] sm:$0xff]
    %v211 = vld [vmem:[#allocation11 + $0x1e0] sm:$0xff]
    %v212 = vld [vmem:[#allocation11 + $0x1e8] sm:$0xff]
    %v213 = vld [vmem:[#allocation11 + $0x1f0] sm:$0xff]
    %v214 = vld [vmem:[#allocation11 + $0x1f8] sm:$0xff]
    %v215 = vld [vmem:[#allocation11 + $0x200] sm:$0xff]
    %v216 = vld [vmem:[#allocation11 + $0x208] sm:$0xff]
    %v217 = vld [vmem:[#allocation11 + $0x210] sm:$0xff]
    %v218 = vld [vmem:[#allocation11 + $0x218] sm:$0xff]
    %v219 = vld [vmem:[#allocation11 + $0x220] sm:$0xff]
    %v220 = vld [vmem:[#allocation11 + $0x228] sm:$0xff]
    %v221 = vld [vmem:[#allocation11 + $0x230] sm:$0xff]
    %v222 = vld [vmem:[#allocation11 + $0x238] sm:$0xff]
    %v223 = vld [vmem:[#allocation11 + $0x240] sm:$0xff]
    %v224 = vld [vmem:[#allocation11 + $0x248] sm:$0xff]
    %v225 = vld [vmem:[#allocation11 + $0x250] sm:$0xff]
    %v226 = vld [vmem:[#allocation11 + $0x258] sm:$0xff]
    %v227 = vld [vmem:[#allocation11 + $0x260] sm:$0xff]
    %v228 = vld [vmem:[#allocation11 + $0x268] sm:$0xff]
    %v229 = vld [vmem:[#allocation11 + $0x270] sm:$0xff]
    %v230 = vld [vmem:[#allocation11 + $0x278] sm:$0xff]
    %v231 = vld [vmem:[#allocation11 + $0x280] sm:$0xff]
    %v232 = vld [vmem:[#allocation11 + $0x288] sm:$0xff]
    %v233 = vld [vmem:[#allocation11 + $0x290] sm:$0xff]
    %v234 = vld [vmem:[#allocation11 + $0x298] sm:$0xff]
    %v235 = vld [vmem:[#allocation11 + $0x2a0] sm:$0xff]
    %v236 = vld [vmem:[#allocation11 + $0x2a8] sm:$0xff]
    %v237 = vld [vmem:[#allocation11 + $0x2b0] sm:$0xff]
    %v238 = vld [vmem:[#allocation11 + $0x2b8] sm:$0xff]
    %v239 = vld [vmem:[#allocation11 + $0x2c0] sm:$0xff]
    %v240 = vld [vmem:[#allocation11 + $0x2c8] sm:$0xff]
    %v241 = vld [vmem:[#allocation11 + $0x2d0] sm:$0xff]
    %v242 = vld [vmem:[#allocation11 + $0x2d8] sm:$0xff]
    %v243 = vld [vmem:[#allocation11 + $0x2e0] sm:$0xff]
    %v244 = vld [vmem:[#allocation11 + $0x2e8] sm:$0xff]
    %v245 = vld [vmem:[#allocation11 + $0x2f0] sm:$0xff]
    %v246 = vld [vmem:[#allocation11 + $0x2f8] sm:$0xff]
    %v247 = vld [vmem:[#allocation11 + $0x300] sm:$0xff]
    %v248 = vld [vmem:[#allocation11 + $0x308] sm:$0xff]
    %v249 = vld [vmem:[#allocation11 + $0x310] sm:$0xff]
    %v250 = vld [vmem:[#allocation11 + $0x318] sm:$0xff]
    %v251 = vld [vmem:[#allocation11 + $0x320] sm:$0xff]
    %v252 = vld [vmem:[#allocation11 + $0x328] sm:$0xff]
    %v253 = vld [vmem:[#allocation11 + $0x330] sm:$0xff]
    %v254 = vld [vmem:[#allocation11 + $0x338] sm:$0xff]
    %v255 = vld [vmem:[#allocation11 + $0x340] sm:$0xff]
    %v256 = vld [vmem:[#allocation11 + $0x348] sm:$0xff]
    %v257 = vld [vmem:[#allocation11 + $0x350] sm:$0xff]
    %v258 = vld [vmem:[#allocation11 + $0x358] sm:$0xff]
    %v259 = vld [vmem:[#allocation11 + $0x360] sm:$0xff]
    %v260 = vld [vmem:[#allocation11 + $0x368] sm:$0xff]
    %v261 = vld [vmem:[#allocation11 + $0x370] sm:$0xff]
    %v262 = vld [vmem:[#allocation11 + $0x378] sm:$0xff]
    %v263 = vld [vmem:[#allocation11 + $0x380] sm:$0xff]
    %v264 = vld [vmem:[#allocation11 + $0x388] sm:$0xff]
    %v265 = vld [vmem:[#allocation11 + $0x390] sm:$0xff]
    %v266 = vld [vmem:[#allocation11 + $0x398] sm:$0xff]
    %v267 = vld [vmem:[#allocation11 + $0x3a0] sm:$0xff]
    %v268 = vld [vmem:[#allocation11 + $0x3a8] sm:$0xff]
    %v269 = vld [vmem:[#allocation11 + $0x3b0] sm:$0xff]
    %v270 = vld [vmem:[#allocation11 + $0x3b8] sm:$0xff]
    %v271 = vld [vmem:[#allocation11 + $0x3c0] sm:$0xff]
    %v272 = vld [vmem:[#allocation11 + $0x3c8] sm:$0xff]
    %v273 = vld [vmem:[#allocation11 + $0x3d0] sm:$0xff]
    %v274 = vld [vmem:[#allocation11 + $0x3d8] sm:$0xff]
    %v275 = vld [vmem:[#allocation11 + $0x3e0] sm:$0xff]
    %v276 = vld [vmem:[#allocation11 + $0x3e8] sm:$0xff]
    %v277 = vld [vmem:[#allocation11 + $0x3f0] sm:$0xff]
    %v278 = vld [vmem:[#allocation11 + $0x3f8] sm:$0xff]
    %v279 = vld [vmem:[#allocation12] sm:$0xf]
    %v280 = vld [vmem:[#allocation2] sm:$0xff]
    %v281 = vld [vmem:[#allocation3] sm:$0xff]
    %v282 = vld [vmem:[#allocation4] sm:$0xff]
    %v283 = vld [vmem:[#allocation5] sm:$0xff]
    %v284 = vld [vmem:[#allocation6] sm:$0xff]
    %v285 = vld [vmem:[#allocation6 + $0x8] sm:$0xff]
    %v286 = vld [vmem:[#allocation6 + $0x10] sm:$0xff]
    %v287 = vld [vmem:[#allocation6 + $0x18] sm:$0xff]
    %288 = vmatpush.msra.mxu0 %v147
    %289 = vmatpush.msra.mxu0 %v143
    %290 = vmatpush.msra.mxu0 %v139
    %291 = vmatpush.msra.mxu0 %v135
    %292 = vmatpush.msra.mxu0 %v131
    %293 = vmatpush.msra.mxu0 %v127
    %294 = vmatpush.msra.mxu0 %v123
    %295 = vmatpush.msra.mxu0 %v119
    %296 = vmatpush.msra.mxu0 %v115
    %297 = vmatpush.msra.mxu0 %v111
    %298 = vmatpush.msra.mxu0 %v107
    %299 = vmatpush.msra.mxu0 %v103
    %300 = vmatpush.msra.mxu0 %v99
    %301 = vmatpush.msra.mxu0 %v95
    %302 = vmatpush.msra.mxu0 %v91
    %303 = vmatpush.msra.mxu0 %v87
    %304 = vmatmul.f32.gmra.mxu0 %v280
    %v305 = vpop.f32.mrf.mxu0
    %v306 = vadd.f32 0.0, %v305
    %307 = vdwg.mxu0
    %308 = vmatpush.msra.mxu0 %v148
    %309 = vmatpush.msra.mxu0 %v144
    %310 = vmatpush.msra.mxu0 %v140
    %311 = vmatpush.msra.mxu0 %v136
    %312 = vmatpush.msra.mxu0 %v132
    %313 = vmatpush.msra.mxu0 %v128
    %314 = vmatpush.msra.mxu0 %v124
    %315 = vmatpush.msra.mxu0 %v120
    %316 = vmatpush.msra.mxu0 %v116
    %317 = vmatpush.msra.mxu0 %v112
    %318 = vmatpush.msra.mxu0 %v108
    %319 = vmatpush.msra.mxu0 %v104
    %320 = vmatpush.msra.mxu0 %v100
    %321 = vmatpush.msra.mxu0 %v96
    %322 = vmatpush.msra.mxu0 %v92
    %323 = vmatpush.msra.mxu0 %v88
    %324 = vmatmul.f32.gmra.mxu0 %v280
    %v325 = vpop.f32.mrf.mxu0
    %v326 = vadd.f32 0.0, %v325
    %327 = vdwg.mxu0
    %328 = vmatpush.msra.mxu0 %v149
    %329 = vmatpush.msra.mxu0 %v145
    %330 = vmatpush.msra.mxu0 %v141
    %331 = vmatpush.msra.mxu0 %v137
    %332 = vmatpush.msra.mxu0 %v133
    %333 = vmatpush.msra.mxu0 %v129
    %334 = vmatpush.msra.mxu0 %v125
    %335 = vmatpush.msra.mxu0 %v121
    %336 = vmatpush.msra.mxu0 %v117
    %337 = vmatpush.msra.mxu0 %v113
    %338 = vmatpush.msra.mxu0 %v109
    %339 = vmatpush.msra.mxu0 %v105
    %340 = vmatpush.msra.mxu0 %v101
    %341 = vmatpush.msra.mxu0 %v97
    %342 = vmatpush.msra.mxu0 %v93
    %343 = vmatpush.msra.mxu0 %v89
    %344 = vmatmul.f32.gmra.mxu0 %v280
    %v345 = vpop.f32.mrf.mxu0
    %v346 = vadd.f32 0.0, %v345
    %347 = vdwg.mxu0
    %348 = vmatpush.msra.mxu0 %v150
    %349 = vmatpush.msra.mxu0 %v146
    %350 = vmatpush.msra.mxu0 %v142
    %351 = vmatpush.msra.mxu0 %v138
    %352 = vmatpush.msra.mxu0 %v134
    %353 = vmatpush.msra.mxu0 %v130
    %354 = vmatpush.msra.mxu0 %v126
    %355 = vmatpush.msra.mxu0 %v122
    %356 = vmatpush.msra.mxu0 %v118
    %357 = vmatpush.msra.mxu0 %v114
    %358 = vmatpush.msra.mxu0 %v110
    %359 = vmatpush.msra.mxu0 %v106
    %360 = vmatpush.msra.mxu0 %v102
    %361 = vmatpush.msra.mxu0 %v98
    %362 = vmatpush.msra.mxu0 %v94
    %363 = vmatpush.msra.mxu0 %v90
    %364 = vmatmul.f32.gmra.mxu0 %v280
    %v365 = vpop.f32.mrf.mxu0
    %v366 = vadd.f32 0.0, %v365
    %367 = vdwg.mxu0
    %v368 = vadd.f32 %v284, %v306
    %v369 = vadd.f32 %v285, %v326
    %v370 = vadd.f32 %v286, %v346
    %v371 = vadd.f32 %v287, %v366
    %v372 = vxor.u32 %v368, 2147483648
    %v373 = vmul.f32 %v372, 1.442695
    %v374 = vpow.pop %v373
    %v375 = vadd.f32 %v374, 1.0
    %v376 = vrcp.pop %v375
    %v377 = vmul.f32 %v375, %v376
    %v378 = vsub.f32 1.0, %v377
    %v379 = vmul.f32 %v376, %v378
    %v380 = vadd.f32 %v376, %v379
    %vm381 = vweird.f32 %v375
    %vm382 = vweird.f32 %v376
    %vm383 = vmor %vm381, %vm382
    %v384 = vsel %vm383, %v376, %v380
    %v385 = vand.u32 2147483647, %v375
    %vm386 = vcmp.eq.f32.partialorder %v385, 8.507059e+37
    %v387 = vand.u32 %v375, 2147483648
    %v388 = vor.u32 1.1754944e-38, %v387
    %v389 = vsel %vm386, %v388, %v384
    %v390 = vmul.f32 1.0, %v389
    %v391 = vxor.u32 %v369, 2147483648
    %v392 = vmul.f32 %v391, 1.442695
    %v393 = vpow.pop %v392
    %v394 = vadd.f32 %v393, 1.0
    %v395 = vrcp.pop %v394
    %v396 = vmul.f32 %v394, %v395
    %v397 = vsub.f32 1.0, %v396
    %v398 = vmul.f32 %v395, %v397
    %v399 = vadd.f32 %v395, %v398
    %vm400 = vweird.f32 %v394
    %vm401 = vweird.f32 %v395
    %vm402 = vmor %vm400, %vm401
    %v403 = vsel %vm402, %v395, %v399
    %v404 = vand.u32 2147483647, %v394
    %vm405 = vcmp.eq.f32.partialorder %v404, 8.507059e+37
    %v406 = vand.u32 %v394, 2147483648
    %v407 = vor.u32 1.1754944e-38, %v406
    %v408 = vsel %vm405, %v407, %v403
    %v409 = vmul.f32 1.0, %v408
    %v410 = vtanh.pop %v370
    %v411 = vxor.u32 %v371, 2147483648
    %v412 = vmul.f32 %v411, 1.442695
    %v413 = vpow.pop %v412
    %v414 = vadd.f32 %v413, 1.0
    %v415 = vrcp.pop %v414
    %v416 = vmul.f32 %v414, %v415
    %v417 = vsub.f32 1.0, %v416
    %v418 = vmul.f32 %v415, %v417
    %v419 = vadd.f32 %v415, %v418
    %vm420 = vweird.f32 %v414
    %vm421 = vweird.f32 %v415
    %vm422 = vmor %vm420, %vm421
    %v423 = vsel %vm422, %v415, %v419
    %v424 = vand.u32 2147483647, %v414
    %vm425 = vcmp.eq.f32.partialorder %v424, 8.507059e+37
    %v426 = vand.u32 %v414, 2147483648
    %v427 = vor.u32 1.1754944e-38, %v426
    %v428 = vsel %vm425, %v427, %v423
    %v429 = vmul.f32 1.0, %v428
    %v430 = vmul.f32 %v409, %v281
    %v431 = vmul.f32 %v390, %v410
    %v432 = vadd.f32 %v430, %v431
    %v433 = vtanh.pop %v432
    %v434 = vmul.f32 %v429, %v433
    %v436 = vperm.slane %v279, 0
    %v437 = vperm.slane %v279, 1
    %v438 = vperm.slane %v279, 2
    %v439 = vperm.slane %v279, 3
    %444 = vmatpush.msra.mxu0 %v211
    %445 = vmatpush.msra.mxu0 %v207
    %446 = vmatpush.msra.mxu0 %v203
    %447 = vmatpush.msra.mxu0 %v199
    %448 = vmatpush.msra.mxu0 %v195
    %449 = vmatpush.msra.mxu0 %v191
    %450 = vmatpush.msra.mxu0 %v187
    %451 = vmatpush.msra.mxu0 %v183
    %452 = vmatpush.msra.mxu0 %v179
    %453 = vmatpush.msra.mxu0 %v175
    %454 = vmatpush.msra.mxu0 %v171
    %455 = vmatpush.msra.mxu0 %v167
    %456 = vmatpush.msra.mxu0 %v163
    %457 = vmatpush.msra.mxu0 %v159
    %458 = vmatpush.msra.mxu0 %v155
    %459 = vmatpush.msra.mxu0 %v151
    %460 = vmatmul.f32.gmra.mxu0 %v434
    %v461 = vpop.f32.mrf.mxu0
    %v462 = vadd.f32 %v436, %v461
    %463 = vdwg.mxu0
    %464 = vmatpush.msra.mxu0 %v275
    %465 = vmatpush.msra.mxu0 %v271
    %466 = vmatpush.msra.mxu0 %v267
    %467 = vmatpush.msra.mxu0 %v263
    %468 = vmatpush.msra.mxu0 %v259
    %469 = vmatpush.msra.mxu0 %v255
    %470 = vmatpush.msra.mxu0 %v251
    %471 = vmatpush.msra.mxu0 %v247
    %472 = vmatpush.msra.mxu0 %v243
    %473 = vmatpush.msra.mxu0 %v239
    %474 = vmatpush.msra.mxu0 %v235
    %475 = vmatpush.msra.mxu0 %v231
    %476 = vmatpush.msra.mxu0 %v227
    %477 = vmatpush.msra.mxu0 %v223
    %478 = vmatpush.msra.mxu0 %v219
    %479 = vmatpush.msra.mxu0 %v215
    %480 = vmatmul.f32.gmra.mxu0 %v282
    %v481 = vpop.f32.mrf.mxu0
    %v482 = vadd.f32 %v462, %v481
    %483 = vdwg.mxu0
    %484 = vmatpush.msra.mxu0 %v212
    %485 = vmatpush.msra.mxu0 %v208
    %486 = vmatpush.msra.mxu0 %v204
    %487 = vmatpush.msra.mxu0 %v200
    %488 = vmatpush.msra.mxu0 %v196
    %489 = vmatpush.msra.mxu0 %v192
    %490 = vmatpush.msra.mxu0 %v188
    %491 = vmatpush.msra.mxu0 %v184
    %492 = vmatpush.msra.mxu0 %v180
    %493 = vmatpush.msra.mxu0 %v176
    %494 = vmatpush.msra.mxu0 %v172
    %495 = vmatpush.msra.mxu0 %v168
    %496 = vmatpush.msra.mxu0 %v164
    %497 = vmatpush.msra.mxu0 %v160
    %498 = vmatpush.msra.mxu0 %v156
    %499 = vmatpush.msra.mxu0 %v152
    %500 = vmatmul.f32.gmra.mxu0 %v434
    %v501 = vpop.f32.mrf.mxu0
    %v502 = vadd.f32 %v437, %v501
    %503 = vdwg.mxu0
    %504 = vmatpush.msra.mxu0 %v276
    %505 = vmatpush.msra.mxu0 %v272
    %506 = vmatpush.msra.mxu0 %v268
    %507 = vmatpush.msra.mxu0 %v264
    %508 = vmatpush.msra.mxu0 %v260
    %509 = vmatpush.msra.mxu0 %v256
    %510 = vmatpush.msra.mxu0 %v252
    %511 = vmatpush.msra.mxu0 %v248
    %512 = vmatpush.msra.mxu0 %v244
    %513 = vmatpush.msra.mxu0 %v240
    %514 = vmatpush.msra.mxu0 %v236
    %515 = vmatpush.msra.mxu0 %v232
    %516 = vmatpush.msra.mxu0 %v228
    %517 = vmatpush.msra.mxu0 %v224
    %518 = vmatpush.msra.mxu0 %v220
    %519 = vmatpush.msra.mxu0 %v216
    %520 = vmatmul.f32.gmra.mxu0 %v282
    %v521 = vpop.f32.mrf.mxu0
    %v522 = vadd.f32 %v502, %v521
    %523 = vdwg.mxu0
    %524 = vmatpush.msra.mxu0 %v213
    %525 = vmatpush.msra.mxu0 %v209
    %526 = vmatpush.msra.mxu0 %v205
    %527 = vmatpush.msra.mxu0 %v201
    %528 = vmatpush.msra.mxu0 %v197
    %529 = vmatpush.msra.mxu0 %v193
    %530 = vmatpush.msra.mxu0 %v189
    %531 = vmatpush.msra.mxu0 %v185
    %532 = vmatpush.msra.mxu0 %v181
    %533 = vmatpush.msra.mxu0 %v177
    %534 = vmatpush.msra.mxu0 %v173
    %535 = vmatpush.msra.mxu0 %v169
    %536 = vmatpush.msra.mxu0 %v165
    %537 = vmatpush.msra.mxu0 %v161
    %538 = vmatpush.msra.mxu0 %v157
    %539 = vmatpush.msra.mxu0 %v153
    %540 = vmatmul.f32.gmra.mxu0 %v434
    %v541 = vpop.f32.mrf.mxu0
    %v542 = vadd.f32 %v438, %v541
    %543 = vdwg.mxu0
    %544 = vmatpush.msra.mxu0 %v277
    %545 = vmatpush.msra.mxu0 %v273
    %546 = vmatpush.msra.mxu0 %v269
    %547 = vmatpush.msra.mxu0 %v265
    %548 = vmatpush.msra.mxu0 %v261
    %549 = vmatpush.msra.mxu0 %v257
    %550 = vmatpush.msra.mxu0 %v253
    %551 = vmatpush.msra.mxu0 %v249
    %552 = vmatpush.msra.mxu0 %v245
    %553 = vmatpush.msra.mxu0 %v241
    %554 = vmatpush.msra.mxu0 %v237
    %555 = vmatpush.msra.mxu0 %v233
    %556 = vmatpush.msra.mxu0 %v229
    %557 = vmatpush.msra.mxu0 %v225
    %558 = vmatpush.msra.mxu0 %v221
    %559 = vmatpush.msra.mxu0 %v217
    %560 = vmatmul.f32.gmra.mxu0 %v282
    %v561 = vpop.f32.mrf.mxu0
    %v562 = vadd.f32 %v542, %v561
    %563 = vdwg.mxu0
    %564 = vmatpush.msra.mxu0 %v214
    %565 = vmatpush.msra.mxu0 %v210
    %566 = vmatpush.msra.mxu0 %v206
    %567 = vmatpush.msra.mxu0 %v202
    %568 = vmatpush.msra.mxu0 %v198
    %569 = vmatpush.msra.mxu0 %v194
    %570 = vmatpush.msra.mxu0 %v190
    %571 = vmatpush.msra.mxu0 %v186
    %572 = vmatpush.msra.mxu0 %v182
    %573 = vmatpush.msra.mxu0 %v178
    %574 = vmatpush.msra.mxu0 %v174
    %575 = vmatpush.msra.mxu0 %v170
    %576 = vmatpush.msra.mxu0 %v166
    %577 = vmatpush.msra.mxu0 %v162
    %578 = vmatpush.msra.mxu0 %v158
    %579 = vmatpush.msra.mxu0 %v154
    %580 = vmatmul.f32.gmra.mxu0 %v434
    %v581 = vpop.f32.mrf.mxu0
    %v582 = vadd.f32 %v439, %v581
    %583 = vdwg.mxu0
    %584 = vmatpush.msra.mxu0 %v278
    %585 = vmatpush.msra.mxu0 %v274
    %586 = vmatpush.msra.mxu0 %v270
    %587 = vmatpush.msra.mxu0 %v266
    %588 = vmatpush.msra.mxu0 %v262
    %589 = vmatpush.msra.mxu0 %v258
    %590 = vmatpush.msra.mxu0 %v254
    %591 = vmatpush.msra.mxu0 %v250
    %592 = vmatpush.msra.mxu0 %v246
    %593 = vmatpush.msra.mxu0 %v242
    %594 = vmatpush.msra.mxu0 %v238
    %595 = vmatpush.msra.mxu0 %v234
    %596 = vmatpush.msra.mxu0 %v230
    %597 = vmatpush.msra.mxu0 %v226
    %598 = vmatpush.msra.mxu0 %v222
    %599 = vmatpush.msra.mxu0 %v218
    %600 = vmatmul.f32.gmra.mxu0 %v282
    %v601 = vpop.f32.mrf.mxu0
    %v602 = vadd.f32 %v582, %v601
    %603 = vdwg.mxu0
    %v604 = vxor.u32 %v482, 2147483648
    %v605 = vmul.f32 %v604, 1.442695
    %v606 = vpow.pop %v605
    %v607 = vadd.f32 %v606, 1.0
    %v608 = vrcp.pop %v607
    %v609 = vmul.f32 %v607, %v608
    %v610 = vsub.f32 1.0, %v609
    %v611 = vmul.f32 %v608, %v610
    %v612 = vadd.f32 %v608, %v611
    %vm613 = vweird.f32 %v607
    %vm614 = vweird.f32 %v608
    %vm615 = vmor %vm613, %vm614
    %v616 = vsel %vm615, %v608, %v612
    %v617 = vand.u32 2147483647, %v607
    %vm618 = vcmp.eq.f32.partialorder %v617, 8.507059e+37
    %v619 = vand.u32 %v607, 2147483648
    %v620 = vor.u32 1.1754944e-38, %v619
    %v621 = vsel %vm618, %v620, %v616
    %v622 = vmul.f32 1.0, %v621
    %v623 = vxor.u32 %v522, 2147483648
    %v624 = vmul.f32 %v623, 1.442695
    %v625 = vpow.pop %v624
    %v626 = vadd.f32 %v625, 1.0
    %v627 = vrcp.pop %v626
    %v628 = vmul.f32 %v626, %v627
    %v629 = vsub.f32 1.0, %v628
    %v630 = vmul.f32 %v627, %v629
    %v631 = vadd.f32 %v627, %v630
    %vm632 = vweird.f32 %v626
    %vm633 = vweird.f32 %v627
    %vm634 = vmor %vm632, %vm633
    %v635 = vsel %vm634, %v627, %v631
    %v636 = vand.u32 2147483647, %v626
    %vm637 = vcmp.eq.f32.partialorder %v636, 8.507059e+37
    %v638 = vand.u32 %v626, 2147483648
    %v639 = vor.u32 1.1754944e-38, %v638
    %v640 = vsel %vm637, %v639, %v635
    %v641 = vmul.f32 1.0, %v640
    %v642 = vtanh.pop %v562
    %v643 = vxor.u32 %v602, 2147483648
    %v644 = vmul.f32 %v643, 1.442695
    %v645 = vpow.pop %v644
    %v646 = vadd.f32 %v645, 1.0
    %v647 = vrcp.pop %v646
    %v648 = vmul.f32 %v646, %v647
    %v649 = vsub.f32 1.0, %v648
    %v650 = vmul.f32 %v647, %v649
    %v651 = vadd.f32 %v647, %v650
    %vm652 = vweird.f32 %v646
    %vm653 = vweird.f32 %v647
    %vm654 = vmor %vm652, %vm653
    %v655 = vsel %vm654, %v647, %v651
    %v656 = vand.u32 2147483647, %v646
    %vm657 = vcmp.eq.f32.partialorder %v656, 8.507059e+37
    %v658 = vand.u32 %v646, 2147483648
    %v659 = vor.u32 1.1754944e-38, %v658
    %v660 = vsel %vm657, %v659, %v655
    %v661 = vmul.f32 1.0, %v660
    %v662 = vmul.f32 %v641, %v283
    %v663 = vmul.f32 %v622, %v642
    %v664 = vadd.f32 %v662, %v663
    %v665 = vtanh.pop %v664
    %v666 = vmul.f32 %v661, %v665
    %667 = vst [vmem:[#allocation14] sm:$0xff] %v666
    %s668 = scalar_lea.vmem [#allocation6], 32
    %v669 = vld [vmem:[%s668] sm:$0xff]
    %v670 = vld [vmem:[%s668 + $0x8] sm:$0xff]
    %v671 = vld [vmem:[%s668 + $0x10] sm:$0xff]
    %v672 = vld [vmem:[%s668 + $0x18] sm:$0xff]
    %673 = vmatpush.msra.mxu0 %v147
    %674 = vmatpush.msra.mxu0 %v143
    %675 = vmatpush.msra.mxu0 %v139
    %676 = vmatpush.msra.mxu0 %v135
    %677 = vmatpush.msra.mxu0 %v131
    %678 = vmatpush.msra.mxu0 %v127
    %679 = vmatpush.msra.mxu0 %v123
    %680 = vmatpush.msra.mxu0 %v119
    %681 = vmatpush.msra.mxu0 %v115
    %682 = vmatpush.msra.mxu0 %v111
    %683 = vmatpush.msra.mxu0 %v107
    %684 = vmatpush.msra.mxu0 %v103
    %685 = vmatpush.msra.mxu0 %v99
    %686 = vmatpush.msra.mxu0 %v95
    %687 = vmatpush.msra.mxu0 %v91
    %688 = vmatpush.msra.mxu0 %v87
    %689 = vmatmul.f32.gmra.mxu0 %v434
    %v690 = vpop.f32.mrf.mxu0
    %v691 = vadd.f32 0.0, %v690
    %692 = vdwg.mxu0
    %693 = vmatpush.msra.mxu0 %v148
    %694 = vmatpush.msra.mxu0 %v144
    %695 = vmatpush.msra.mxu0 %v140
    %696 = vmatpush.msra.mxu0 %v136
    %697 = vmatpush.msra.mxu0 %v132
    %698 = vmatpush.msra.mxu0 %v128
    %699 = vmatpush.msra.mxu0 %v124
    %700 = vmatpush.msra.mxu0 %v120
    %701 = vmatpush.msra.mxu0 %v116
    %702 = vmatpush.msra.mxu0 %v112
    %703 = vmatpush.msra.mxu0 %v108
    %704 = vmatpush.msra.mxu0 %v104
    %705 = vmatpush.msra.mxu0 %v100
    %706 = vmatpush.msra.mxu0 %v96
    %707 = vmatpush.msra.mxu0 %v92
    %708 = vmatpush.msra.mxu0 %v88
    %709 = vmatmul.f32.gmra.mxu0 %v434
    %v710 = vpop.f32.mrf.mxu0
    %v711 = vadd.f32 0.0, %v710
    %712 = vdwg.mxu0
    %713 = vmatpush.msra.mxu0 %v149
    %714 = vmatpush.msra.mxu0 %v145
    %715 = vmatpush.msra.mxu0 %v141
    %716 = vmatpush.msra.mxu0 %v137
    %717 = vmatpush.msra.mxu0 %v133
    %718 = vmatpush.msra.mxu0 %v129
    %719 = vmatpush.msra.mxu0 %v125
    %720 = vmatpush.msra.mxu0 %v121
    %721 = vmatpush.msra.mxu0 %v117
    %722 = vmatpush.msra.mxu0 %v113
    %723 = vmatpush.msra.mxu0 %v109
    %724 = vmatpush.msra.mxu0 %v105
    %725 = vmatpush.msra.mxu0 %v101
    %726 = vmatpush.msra.mxu0 %v97
    %727 = vmatpush.msra.mxu0 %v93
    %728 = vmatpush.msra.mxu0 %v89
    %729 = vmatmul.f32.gmra.mxu0 %v434
    %v730 = vpop.f32.mrf.mxu0
    %v731 = vadd.f32 0.0, %v730
    %732 = vdwg.mxu0
    %733 = vmatpush.msra.mxu0 %v150
    %734 = vmatpush.msra.mxu0 %v146
    %735 = vmatpush.msra.mxu0 %v142
    %736 = vmatpush.msra.mxu0 %v138
    %737 = vmatpush.msra.mxu0 %v134
    %738 = vmatpush.msra.mxu0 %v130
    %739 = vmatpush.msra.mxu0 %v126
    %740 = vmatpush.msra.mxu0 %v122
    %741 = vmatpush.msra.mxu0 %v118
    %742 = vmatpush.msra.mxu0 %v114
    %743 = vmatpush.msra.mxu0 %v110
    %744 = vmatpush.msra.mxu0 %v106
    %745 = vmatpush.msra.mxu0 %v102
    %746 = vmatpush.msra.mxu0 %v98
    %747 = vmatpush.msra.mxu0 %v94
    %748 = vmatpush.msra.mxu0 %v90
    %749 = vmatmul.f32.gmra.mxu0 %v434
    %v750 = vpop.f32.mrf.mxu0
    %v751 = vadd.f32 0.0, %v750
    %752 = vdwg.mxu0
    %v753 = vadd.f32 %v669, %v691
    %v754 = vadd.f32 %v670, %v711
    %v755 = vadd.f32 %v671, %v731
    %v756 = vadd.f32 %v672, %v751
    %v757 = vxor.u32 %v753, 2147483648
    %v758 = vmul.f32 %v757, 1.442695
    %v759 = vpow.pop %v758
    %v760 = vadd.f32 %v759, 1.0
    %v761 = vrcp.pop %v760
    %v762 = vmul.f32 %v760, %v761
    %v763 = vsub.f32 1.0, %v762
    %v764 = vmul.f32 %v761, %v763
    %v765 = vadd.f32 %v761, %v764
    %vm766 = vweird.f32 %v760
    %vm767 = vweird.f32 %v761
    %vm768 = vmor %vm766, %vm767
    %v769 = vsel %vm768, %v761, %v765
    %v770 = vand.u32 2147483647, %v760
    %vm771 = vcmp.eq.f32.partialorder %v770, 8.507059e+37
    %v772 = vand.u32 %v760, 2147483648
    %v773 = vor.u32 1.1754944e-38, %v772
    %v774 = vsel %vm771, %v773, %v769
    %v775 = vmul.f32 1.0, %v774
    %v776 = vxor.u32 %v754, 2147483648
    %v777 = vmul.f32 %v776, 1.442695
    %v778 = vpow.pop %v777
    %v779 = vadd.f32 %v778, 1.0
    %v780 = vrcp.pop %v779
    %v781 = vmul.f32 %v779, %v780
    %v782 = vsub.f32 1.0, %v781
    %v783 = vmul.f32 %v780, %v782
    %v784 = vadd.f32 %v780, %v783
    %vm785 = vweird.f32 %v779
    %vm786 = vweird.f32 %v780
    %vm787 = vmor %vm785, %vm786
    %v788 = vsel %vm787, %v780, %v784
    %v789 = vand.u32 2147483647, %v779
    %vm790 = vcmp.eq.f32.partialorder %v789, 8.507059e+37
    %v791 = vand.u32 %v779, 2147483648
    %v792 = vor.u32 1.1754944e-38, %v791
    %v793 = vsel %vm790, %v792, %v788
    %v794 = vmul.f32 1.0, %v793
    %v795 = vtanh.pop %v755
    %v796 = vxor.u32 %v756, 2147483648
    %v797 = vmul.f32 %v796, 1.442695
    %v798 = vpow.pop %v797
    %v799 = vadd.f32 %v798, 1.0
    %v800 = vrcp.pop %v799
    %v801 = vmul.f32 %v799, %v800
    %v802 = vsub.f32 1.0, %v801
    %v803 = vmul.f32 %v800, %v802
    %v804 = vadd.f32 %v800, %v803
    %vm805 = vweird.f32 %v799
    %vm806 = vweird.f32 %v800
    %vm807 = vmor %vm805, %vm806
    %v808 = vsel %vm807, %v800, %v804
    %v809 = vand.u32 2147483647, %v799
    %vm810 = vcmp.eq.f32.partialorder %v809, 8.507059e+37
    %v811 = vand.u32 %v799, 2147483648
    %v812 = vor.u32 1.1754944e-38, %v811
    %v813 = vsel %vm810, %v812, %v808
    %v814 = vmul.f32 1.0, %v813
    %v815 = vmul.f32 %v794, %v432
    %v816 = vmul.f32 %v775, %v795
    %v817 = vadd.f32 %v815, %v816
    %v818 = vtanh.pop %v817
    %v819 = vmul.f32 %v814, %v818
    %820 = vmatpush.msra.mxu0 %v211
    %821 = vmatpush.msra.mxu0 %v207
    %822 = vmatpush.msra.mxu0 %v203
    %823 = vmatpush.msra.mxu0 %v199
    %824 = vmatpush.msra.mxu0 %v195
    %825 = vmatpush.msra.mxu0 %v191
    %826 = vmatpush.msra.mxu0 %v187
    %827 = vmatpush.msra.mxu0 %v183
    %828 = vmatpush.msra.mxu0 %v179
    %829 = vmatpush.msra.mxu0 %v175
    %830 = vmatpush.msra.mxu0 %v171
    %831 = vmatpush.msra.mxu0 %v167
    %832 = vmatpush.msra.mxu0 %v163
    %833 = vmatpush.msra.mxu0 %v159
    %834 = vmatpush.msra.mxu0 %v155
    %835 = vmatpush.msra.mxu0 %v151
    %836 = vmatmul.f32.gmra.mxu0 %v819
    %v837 = vpop.f32.mrf.mxu0
    %v838 = vadd.f32 %v436, %v837
    %839 = vdwg.mxu0
    %840 = vmatpush.msra.mxu0 %v275
    %841 = vmatpush.msra.mxu0 %v271
    %842 = vmatpush.msra.mxu0 %v267
    %843 = vmatpush.msra.mxu0 %v263
    %844 = vmatpush.msra.mxu0 %v259
    %845 = vmatpush.msra.mxu0 %v255
    %846 = vmatpush.msra.mxu0 %v251
    %847 = vmatpush.msra.mxu0 %v247
    %848 = vmatpush.msra.mxu0 %v243
    %849 = vmatpush.msra.mxu0 %v239
    %850 = vmatpush.msra.mxu0 %v235
    %851 = vmatpush.msra.mxu0 %v231
    %852 = vmatpush.msra.mxu0 %v227
    %853 = vmatpush.msra.mxu0 %v223
    %854 = vmatpush.msra.mxu0 %v219
    %855 = vmatpush.msra.mxu0 %v215
    %856 = vmatmul.f32.gmra.mxu0 %v666
    %v857 = vpop.f32.mrf.mxu0
    %v858 = vadd.f32 %v838, %v857
    %859 = vdwg.mxu0
    %860 = vmatpush.msra.mxu0 %v212
    %861 = vmatpush.msra.mxu0 %v208
    %862 = vmatpush.msra.mxu0 %v204
    %863 = vmatpush.msra.mxu0 %v200
    %864 = vmatpush.msra.mxu0 %v196
    %865 = vmatpush.msra.mxu0 %v192
    %866 = vmatpush.msra.mxu0 %v188
    %867 = vmatpush.msra.mxu0 %v184
    %868 = vmatpush.msra.mxu0 %v180
    %869 = vmatpush.msra.mxu0 %v176
    %870 = vmatpush.msra.mxu0 %v172
    %871 = vmatpush.msra.mxu0 %v168
    %872 = vmatpush.msra.mxu0 %v164
    %873 = vmatpush.msra.mxu0 %v160
    %874 = vmatpush.msra.mxu0 %v156
    %875 = vmatpush.msra.mxu0 %v152
    %876 = vmatmul.f32.gmra.mxu0 %v819
    %v877 = vpop.f32.mrf.mxu0
    %v878 = vadd.f32 %v437, %v877
    %879 = vdwg.mxu0
    %880 = vmatpush.msra.mxu0 %v276
    %881 = vmatpush.msra.mxu0 %v272
    %882 = vmatpush.msra.mxu0 %v268
    %883 = vmatpush.msra.mxu0 %v264
    %884 = vmatpush.msra.mxu0 %v260
    %885 = vmatpush.msra.mxu0 %v256
    %886 = vmatpush.msra.mxu0 %v252
    %887 = vmatpush.msra.mxu0 %v248
    %888 = vmatpush.msra.mxu0 %v244
    %889 = vmatpush.msra.mxu0 %v240
    %890 = vmatpush.msra.mxu0 %v236
    %891 = vmatpush.msra.mxu0 %v232
    %892 = vmatpush.msra.mxu0 %v228
    %893 = vmatpush.msra.mxu0 %v224
    %894 = vmatpush.msra.mxu0 %v220
    %895 = vmatpush.msra.mxu0 %v216
    %896 = vmatmul.f32.gmra.mxu0 %v666
    %v897 = vpop.f32.mrf.mxu0
    %v898 = vadd.f32 %v878, %v897
    %899 = vdwg.mxu0
    %900 = vmatpush.msra.mxu0 %v213
    %901 = vmatpush.msra.mxu0 %v209
    %902 = vmatpush.msra.mxu0 %v205
    %903 = vmatpush.msra.mxu0 %v201
    %904 = vmatpush.msra.mxu0 %v197
    %905 = vmatpush.msra.mxu0 %v193
    %906 = vmatpush.msra.mxu0 %v189
    %907 = vmatpush.msra.mxu0 %v185
    %908 = vmatpush.msra.mxu0 %v181
    %909 = vmatpush.msra.mxu0 %v177
    %910 = vmatpush.msra.mxu0 %v173
    %911 = vmatpush.msra.mxu0 %v169
    %912 = vmatpush.msra.mxu0 %v165
    %913 = vmatpush.msra.mxu0 %v161
    %914 = vmatpush.msra.mxu0 %v157
    %915 = vmatpush.msra.mxu0 %v153
    %916 = vmatmul.f32.gmra.mxu0 %v819
    %v917 = vpop.f32.mrf.mxu0
    %v918 = vadd.f32 %v438, %v917
    %919 = vdwg.mxu0
    %920 = vmatpush.msra.mxu0 %v277
    %921 = vmatpush.msra.mxu0 %v273
    %922 = vmatpush.msra.mxu0 %v269
    %923 = vmatpush.msra.mxu0 %v265
    %924 = vmatpush.msra.mxu0 %v261
    %925 = vmatpush.msra.mxu0 %v257
    %926 = vmatpush.msra.mxu0 %v253
    %927 = vmatpush.msra.mxu0 %v249
    %928 = vmatpush.msra.mxu0 %v245
    %929 = vmatpush.msra.mxu0 %v241
    %930 = vmatpush.msra.mxu0 %v237
    %931 = vmatpush.msra.mxu0 %v233
    %932 = vmatpush.msra.mxu0 %v229
    %933 = vmatpush.msra.mxu0 %v225
    %934 = vmatpush.msra.mxu0 %v221
    %935 = vmatpush.msra.mxu0 %v217
    %936 = vmatmul.f32.gmra.mxu0 %v666
    %v937 = vpop.f32.mrf.mxu0
    %v938 = vadd.f32 %v918, %v937
    %939 = vdwg.mxu0
    %940 = vmatpush.msra.mxu0 %v214
    %941 = vmatpush.msra.mxu0 %v210
    %942 = vmatpush.msra.mxu0 %v206
    %943 = vmatpush.msra.mxu0 %v202
    %944 = vmatpush.msra.mxu0 %v198
    %945 = vmatpush.msra.mxu0 %v194
    %946 = vmatpush.msra.mxu0 %v190
    %947 = vmatpush.msra.mxu0 %v186
    %948 = vmatpush.msra.mxu0 %v182
    %949 = vmatpush.msra.mxu0 %v178
    %950 = vmatpush.msra.mxu0 %v174
    %951 = vmatpush.msra.mxu0 %v170
    %952 = vmatpush.msra.mxu0 %v166
    %953 = vmatpush.msra.mxu0 %v162
    %954 = vmatpush.msra.mxu0 %v158
    %955 = vmatpush.msra.mxu0 %v154
    %956 = vmatmul.f32.gmra.mxu0 %v819
    %v957 = vpop.f32.mrf.mxu0
    %v958 = vadd.f32 %v439, %v957
    %959 = vdwg.mxu0
    %960 = vmatpush.msra.mxu0 %v278
    %961 = vmatpush.msra.mxu0 %v274
    %962 = vmatpush.msra.mxu0 %v270
    %963 = vmatpush.msra.mxu0 %v266
    %964 = vmatpush.msra.mxu0 %v262
    %965 = vmatpush.msra.mxu0 %v258
    %966 = vmatpush.msra.mxu0 %v254
    %967 = vmatpush.msra.mxu0 %v250
    %968 = vmatpush.msra.mxu0 %v246
    %969 = vmatpush.msra.mxu0 %v242
    %970 = vmatpush.msra.mxu0 %v238
    %971 = vmatpush.msra.mxu0 %v234
    %972 = vmatpush.msra.mxu0 %v230
    %973 = vmatpush.msra.mxu0 %v226
    %974 = vmatpush.msra.mxu0 %v222
    %975 = vmatpush.msra.mxu0 %v218
    %976 = vmatmul.f32.gmra.mxu0 %v666
    %v977 = vpop.f32.mrf.mxu0
    %v978 = vadd.f32 %v958, %v977
    %979 = vdwg.mxu0
    %v980 = vxor.u32 %v858, 2147483648
    %v981 = vmul.f32 %v980, 1.442695
    %v982 = vpow.pop %v981
    %v983 = vadd.f32 %v982, 1.0
    %v984 = vrcp.pop %v983
    %v985 = vmul.f32 %v983, %v984
    %v986 = vsub.f32 1.0, %v985
    %v987 = vmul.f32 %v984, %v986
    %v988 = vadd.f32 %v984, %v987
    %vm989 = vweird.f32 %v983
    %vm990 = vweird.f32 %v984
    %vm991 = vmor %vm989, %vm990
    %v992 = vsel %vm991, %v984, %v988
    %v993 = vand.u32 2147483647, %v983
    %vm994 = vcmp.eq.f32.partialorder %v993, 8.507059e+37
    %v995 = vand.u32 %v983, 2147483648
    %v996 = vor.u32 1.1754944e-38, %v995
    %v997 = vsel %vm994, %v996, %v992
    %v998 = vmul.f32 1.0, %v997
    %v999 = vxor.u32 %v898, 2147483648
    %v1000 = vmul.f32 %v999, 1.442695
    %v1001 = vpow.pop %v1000
    %v1002 = vadd.f32 %v1001, 1.0
    %v1003 = vrcp.pop %v1002
    %v1004 = vmul.f32 %v1002, %v1003
    %v1005 = vsub.f32 1.0, %v1004
    %v1006 = vmul.f32 %v1003, %v1005
    %v1007 = vadd.f32 %v1003, %v1006
    %vm1008 = vweird.f32 %v1002
    %vm1009 = vweird.f32 %v1003
    %vm1010 = vmor %vm1008, %vm1009
    %v1011 = vsel %vm1010, %v1003, %v1007
    %v1012 = vand.u32 2147483647, %v1002
    %vm1013 = vcmp.eq.f32.partialorder %v1012, 8.507059e+37
    %v1014 = vand.u32 %v1002, 2147483648
    %v1015 = vor.u32 1.1754944e-38, %v1014
    %v1016 = vsel %vm1013, %v1015, %v1011
    %v1017 = vmul.f32 1.0, %v1016
    %v1018 = vtanh.pop %v938
    %v1019 = vxor.u32 %v978, 2147483648
    %v1020 = vmul.f32 %v1019, 1.442695
    %v1021 = vpow.pop %v1020
    %v1022 = vadd.f32 %v1021, 1.0
    %v1023 = vrcp.pop %v1022
    %v1024 = vmul.f32 %v1022, %v1023
    %v1025 = vsub.f32 1.0, %v1024
    %v1026 = vmul.f32 %v1023, %v1025
    %v1027 = vadd.f32 %v1023, %v1026
    %vm1028 = vweird.f32 %v1022
    %vm1029 = vweird.f32 %v1023
    %vm1030 = vmor %vm1028, %vm1029
    %v1031 = vsel %vm1030, %v1023, %v1027
    %v1032 = vand.u32 2147483647, %v1022
    %vm1033 = vcmp.eq.f32.partialorder %v1032, 8.507059e+37
    %v1034 = vand.u32 %v1022, 2147483648
    %v1035 = vor.u32 1.1754944e-38, %v1034
    %v1036 = vsel %vm1033, %v1035, %v1031
    %v1037 = vmul.f32 1.0, %v1036
    %v1038 = vmul.f32 %v1017, %v664
    %v1039 = vmul.f32 %v998, %v1018
    %v1040 = vadd.f32 %v1038, %v1039
    %v1041 = vtanh.pop %v1040
    %v1042 = vmul.f32 %v1037, %v1041
    %s1043 = scalar_lea.vmem [#allocation14], 8
    %1044 = vst [vmem:[%s1043] sm:$0xff] %v1042
    %s1045 = scalar_lea.vmem [#allocation6], 64
    %v1046 = vld [vmem:[%s1045] sm:$0xff]
    %v1047 = vld [vmem:[%s1045 + $0x8] sm:$0xff]
    %v1048 = vld [vmem:[%s1045 + $0x10] sm:$0xff]
    %v1049 = vld [vmem:[%s1045 + $0x18] sm:$0xff]
    %1050 = vmatpush.msra.mxu0 %v147
    %1051 = vmatpush.msra.mxu0 %v143
    %1052 = vmatpush.msra.mxu0 %v139
    %1053 = vmatpush.msra.mxu0 %v135
    %1054 = vmatpush.msra.mxu0 %v131
    %1055 = vmatpush.msra.mxu0 %v127
    %1056 = vmatpush.msra.mxu0 %v123
    %1057 = vmatpush.msra.mxu0 %v119
    %1058 = vmatpush.msra.mxu0 %v115
    %1059 = vmatpush.msra.mxu0 %v111
    %1060 = vmatpush.msra.mxu0 %v107
    %1061 = vmatpush.msra.mxu0 %v103
    %1062 = vmatpush.msra.mxu0 %v99
    %1063 = vmatpush.msra.mxu0 %v95
    %1064 = vmatpush.msra.mxu0 %v91
    %1065 = vmatpush.msra.mxu0 %v87
    %1066 = vmatmul.f32.gmra.mxu0 %v819
    %v1067 = vpop.f32.mrf.mxu0
    %v1068 = vadd.f32 0.0, %v1067
    %1069 = vdwg.mxu0
    %1070 = vmatpush.msra.mxu0 %v148
    %1071 = vmatpush.msra.mxu0 %v144
    %1072 = vmatpush.msra.mxu0 %v140
    %1073 = vmatpush.msra.mxu0 %v136
    %1074 = vmatpush.msra.mxu0 %v132
    %1075 = vmatpush.msra.mxu0 %v128
    %1076 = vmatpush.msra.mxu0 %v124
    %1077 = vmatpush.msra.mxu0 %v120
    %1078 = vmatpush.msra.mxu0 %v116
    %1079 = vmatpush.msra.mxu0 %v112
    %1080 = vmatpush.msra.mxu0 %v108
    %1081 = vmatpush.msra.mxu0 %v104
    %1082 = vmatpush.msra.mxu0 %v100
    %1083 = vmatpush.msra.mxu0 %v96
    %1084 = vmatpush.msra.mxu0 %v92
    %1085 = vmatpush.msra.mxu0 %v88
    %1086 = vmatmul.f32.gmra.mxu0 %v819
    %v1087 = vpop.f32.mrf.mxu0
    %v1088 = vadd.f32 0.0, %v1087
    %1089 = vdwg.mxu0
    %1090 = vmatpush.msra.mxu0 %v149
    %1091 = vmatpush.msra.mxu0 %v145
    %1092 = vmatpush.msra.mxu0 %v141
    %1093 = vmatpush.msra.mxu0 %v137
    %1094 = vmatpush.msra.mxu0 %v133
    %1095 = vmatpush.msra.mxu0 %v129
    %1096 = vmatpush.msra.mxu0 %v125
    %1097 = vmatpush.msra.mxu0 %v121
    %1098 = vmatpush.msra.mxu0 %v117
    %1099 = vmatpush.msra.mxu0 %v113
    %1100 = vmatpush.msra.mxu0 %v109
    %1101 = vmatpush.msra.mxu0 %v105
    %1102 = vmatpush.msra.mxu0 %v101
    %1103 = vmatpush.msra.mxu0 %v97
    %1104 = vmatpush.msra.mxu0 %v93
    %1105 = vmatpush.msra.mxu0 %v89
    %1106 = vmatmul.f32.gmra.mxu0 %v819
    %v1107 = vpop.f32.mrf.mxu0
    %v1108 = vadd.f32 0.0, %v1107
    %1109 = vdwg.mxu0
    %1110 = vmatpush.msra.mxu0 %v150
    %1111 = vmatpush.msra.mxu0 %v146
    %1112 = vmatpush.msra.mxu0 %v142
    %1113 = vmatpush.msra.mxu0 %v138
    %1114 = vmatpush.msra.mxu0 %v134
    %1115 = vmatpush.msra.mxu0 %v130
    %1116 = vmatpush.msra.mxu0 %v126
    %1117 = vmatpush.msra.mxu0 %v122
    %1118 = vmatpush.msra.mxu0 %v118
    %1119 = vmatpush.msra.mxu0 %v114
    %1120 = vmatpush.msra.mxu0 %v110
    %1121 = vmatpush.msra.mxu0 %v106
    %1122 = vmatpush.msra.mxu0 %v102
    %1123 = vmatpush.msra.mxu0 %v98
    %1124 = vmatpush.msra.mxu0 %v94
    %1125 = vmatpush.msra.mxu0 %v90
    %1126 = vmatmul.f32.gmra.mxu0 %v819
    %v1127 = vpop.f32.mrf.mxu0
    %v1128 = vadd.f32 0.0, %v1127
    %1129 = vdwg.mxu0
    %v1130 = vadd.f32 %v1046, %v1068
    %v1131 = vadd.f32 %v1047, %v1088
    %v1132 = vadd.f32 %v1048, %v1108
    %v1133 = vadd.f32 %v1049, %v1128
    %v1134 = vxor.u32 %v1130, 2147483648
    %v1135 = vmul.f32 %v1134, 1.442695
    %v1136 = vpow.pop %v1135
    %v1137 = vadd.f32 %v1136, 1.0
    %v1138 = vrcp.pop %v1137
    %v1139 = vmul.f32 %v1137, %v1138
    %v1140 = vsub.f32 1.0, %v1139
    %v1141 = vmul.f32 %v1138, %v1140
    %v1142 = vadd.f32 %v1138, %v1141
    %vm1143 = vweird.f32 %v1137
    %vm1144 = vweird.f32 %v1138
    %vm1145 = vmor %vm1143, %vm1144
    %v1146 = vsel %vm1145, %v1138, %v1142
    %v1147 = vand.u32 2147483647, %v1137
    %vm1148 = vcmp.eq.f32.partialorder %v1147, 8.507059e+37
    %v1149 = vand.u32 %v1137, 2147483648
    %v1150 = vor.u32 1.1754944e-38, %v1149
    %v1151 = vsel %vm1148, %v1150, %v1146
    %v1152 = vmul.f32 1.0, %v1151
    %v1153 = vxor.u32 %v1131, 2147483648
    %v1154 = vmul.f32 %v1153, 1.442695
    %v1155 = vpow.pop %v1154
    %v1156 = vadd.f32 %v1155, 1.0
    %v1157 = vrcp.pop %v1156
    %v1158 = vmul.f32 %v1156, %v1157
    %v1159 = vsub.f32 1.0, %v1158
    %v1160 = vmul.f32 %v1157, %v1159
    %v1161 = vadd.f32 %v1157, %v1160
    %vm1162 = vweird.f32 %v1156
    %vm1163 = vweird.f32 %v1157
    %vm1164 = vmor %vm1162, %vm1163
    %v1165 = vsel %vm1164, %v1157, %v1161
    %v1166 = vand.u32 2147483647, %v1156
    %vm1167 = vcmp.eq.f32.partialorder %v1166, 8.507059e+37
    %v1168 = vand.u32 %v1156, 2147483648
    %v1169 = vor.u32 1.1754944e-38, %v1168
    %v1170 = vsel %vm1167, %v1169, %v1165
    %v1171 = vmul.f32 1.0, %v1170
    %v1172 = vtanh.pop %v1132
    %v1173 = vxor.u32 %v1133, 2147483648
    %v1174 = vmul.f32 %v1173, 1.442695
    %v1175 = vpow.pop %v1174
    %v1176 = vadd.f32 %v1175, 1.0
    %v1177 = vrcp.pop %v1176
    %v1178 = vmul.f32 %v1176, %v1177
    %v1179 = vsub.f32 1.0, %v1178
    %v1180 = vmul.f32 %v1177, %v1179
    %v1181 = vadd.f32 %v1177, %v1180
    %vm1182 = vweird.f32 %v1176
    %vm1183 = vweird.f32 %v1177
    %vm1184 = vmor %vm1182, %vm1183
    %v1185 = vsel %vm1184, %v1177, %v1181
    %v1186 = vand.u32 2147483647, %v1176
    %vm1187 = vcmp.eq.f32.partialorder %v1186, 8.507059e+37
    %v1188 = vand.u32 %v1176, 2147483648
    %v1189 = vor.u32 1.1754944e-38, %v1188
    %v1190 = vsel %vm1187, %v1189, %v1185
    %v1191 = vmul.f32 1.0, %v1190
    %v1192 = vmul.f32 %v1171, %v817
    %v1193 = vmul.f32 %v1152, %v1172
    %v1194 = vadd.f32 %v1192, %v1193
    %v1195 = vtanh.pop %v1194
    %v1196 = vmul.f32 %v1191, %v1195
    %1197 = vmatpush.msra.mxu0 %v211
    %1198 = vmatpush.msra.mxu0 %v207
    %1199 = vmatpush.msra.mxu0 %v203
    %1200 = vmatpush.msra.mxu0 %v199
    %1201 = vmatpush.msra.mxu0 %v195
    %1202 = vmatpush.msra.mxu0 %v191
    %1203 = vmatpush.msra.mxu0 %v187
    %1204 = vmatpush.msra.mxu0 %v183
    %1205 = vmatpush.msra.mxu0 %v179
    %1206 = vmatpush.msra.mxu0 %v175
    %1207 = vmatpush.msra.mxu0 %v171
    %1208 = vmatpush.msra.mxu0 %v167
    %1209 = vmatpush.msra.mxu0 %v163
    %1210 = vmatpush.msra.mxu0 %v159
    %1211 = vmatpush.msra.mxu0 %v155
    %1212 = vmatpush.msra.mxu0 %v151
    %1213 = vmatmul.f32.gmra.mxu0 %v1196
    %v1214 = vpop.f32.mrf.mxu0
    %v1215 = vadd.f32 %v436, %v1214
    %1216 = vdwg.mxu0
    %1217 = vmatpush.msra.mxu0 %v275
    %1218 = vmatpush.msra.mxu0 %v271
    %1219 = vmatpush.msra.mxu0 %v267
    %1220 = vmatpush.msra.mxu0 %v263
    %1221 = vmatpush.msra.mxu0 %v259
    %1222 = vmatpush.msra.mxu0 %v255
    %1223 = vmatpush.msra.mxu0 %v251
    %1224 = vmatpush.msra.mxu0 %v247
    %1225 = vmatpush.msra.mxu0 %v243
    %1226 = vmatpush.msra.mxu0 %v239
    %1227 = vmatpush.msra.mxu0 %v235
    %1228 = vmatpush.msra.mxu0 %v231
    %1229 = vmatpush.msra.mxu0 %v227
    %1230 = vmatpush.msra.mxu0 %v223
    %1231 = vmatpush.msra.mxu0 %v219
    %1232 = vmatpush.msra.mxu0 %v215
    %1233 = vmatmul.f32.gmra.mxu0 %v1042
    %v1234 = vpop.f32.mrf.mxu0
    %v1235 = vadd.f32 %v1215, %v1234
    %1236 = vdwg.mxu0
    %1237 = vmatpush.msra.mxu0 %v212
    %1238 = vmatpush.msra.mxu0 %v208
    %1239 = vmatpush.msra.mxu0 %v204
    %1240 = vmatpush.msra.mxu0 %v200
    %1241 = vmatpush.msra.mxu0 %v196
    %1242 = vmatpush.msra.mxu0 %v192
    %1243 = vmatpush.msra.mxu0 %v188
    %1244 = vmatpush.msra.mxu0 %v184
    %1245 = vmatpush.msra.mxu0 %v180
    %1246 = vmatpush.msra.mxu0 %v176
    %1247 = vmatpush.msra.mxu0 %v172
    %1248 = vmatpush.msra.mxu0 %v168
    %1249 = vmatpush.msra.mxu0 %v164
    %1250 = vmatpush.msra.mxu0 %v160
    %1251 = vmatpush.msra.mxu0 %v156
    %1252 = vmatpush.msra.mxu0 %v152
    %1253 = vmatmul.f32.gmra.mxu0 %v1196
    %v1254 = vpop.f32.mrf.mxu0
    %v1255 = vadd.f32 %v437, %v1254
    %1256 = vdwg.mxu0
    %1257 = vmatpush.msra.mxu0 %v276
    %1258 = vmatpush.msra.mxu0 %v272
    %1259 = vmatpush.msra.mxu0 %v268
    %1260 = vmatpush.msra.mxu0 %v264
    %1261 = vmatpush.msra.mxu0 %v260
    %1262 = vmatpush.msra.mxu0 %v256
    %1263 = vmatpush.msra.mxu0 %v252
    %1264 = vmatpush.msra.mxu0 %v248
    %1265 = vmatpush.msra.mxu0 %v244
    %1266 = vmatpush.msra.mxu0 %v240
    %1267 = vmatpush.msra.mxu0 %v236
    %1268 = vmatpush.msra.mxu0 %v232
    %1269 = vmatpush.msra.mxu0 %v228
    %1270 = vmatpush.msra.mxu0 %v224
    %1271 = vmatpush.msra.mxu0 %v220
    %1272 = vmatpush.msra.mxu0 %v216
    %1273 = vmatmul.f32.gmra.mxu0 %v1042
    %v1274 = vpop.f32.mrf.mxu0
    %v1275 = vadd.f32 %v1255, %v1274
    %1276 = vdwg.mxu0
    %1277 = vmatpush.msra.mxu0 %v213
    %1278 = vmatpush.msra.mxu0 %v209
    %1279 = vmatpush.msra.mxu0 %v205
    %1280 = vmatpush.msra.mxu0 %v201
    %1281 = vmatpush.msra.mxu0 %v197
    %1282 = vmatpush.msra.mxu0 %v193
    %1283 = vmatpush.msra.mxu0 %v189
    %1284 = vmatpush.msra.mxu0 %v185
    %1285 = vmatpush.msra.mxu0 %v181
    %1286 = vmatpush.msra.mxu0 %v177
    %1287 = vmatpush.msra.mxu0 %v173
    %1288 = vmatpush.msra.mxu0 %v169
    %1289 = vmatpush.msra.mxu0 %v165
    %1290 = vmatpush.msra.mxu0 %v161
    %1291 = vmatpush.msra.mxu0 %v157
    %1292 = vmatpush.msra.mxu0 %v153
    %1293 = vmatmul.f32.gmra.mxu0 %v1196
    %v1294 = vpop.f32.mrf.mxu0
    %v1295 = vadd.f32 %v438, %v1294
    %1296 = vdwg.mxu0
    %1297 = vmatpush.msra.mxu0 %v277
    %1298 = vmatpush.msra.mxu0 %v273
    %1299 = vmatpush.msra.mxu0 %v269
    %1300 = vmatpush.msra.mxu0 %v265
    %1301 = vmatpush.msra.mxu0 %v261
    %1302 = vmatpush.msra.mxu0 %v257
    %1303 = vmatpush.msra.mxu0 %v253
    %1304 = vmatpush.msra.mxu0 %v249
    %1305 = vmatpush.msra.mxu0 %v245
    %1306 = vmatpush.msra.mxu0 %v241
    %1307 = vmatpush.msra.mxu0 %v237
    %1308 = vmatpush.msra.mxu0 %v233
    %1309 = vmatpush.msra.mxu0 %v229
    %1310 = vmatpush.msra.mxu0 %v225
    %1311 = vmatpush.msra.mxu0 %v221
    %1312 = vmatpush.msra.mxu0 %v217
    %1313 = vmatmul.f32.gmra.mxu0 %v1042
    %v1314 = vpop.f32.mrf.mxu0
    %v1315 = vadd.f32 %v1295, %v1314
    %1316 = vdwg.mxu0
    %1317 = vmatpush.msra.mxu0 %v214
    %1318 = vmatpush.msra.mxu0 %v210
    %1319 = vmatpush.msra.mxu0 %v206
    %1320 = vmatpush.msra.mxu0 %v202
    %1321 = vmatpush.msra.mxu0 %v198
    %1322 = vmatpush.msra.mxu0 %v194
    %1323 = vmatpush.msra.mxu0 %v190
    %1324 = vmatpush.msra.mxu0 %v186
    %1325 = vmatpush.msra.mxu0 %v182
    %1326 = vmatpush.msra.mxu0 %v178
    %1327 = vmatpush.msra.mxu0 %v174
    %1328 = vmatpush.msra.mxu0 %v170
    %1329 = vmatpush.msra.mxu0 %v166
    %1330 = vmatpush.msra.mxu0 %v162
    %1331 = vmatpush.msra.mxu0 %v158
    %1332 = vmatpush.msra.mxu0 %v154
    %1333 = vmatmul.f32.gmra.mxu0 %v1196
    %v1334 = vpop.f32.mrf.mxu0
    %v1335 = vadd.f32 %v439, %v1334
    %1336 = vdwg.mxu0
    %1337 = vmatpush.msra.mxu0 %v278
    %1338 = vmatpush.msra.mxu0 %v274
    %1339 = vmatpush.msra.mxu0 %v270
    %1340 = vmatpush.msra.mxu0 %v266
    %1341 = vmatpush.msra.mxu0 %v262
    %1342 = vmatpush.msra.mxu0 %v258
    %1343 = vmatpush.msra.mxu0 %v254
    %1344 = vmatpush.msra.mxu0 %v250
    %1345 = vmatpush.msra.mxu0 %v246
    %1346 = vmatpush.msra.mxu0 %v242
    %1347 = vmatpush.msra.mxu0 %v238
    %1348 = vmatpush.msra.mxu0 %v234
    %1349 = vmatpush.msra.mxu0 %v230
    %1350 = vmatpush.msra.mxu0 %v226
    %1351 = vmatpush.msra.mxu0 %v222
    %1352 = vmatpush.msra.mxu0 %v218
    %1353 = vmatmul.f32.gmra.mxu0 %v1042
    %v1354 = vpop.f32.mrf.mxu0
    %v1355 = vadd.f32 %v1335, %v1354
    %1356 = vdwg.mxu0
    %v1357 = vxor.u32 %v1235, 2147483648
    %v1358 = vmul.f32 %v1357, 1.442695
    %v1359 = vpow.pop %v1358
    %v1360 = vadd.f32 %v1359, 1.0
    %v1361 = vrcp.pop %v1360
    %v1362 = vmul.f32 %v1360, %v1361
    %v1363 = vsub.f32 1.0, %v1362
    %v1364 = vmul.f32 %v1361, %v1363
    %v1365 = vadd.f32 %v1361, %v1364
    %vm1366 = vweird.f32 %v1360
    %vm1367 = vweird.f32 %v1361
    %vm1368 = vmor %vm1366, %vm1367
    %v1369 = vsel %vm1368, %v1361, %v1365
    %v1370 = vand.u32 2147483647, %v1360
    %vm1371 = vcmp.eq.f32.partialorder %v1370, 8.507059e+37
    %v1372 = vand.u32 %v1360, 2147483648
    %v1373 = vor.u32 1.1754944e-38, %v1372
    %v1374 = vsel %vm1371, %v1373, %v1369
    %v1375 = vmul.f32 1.0, %v1374
    %v1376 = vxor.u32 %v1275, 2147483648
    %v1377 = vmul.f32 %v1376, 1.442695
    %v1378 = vpow.pop %v1377
    %v1379 = vadd.f32 %v1378, 1.0
    %v1380 = vrcp.pop %v1379
    %v1381 = vmul.f32 %v1379, %v1380
    %v1382 = vsub.f32 1.0, %v1381
    %v1383 = vmul.f32 %v1380, %v1382
    %v1384 = vadd.f32 %v1380, %v1383
    %vm1385 = vweird.f32 %v1379
    %vm1386 = vweird.f32 %v1380
    %vm1387 = vmor %vm1385, %vm1386
    %v1388 = vsel %vm1387, %v1380, %v1384
    %v1389 = vand.u32 2147483647, %v1379
    %vm1390 = vcmp.eq.f32.partialorder %v1389, 8.507059e+37
    %v1391 = vand.u32 %v1379, 2147483648
    %v1392 = vor.u32 1.1754944e-38, %v1391
    %v1393 = vsel %vm1390, %v1392, %v1388
    %v1394 = vmul.f32 1.0, %v1393
    %v1395 = vtanh.pop %v1315
    %v1396 = vxor.u32 %v1355, 2147483648
    %v1397 = vmul.f32 %v1396, 1.442695
    %v1398 = vpow.pop %v1397
    %v1399 = vadd.f32 %v1398, 1.0
    %v1400 = vrcp.pop %v1399
    %v1401 = vmul.f32 %v1399, %v1400
    %v1402 = vsub.f32 1.0, %v1401
    %v1403 = vmul.f32 %v1400, %v1402
    %v1404 = vadd.f32 %v1400, %v1403
    %vm1405 = vweird.f32 %v1399
    %vm1406 = vweird.f32 %v1400
    %vm1407 = vmor %vm1405, %vm1406
    %v1408 = vsel %vm1407, %v1400, %v1404
    %v1409 = vand.u32 2147483647, %v1399
    %vm1410 = vcmp.eq.f32.partialorder %v1409, 8.507059e+37
    %v1411 = vand.u32 %v1399, 2147483648
    %v1412 = vor.u32 1.1754944e-38, %v1411
    %v1413 = vsel %vm1410, %v1412, %v1408
    %v1414 = vmul.f32 1.0, %v1413
    %v1415 = vmul.f32 %v1394, %v1040
    %v1416 = vmul.f32 %v1375, %v1395
    %v1417 = vadd.f32 %v1415, %v1416
    %v1418 = vtanh.pop %v1417
    %v1419 = vmul.f32 %v1414, %v1418
    %s1420 = scalar_lea.vmem [#allocation14], 16
    %1421 = vst [vmem:[%s1420] sm:$0xff] %v1419
    %s1422 = scalar_lea.vmem [#allocation6], 96
    %v1423 = vld [vmem:[%s1422] sm:$0xff]
    %v1424 = vld [vmem:[%s1422 + $0x8] sm:$0xff]
    %v1425 = vld [vmem:[%s1422 + $0x10] sm:$0xff]
    %v1426 = vld [vmem:[%s1422 + $0x18] sm:$0xff]
    %1427 = vmatpush.msra.mxu0 %v147
    %1428 = vmatpush.msra.mxu0 %v143
    %1429 = vmatpush.msra.mxu0 %v139
    %1430 = vmatpush.msra.mxu0 %v135
    %1431 = vmatpush.msra.mxu0 %v131
    %1432 = vmatpush.msra.mxu0 %v127
    %1433 = vmatpush.msra.mxu0 %v123
    %1434 = vmatpush.msra.mxu0 %v119
    %1435 = vmatpush.msra.mxu0 %v115
    %1436 = vmatpush.msra.mxu0 %v111
    %1437 = vmatpush.msra.mxu0 %v107
    %1438 = vmatpush.msra.mxu0 %v103
    %1439 = vmatpush.msra.mxu0 %v99
    %1440 = vmatpush.msra.mxu0 %v95
    %1441 = vmatpush.msra.mxu0 %v91
    %1442 = vmatpush.msra.mxu0 %v87
    %1443 = vmatmul.f32.gmra.mxu0 %v1196
    %v1444 = vpop.f32.mrf.mxu0
    %v1445 = vadd.f32 0.0, %v1444
    %1446 = vdwg.mxu0
    %1447 = vmatpush.msra.mxu0 %v148
    %1448 = vmatpush.msra.mxu0 %v144
    %1449 = vmatpush.msra.mxu0 %v140
    %1450 = vmatpush.msra.mxu0 %v136
    %1451 = vmatpush.msra.mxu0 %v132
    %1452 = vmatpush.msra.mxu0 %v128
    %1453 = vmatpush.msra.mxu0 %v124
    %1454 = vmatpush.msra.mxu0 %v120
    %1455 = vmatpush.msra.mxu0 %v116
    %1456 = vmatpush.msra.mxu0 %v112
    %1457 = vmatpush.msra.mxu0 %v108
    %1458 = vmatpush.msra.mxu0 %v104
    %1459 = vmatpush.msra.mxu0 %v100
    %1460 = vmatpush.msra.mxu0 %v96
    %1461 = vmatpush.msra.mxu0 %v92
    %1462 = vmatpush.msra.mxu0 %v88
    %1463 = vmatmul.f32.gmra.mxu0 %v1196
    %v1464 = vpop.f32.mrf.mxu0
    %v1465 = vadd.f32 0.0, %v1464
    %1466 = vdwg.mxu0
    %1467 = vmatpush.msra.mxu0 %v149
    %1468 = vmatpush.msra.mxu0 %v145
    %1469 = vmatpush.msra.mxu0 %v141
    %1470 = vmatpush.msra.mxu0 %v137
    %1471 = vmatpush.msra.mxu0 %v133
    %1472 = vmatpush.msra.mxu0 %v129
    %1473 = vmatpush.msra.mxu0 %v125
    %1474 = vmatpush.msra.mxu0 %v121
    %1475 = vmatpush.msra.mxu0 %v117
    %1476 = vmatpush.msra.mxu0 %v113
    %1477 = vmatpush.msra.mxu0 %v109
    %1478 = vmatpush.msra.mxu0 %v105
    %1479 = vmatpush.msra.mxu0 %v101
    %1480 = vmatpush.msra.mxu0 %v97
    %1481 = vmatpush.msra.mxu0 %v93
    %1482 = vmatpush.msra.mxu0 %v89
    %1483 = vmatmul.f32.gmra.mxu0 %v1196
    %v1484 = vpop.f32.mrf.mxu0
    %v1485 = vadd.f32 0.0, %v1484
    %1486 = vdwg.mxu0
    %1487 = vmatpush.msra.mxu0 %v150
    %1488 = vmatpush.msra.mxu0 %v146
    %1489 = vmatpush.msra.mxu0 %v142
    %1490 = vmatpush.msra.mxu0 %v138
    %1491 = vmatpush.msra.mxu0 %v134
    %1492 = vmatpush.msra.mxu0 %v130
    %1493 = vmatpush.msra.mxu0 %v126
    %1494 = vmatpush.msra.mxu0 %v122
    %1495 = vmatpush.msra.mxu0 %v118
    %1496 = vmatpush.msra.mxu0 %v114
    %1497 = vmatpush.msra.mxu0 %v110
    %1498 = vmatpush.msra.mxu0 %v106
    %1499 = vmatpush.msra.mxu0 %v102
    %1500 = vmatpush.msra.mxu0 %v98
    %1501 = vmatpush.msra.mxu0 %v94
    %1502 = vmatpush.msra.mxu0 %v90
    %1503 = vmatmul.f32.gmra.mxu0 %v1196
    %v1504 = vpop.f32.mrf.mxu0
    %v1505 = vadd.f32 0.0, %v1504
    %1506 = vdwg.mxu0
    %v1507 = vadd.f32 %v1423, %v1445
    %v1508 = vadd.f32 %v1424, %v1465
    %v1509 = vadd.f32 %v1425, %v1485
    %v1510 = vadd.f32 %v1426, %v1505
    %v1511 = vxor.u32 %v1507, 2147483648
    %v1512 = vmul.f32 %v1511, 1.442695
    %v1513 = vpow.pop %v1512
    %v1514 = vadd.f32 %v1513, 1.0
    %v1515 = vrcp.pop %v1514
    %v1516 = vmul.f32 %v1514, %v1515
    %v1517 = vsub.f32 1.0, %v1516
    %v1518 = vmul.f32 %v1515, %v1517
    %v1519 = vadd.f32 %v1515, %v1518
    %vm1520 = vweird.f32 %v1514
    %vm1521 = vweird.f32 %v1515
    %vm1522 = vmor %vm1520, %vm1521
    %v1523 = vsel %vm1522, %v1515, %v1519
    %v1524 = vand.u32 2147483647, %v1514
    %vm1525 = vcmp.eq.f32.partialorder %v1524, 8.507059e+37
    %v1526 = vand.u32 %v1514, 2147483648
    %v1527 = vor.u32 1.1754944e-38, %v1526
    %v1528 = vsel %vm1525, %v1527, %v1523
    %v1529 = vmul.f32 1.0, %v1528
    %v1530 = vxor.u32 %v1508, 2147483648
    %v1531 = vmul.f32 %v1530, 1.442695
    %v1532 = vpow.pop %v1531
    %v1533 = vadd.f32 %v1532, 1.0
    %v1534 = vrcp.pop %v1533
    %v1535 = vmul.f32 %v1533, %v1534
    %v1536 = vsub.f32 1.0, %v1535
    %v1537 = vmul.f32 %v1534, %v1536
    %v1538 = vadd.f32 %v1534, %v1537
    %vm1539 = vweird.f32 %v1533
    %vm1540 = vweird.f32 %v1534
    %vm1541 = vmor %vm1539, %vm1540
    %v1542 = vsel %vm1541, %v1534, %v1538
    %v1543 = vand.u32 2147483647, %v1533
    %vm1544 = vcmp.eq.f32.partialorder %v1543, 8.507059e+37
    %v1545 = vand.u32 %v1533, 2147483648
    %v1546 = vor.u32 1.1754944e-38, %v1545
    %v1547 = vsel %vm1544, %v1546, %v1542
    %v1548 = vmul.f32 1.0, %v1547
    %v1549 = vtanh.pop %v1509
    %v1550 = vxor.u32 %v1510, 2147483648
    %v1551 = vmul.f32 %v1550, 1.442695
    %v1552 = vpow.pop %v1551
    %v1553 = vadd.f32 %v1552, 1.0
    %v1554 = vrcp.pop %v1553
    %v1555 = vmul.f32 %v1553, %v1554
    %v1556 = vsub.f32 1.0, %v1555
    %v1557 = vmul.f32 %v1554, %v1556
    %v1558 = vadd.f32 %v1554, %v1557
    %vm1559 = vweird.f32 %v1553
    %vm1560 = vweird.f32 %v1554
    %vm1561 = vmor %vm1559, %vm1560
    %v1562 = vsel %vm1561, %v1554, %v1558
    %v1563 = vand.u32 2147483647, %v1553
    %vm1564 = vcmp.eq.f32.partialorder %v1563, 8.507059e+37
    %v1565 = vand.u32 %v1553, 2147483648
    %v1566 = vor.u32 1.1754944e-38, %v1565
    %v1567 = vsel %vm1564, %v1566, %v1562
    %v1568 = vmul.f32 1.0, %v1567
    %v1569 = vmul.f32 %v1548, %v1194
    %v1570 = vmul.f32 %v1529, %v1549
    %v1571 = vadd.f32 %v1569, %v1570
    %v1572 = vtanh.pop %v1571
    %v1573 = vmul.f32 %v1568, %v1572
    %1574 = vmatpush.msra.mxu0 %v211
    %1575 = vmatpush.msra.mxu0 %v207
    %1576 = vmatpush.msra.mxu0 %v203
    %1577 = vmatpush.msra.mxu0 %v199
    %1578 = vmatpush.msra.mxu0 %v195
    %1579 = vmatpush.msra.mxu0 %v191
    %1580 = vmatpush.msra.mxu0 %v187
    %1581 = vmatpush.msra.mxu0 %v183
    %1582 = vmatpush.msra.mxu0 %v179
    %1583 = vmatpush.msra.mxu0 %v175
    %1584 = vmatpush.msra.mxu0 %v171
    %1585 = vmatpush.msra.mxu0 %v167
    %1586 = vmatpush.msra.mxu0 %v163
    %1587 = vmatpush.msra.mxu0 %v159
    %1588 = vmatpush.msra.mxu0 %v155
    %1589 = vmatpush.msra.mxu0 %v151
    %1590 = vmatmul.f32.gmra.mxu0 %v1573
    %v1591 = vpop.f32.mrf.mxu0
    %v1592 = vadd.f32 %v436, %v1591
    %1593 = vdwg.mxu0
    %1594 = vmatpush.msra.mxu0 %v275
    %1595 = vmatpush.msra.mxu0 %v271
    %1596 = vmatpush.msra.mxu0 %v267
    %1597 = vmatpush.msra.mxu0 %v263
    %1598 = vmatpush.msra.mxu0 %v259
    %1599 = vmatpush.msra.mxu0 %v255
    %1600 = vmatpush.msra.mxu0 %v251
    %1601 = vmatpush.msra.mxu0 %v247
    %1602 = vmatpush.msra.mxu0 %v243
    %1603 = vmatpush.msra.mxu0 %v239
    %1604 = vmatpush.msra.mxu0 %v235
    %1605 = vmatpush.msra.mxu0 %v231
    %1606 = vmatpush.msra.mxu0 %v227
    %1607 = vmatpush.msra.mxu0 %v223
    %1608 = vmatpush.msra.mxu0 %v219
    %1609 = vmatpush.msra.mxu0 %v215
    %1610 = vmatmul.f32.gmra.mxu0 %v1419
    %v1611 = vpop.f32.mrf.mxu0
    %v1612 = vadd.f32 %v1592, %v1611
    %1613 = vdwg.mxu0
    %1614 = vmatpush.msra.mxu0 %v212
    %1615 = vmatpush.msra.mxu0 %v208
    %1616 = vmatpush.msra.mxu0 %v204
    %1617 = vmatpush.msra.mxu0 %v200
    %1618 = vmatpush.msra.mxu0 %v196
    %1619 = vmatpush.msra.mxu0 %v192
    %1620 = vmatpush.msra.mxu0 %v188
    %1621 = vmatpush.msra.mxu0 %v184
    %1622 = vmatpush.msra.mxu0 %v180
    %1623 = vmatpush.msra.mxu0 %v176
    %1624 = vmatpush.msra.mxu0 %v172
    %1625 = vmatpush.msra.mxu0 %v168
    %1626 = vmatpush.msra.mxu0 %v164
    %1627 = vmatpush.msra.mxu0 %v160
    %1628 = vmatpush.msra.mxu0 %v156
    %1629 = vmatpush.msra.mxu0 %v152
    %1630 = vmatmul.f32.gmra.mxu0 %v1573
    %v1631 = vpop.f32.mrf.mxu0
    %v1632 = vadd.f32 %v437, %v1631
    %1633 = vdwg.mxu0
    %1634 = vmatpush.msra.mxu0 %v276
    %1635 = vmatpush.msra.mxu0 %v272
    %1636 = vmatpush.msra.mxu0 %v268
    %1637 = vmatpush.msra.mxu0 %v264
    %1638 = vmatpush.msra.mxu0 %v260
    %1639 = vmatpush.msra.mxu0 %v256
    %1640 = vmatpush.msra.mxu0 %v252
    %1641 = vmatpush.msra.mxu0 %v248
    %1642 = vmatpush.msra.mxu0 %v244
    %1643 = vmatpush.msra.mxu0 %v240
    %1644 = vmatpush.msra.mxu0 %v236
    %1645 = vmatpush.msra.mxu0 %v232
    %1646 = vmatpush.msra.mxu0 %v228
    %1647 = vmatpush.msra.mxu0 %v224
    %1648 = vmatpush.msra.mxu0 %v220
    %1649 = vmatpush.msra.mxu0 %v216
    %1650 = vmatmul.f32.gmra.mxu0 %v1419
    %v1651 = vpop.f32.mrf.mxu0
    %v1652 = vadd.f32 %v1632, %v1651
    %1653 = vdwg.mxu0
    %1654 = vmatpush.msra.mxu0 %v213
    %1655 = vmatpush.msra.mxu0 %v209
    %1656 = vmatpush.msra.mxu0 %v205
    %1657 = vmatpush.msra.mxu0 %v201
    %1658 = vmatpush.msra.mxu0 %v197
    %1659 = vmatpush.msra.mxu0 %v193
    %1660 = vmatpush.msra.mxu0 %v189
    %1661 = vmatpush.msra.mxu0 %v185
    %1662 = vmatpush.msra.mxu0 %v181
    %1663 = vmatpush.msra.mxu0 %v177
    %1664 = vmatpush.msra.mxu0 %v173
    %1665 = vmatpush.msra.mxu0 %v169
    %1666 = vmatpush.msra.mxu0 %v165
    %1667 = vmatpush.msra.mxu0 %v161
    %1668 = vmatpush.msra.mxu0 %v157
    %1669 = vmatpush.msra.mxu0 %v153
    %1670 = vmatmul.f32.gmra.mxu0 %v1573
    %v1671 = vpop.f32.mrf.mxu0
    %v1672 = vadd.f32 %v438, %v1671
    %1673 = vdwg.mxu0
    %1674 = vmatpush.msra.mxu0 %v277
    %1675 = vmatpush.msra.mxu0 %v273
    %1676 = vmatpush.msra.mxu0 %v269
    %1677 = vmatpush.msra.mxu0 %v265
    %1678 = vmatpush.msra.mxu0 %v261
    %1679 = vmatpush.msra.mxu0 %v257
    %1680 = vmatpush.msra.mxu0 %v253
    %1681 = vmatpush.msra.mxu0 %v249
    %1682 = vmatpush.msra.mxu0 %v245
    %1683 = vmatpush.msra.mxu0 %v241
    %1684 = vmatpush.msra.mxu0 %v237
    %1685 = vmatpush.msra.mxu0 %v233
    %1686 = vmatpush.msra.mxu0 %v229
    %1687 = vmatpush.msra.mxu0 %v225
    %1688 = vmatpush.msra.mxu0 %v221
    %1689 = vmatpush.msra.mxu0 %v217
    %1690 = vmatmul.f32.gmra.mxu0 %v1419
    %v1691 = vpop.f32.mrf.mxu0
    %v1692 = vadd.f32 %v1672, %v1691
    %1693 = vdwg.mxu0
    %1694 = vmatpush.msra.mxu0 %v214
    %1695 = vmatpush.msra.mxu0 %v210
    %1696 = vmatpush.msra.mxu0 %v206
    %1697 = vmatpush.msra.mxu0 %v202
    %1698 = vmatpush.msra.mxu0 %v198
    %1699 = vmatpush.msra.mxu0 %v194
    %1700 = vmatpush.msra.mxu0 %v190
    %1701 = vmatpush.msra.mxu0 %v186
    %1702 = vmatpush.msra.mxu0 %v182
    %1703 = vmatpush.msra.mxu0 %v178
    %1704 = vmatpush.msra.mxu0 %v174
    %1705 = vmatpush.msra.mxu0 %v170
    %1706 = vmatpush.msra.mxu0 %v166
    %1707 = vmatpush.msra.mxu0 %v162
    %1708 = vmatpush.msra.mxu0 %v158
    %1709 = vmatpush.msra.mxu0 %v154
    %1710 = vmatmul.f32.gmra.mxu0 %v1573
    %v1711 = vpop.f32.mrf.mxu0
    %v1712 = vadd.f32 %v439, %v1711
    %1713 = vdwg.mxu0
    %1714 = vmatpush.msra.mxu0 %v278
    %1715 = vmatpush.msra.mxu0 %v274
    %1716 = vmatpush.msra.mxu0 %v270
    %1717 = vmatpush.msra.mxu0 %v266
    %1718 = vmatpush.msra.mxu0 %v262
    %1719 = vmatpush.msra.mxu0 %v258
    %1720 = vmatpush.msra.mxu0 %v254
    %1721 = vmatpush.msra.mxu0 %v250
    %1722 = vmatpush.msra.mxu0 %v246
    %1723 = vmatpush.msra.mxu0 %v242
    %1724 = vmatpush.msra.mxu0 %v238
    %1725 = vmatpush.msra.mxu0 %v234
    %1726 = vmatpush.msra.mxu0 %v230
    %1727 = vmatpush.msra.mxu0 %v226
    %1728 = vmatpush.msra.mxu0 %v222
    %1729 = vmatpush.msra.mxu0 %v218
    %1730 = vmatmul.f32.gmra.mxu0 %v1419
    %v1731 = vpop.f32.mrf.mxu0
    %v1732 = vadd.f32 %v1712, %v1731
    %1733 = vdwg.mxu0
    %v1734 = vxor.u32 %v1612, 2147483648
    %v1735 = vmul.f32 %v1734, 1.442695
    %v1736 = vpow.pop %v1735
    %v1737 = vadd.f32 %v1736, 1.0
    %v1738 = vrcp.pop %v1737
    %v1739 = vmul.f32 %v1737, %v1738
    %v1740 = vsub.f32 1.0, %v1739
    %v1741 = vmul.f32 %v1738, %v1740
    %v1742 = vadd.f32 %v1738, %v1741
    %vm1743 = vweird.f32 %v1737
    %vm1744 = vweird.f32 %v1738
    %vm1745 = vmor %vm1743, %vm1744
    %v1746 = vsel %vm1745, %v1738, %v1742
    %v1747 = vand.u32 2147483647, %v1737
    %vm1748 = vcmp.eq.f32.partialorder %v1747, 8.507059e+37
    %v1749 = vand.u32 %v1737, 2147483648
    %v1750 = vor.u32 1.1754944e-38, %v1749
    %v1751 = vsel %vm1748, %v1750, %v1746
    %v1752 = vmul.f32 1.0, %v1751
    %v1753 = vxor.u32 %v1652, 2147483648
    %v1754 = vmul.f32 %v1753, 1.442695
    %v1755 = vpow.pop %v1754
    %v1756 = vadd.f32 %v1755, 1.0
    %v1757 = vrcp.pop %v1756
    %v1758 = vmul.f32 %v1756, %v1757
    %v1759 = vsub.f32 1.0, %v1758
    %v1760 = vmul.f32 %v1757, %v1759
    %v1761 = vadd.f32 %v1757, %v1760
    %vm1762 = vweird.f32 %v1756
    %vm1763 = vweird.f32 %v1757
    %vm1764 = vmor %vm1762, %vm1763
    %v1765 = vsel %vm1764, %v1757, %v1761
    %v1766 = vand.u32 2147483647, %v1756
    %vm1767 = vcmp.eq.f32.partialorder %v1766, 8.507059e+37
    %v1768 = vand.u32 %v1756, 2147483648
    %v1769 = vor.u32 1.1754944e-38, %v1768
    %v1770 = vsel %vm1767, %v1769, %v1765
    %v1771 = vmul.f32 1.0, %v1770
    %v1772 = vtanh.pop %v1692
    %v1773 = vxor.u32 %v1732, 2147483648
    %v1774 = vmul.f32 %v1773, 1.442695
    %v1775 = vpow.pop %v1774
    %v1776 = vadd.f32 %v1775, 1.0
    %v1777 = vrcp.pop %v1776
    %v1778 = vmul.f32 %v1776, %v1777
    %v1779 = vsub.f32 1.0, %v1778
    %v1780 = vmul.f32 %v1777, %v1779
    %v1781 = vadd.f32 %v1777, %v1780
    %vm1782 = vweird.f32 %v1776
    %vm1783 = vweird.f32 %v1777
    %vm1784 = vmor %vm1782, %vm1783
    %v1785 = vsel %vm1784, %v1777, %v1781
    %v1786 = vand.u32 2147483647, %v1776
    %vm1787 = vcmp.eq.f32.partialorder %v1786, 8.507059e+37
    %v1788 = vand.u32 %v1776, 2147483648
    %v1789 = vor.u32 1.1754944e-38, %v1788
    %v1790 = vsel %vm1787, %v1789, %v1785
    %v1791 = vmul.f32 1.0, %v1790
    %v1792 = vmul.f32 %v1771, %v1417
    %v1793 = vmul.f32 %v1752, %v1772
    %v1794 = vadd.f32 %v1792, %v1793
    %v1795 = vtanh.pop %v1794
    %v1796 = vmul.f32 %v1791, %v1795
    %s1797 = scalar_lea.vmem [#allocation14], 24
    %1798 = vst [vmem:[%s1797] sm:$0xff] %v1796
    %s1799 = scalar_lea.vmem [#allocation6], 128
    %v1800 = vld [vmem:[%s1799] sm:$0xff]
    %v1801 = vld [vmem:[%s1799 + $0x8] sm:$0xff]
    %v1802 = vld [vmem:[%s1799 + $0x10] sm:$0xff]
    %v1803 = vld [vmem:[%s1799 + $0x18] sm:$0xff]
    %1804 = vmatpush.msra.mxu0 %v147
    %1805 = vmatpush.msra.mxu0 %v143
    %1806 = vmatpush.msra.mxu0 %v139
    %1807 = vmatpush.msra.mxu0 %v135
    %1808 = vmatpush.msra.mxu0 %v131
    %1809 = vmatpush.msra.mxu0 %v127
    %1810 = vmatpush.msra.mxu0 %v123
    %1811 = vmatpush.msra.mxu0 %v119
    %1812 = vmatpush.msra.mxu0 %v115
    %1813 = vmatpush.msra.mxu0 %v111
    %1814 = vmatpush.msra.mxu0 %v107
    %1815 = vmatpush.msra.mxu0 %v103
    %1816 = vmatpush.msra.mxu0 %v99
    %1817 = vmatpush.msra.mxu0 %v95
    %1818 = vmatpush.msra.mxu0 %v91
    %1819 = vmatpush.msra.mxu0 %v87
    %1820 = vmatmul.f32.gmra.mxu0 %v1573
    %v1821 = vpop.f32.mrf.mxu0
    %v1822 = vadd.f32 0.0, %v1821
    %1823 = vdwg.mxu0
    %1824 = vmatpush.msra.mxu0 %v148
    %1825 = vmatpush.msra.mxu0 %v144
    %1826 = vmatpush.msra.mxu0 %v140
    %1827 = vmatpush.msra.mxu0 %v136
    %1828 = vmatpush.msra.mxu0 %v132
    %1829 = vmatpush.msra.mxu0 %v128
    %1830 = vmatpush.msra.mxu0 %v124
    %1831 = vmatpush.msra.mxu0 %v120
    %1832 = vmatpush.msra.mxu0 %v116
    %1833 = vmatpush.msra.mxu0 %v112
    %1834 = vmatpush.msra.mxu0 %v108
    %1835 = vmatpush.msra.mxu0 %v104
    %1836 = vmatpush.msra.mxu0 %v100
    %1837 = vmatpush.msra.mxu0 %v96
    %1838 = vmatpush.msra.mxu0 %v92
    %1839 = vmatpush.msra.mxu0 %v88
    %1840 = vmatmul.f32.gmra.mxu0 %v1573
    %v1841 = vpop.f32.mrf.mxu0
    %v1842 = vadd.f32 0.0, %v1841
    %1843 = vdwg.mxu0
    %1844 = vmatpush.msra.mxu0 %v149
    %1845 = vmatpush.msra.mxu0 %v145
    %1846 = vmatpush.msra.mxu0 %v141
    %1847 = vmatpush.msra.mxu0 %v137
    %1848 = vmatpush.msra.mxu0 %v133
    %1849 = vmatpush.msra.mxu0 %v129
    %1850 = vmatpush.msra.mxu0 %v125
    %1851 = vmatpush.msra.mxu0 %v121
    %1852 = vmatpush.msra.mxu0 %v117
    %1853 = vmatpush.msra.mxu0 %v113
    %1854 = vmatpush.msra.mxu0 %v109
    %1855 = vmatpush.msra.mxu0 %v105
    %1856 = vmatpush.msra.mxu0 %v101
    %1857 = vmatpush.msra.mxu0 %v97
    %1858 = vmatpush.msra.mxu0 %v93
    %1859 = vmatpush.msra.mxu0 %v89
    %1860 = vmatmul.f32.gmra.mxu0 %v1573
    %v1861 = vpop.f32.mrf.mxu0
    %v1862 = vadd.f32 0.0, %v1861
    %1863 = vdwg.mxu0
    %1864 = vmatpush.msra.mxu0 %v150
    %1865 = vmatpush.msra.mxu0 %v146
    %1866 = vmatpush.msra.mxu0 %v142
    %1867 = vmatpush.msra.mxu0 %v138
    %1868 = vmatpush.msra.mxu0 %v134
    %1869 = vmatpush.msra.mxu0 %v130
    %1870 = vmatpush.msra.mxu0 %v126
    %1871 = vmatpush.msra.mxu0 %v122
    %1872 = vmatpush.msra.mxu0 %v118
    %1873 = vmatpush.msra.mxu0 %v114
    %1874 = vmatpush.msra.mxu0 %v110
    %1875 = vmatpush.msra.mxu0 %v106
    %1876 = vmatpush.msra.mxu0 %v102
    %1877 = vmatpush.msra.mxu0 %v98
    %1878 = vmatpush.msra.mxu0 %v94
    %1879 = vmatpush.msra.mxu0 %v90
    %1880 = vmatmul.f32.gmra.mxu0 %v1573
    %v1881 = vpop.f32.mrf.mxu0
    %v1882 = vadd.f32 0.0, %v1881
    %1883 = vdwg.mxu0
    %v1884 = vadd.f32 %v1800, %v1822
    %v1885 = vadd.f32 %v1801, %v1842
    %v1886 = vadd.f32 %v1802, %v1862
    %v1887 = vadd.f32 %v1803, %v1882
    %v1888 = vxor.u32 %v1884, 2147483648
    %v1889 = vmul.f32 %v1888, 1.442695
    %v1890 = vpow.pop %v1889
    %v1891 = vadd.f32 %v1890, 1.0
    %v1892 = vrcp.pop %v1891
    %v1893 = vmul.f32 %v1891, %v1892
    %v1894 = vsub.f32 1.0, %v1893
    %v1895 = vmul.f32 %v1892, %v1894
    %v1896 = vadd.f32 %v1892, %v1895
    %vm1897 = vweird.f32 %v1891
    %vm1898 = vweird.f32 %v1892
    %vm1899 = vmor %vm1897, %vm1898
    %v1900 = vsel %vm1899, %v1892, %v1896
    %v1901 = vand.u32 2147483647, %v1891
    %vm1902 = vcmp.eq.f32.partialorder %v1901, 8.507059e+37
    %v1903 = vand.u32 %v1891, 2147483648
    %v1904 = vor.u32 1.1754944e-38, %v1903
    %v1905 = vsel %vm1902, %v1904, %v1900
    %v1906 = vmul.f32 1.0, %v1905
    %v1907 = vxor.u32 %v1885, 2147483648
    %v1908 = vmul.f32 %v1907, 1.442695
    %v1909 = vpow.pop %v1908
    %v1910 = vadd.f32 %v1909, 1.0
    %v1911 = vrcp.pop %v1910
    %v1912 = vmul.f32 %v1910, %v1911
    %v1913 = vsub.f32 1.0, %v1912
    %v1914 = vmul.f32 %v1911, %v1913
    %v1915 = vadd.f32 %v1911, %v1914
    %vm1916 = vweird.f32 %v1910
    %vm1917 = vweird.f32 %v1911
    %vm1918 = vmor %vm1916, %vm1917
    %v1919 = vsel %vm1918, %v1911, %v1915
    %v1920 = vand.u32 2147483647, %v1910
    %vm1921 = vcmp.eq.f32.partialorder %v1920, 8.507059e+37
    %v1922 = vand.u32 %v1910, 2147483648
    %v1923 = vor.u32 1.1754944e-38, %v1922
    %v1924 = vsel %vm1921, %v1923, %v1919
    %v1925 = vmul.f32 1.0, %v1924
    %v1926 = vtanh.pop %v1886
    %v1927 = vxor.u32 %v1887, 2147483648
    %v1928 = vmul.f32 %v1927, 1.442695
    %v1929 = vpow.pop %v1928
    %v1930 = vadd.f32 %v1929, 1.0
    %v1931 = vrcp.pop %v1930
    %v1932 = vmul.f32 %v1930, %v1931
    %v1933 = vsub.f32 1.0, %v1932
    %v1934 = vmul.f32 %v1931, %v1933
    %v1935 = vadd.f32 %v1931, %v1934
    %vm1936 = vweird.f32 %v1930
    %vm1937 = vweird.f32 %v1931
    %vm1938 = vmor %vm1936, %vm1937
    %v1939 = vsel %vm1938, %v1931, %v1935
    %v1940 = vand.u32 2147483647, %v1930
    %vm1941 = vcmp.eq.f32.partialorder %v1940, 8.507059e+37
    %v1942 = vand.u32 %v1930, 2147483648
    %v1943 = vor.u32 1.1754944e-38, %v1942
    %v1944 = vsel %vm1941, %v1943, %v1939
    %v1945 = vmul.f32 1.0, %v1944
    %v1946 = vmul.f32 %v1925, %v1571
    %v1947 = vmul.f32 %v1906, %v1926
    %v1948 = vadd.f32 %v1946, %v1947
    %v1949 = vtanh.pop %v1948
    %v1950 = vmul.f32 %v1945, %v1949
    %1951 = vmatpush.msra.mxu0 %v211
    %1952 = vmatpush.msra.mxu0 %v207
    %1953 = vmatpush.msra.mxu0 %v203
    %1954 = vmatpush.msra.mxu0 %v199
    %1955 = vmatpush.msra.mxu0 %v195
    %1956 = vmatpush.msra.mxu0 %v191
    %1957 = vmatpush.msra.mxu0 %v187
    %1958 = vmatpush.msra.mxu0 %v183
    %1959 = vmatpush.msra.mxu0 %v179
    %1960 = vmatpush.msra.mxu0 %v175
    %1961 = vmatpush.msra.mxu0 %v171
    %1962 = vmatpush.msra.mxu0 %v167
    %1963 = vmatpush.msra.mxu0 %v163
    %1964 = vmatpush.msra.mxu0 %v159
    %1965 = vmatpush.msra.mxu0 %v155
    %1966 = vmatpush.msra.mxu0 %v151
    %1967 = vmatmul.f32.gmra.mxu0 %v1950
    %v1968 = vpop.f32.mrf.mxu0
    %v1969 = vadd.f32 %v436, %v1968
    %1970 = vdwg.mxu0
    %1971 = vmatpush.msra.mxu0 %v275
    %1972 = vmatpush.msra.mxu0 %v271
    %1973 = vmatpush.msra.mxu0 %v267
    %1974 = vmatpush.msra.mxu0 %v263
    %1975 = vmatpush.msra.mxu0 %v259
    %1976 = vmatpush.msra.mxu0 %v255
    %1977 = vmatpush.msra.mxu0 %v251
    %1978 = vmatpush.msra.mxu0 %v247
    %1979 = vmatpush.msra.mxu0 %v243
    %1980 = vmatpush.msra.mxu0 %v239
    %1981 = vmatpush.msra.mxu0 %v235
    %1982 = vmatpush.msra.mxu0 %v231
    %1983 = vmatpush.msra.mxu0 %v227
    %1984 = vmatpush.msra.mxu0 %v223
    %1985 = vmatpush.msra.mxu0 %v219
    %1986 = vmatpush.msra.mxu0 %v215
    %1987 = vmatmul.f32.gmra.mxu0 %v1796
    %v1988 = vpop.f32.mrf.mxu0
    %v1989 = vadd.f32 %v1969, %v1988
    %1990 = vdwg.mxu0
    %1991 = vmatpush.msra.mxu0 %v212
    %1992 = vmatpush.msra.mxu0 %v208
    %1993 = vmatpush.msra.mxu0 %v204
    %1994 = vmatpush.msra.mxu0 %v200
    %1995 = vmatpush.msra.mxu0 %v196
    %1996 = vmatpush.msra.mxu0 %v192
    %1997 = vmatpush.msra.mxu0 %v188
    %1998 = vmatpush.msra.mxu0 %v184
    %1999 = vmatpush.msra.mxu0 %v180
    %2000 = vmatpush.msra.mxu0 %v176
    %2001 = vmatpush.msra.mxu0 %v172
    %2002 = vmatpush.msra.mxu0 %v168
    %2003 = vmatpush.msra.mxu0 %v164
    %2004 = vmatpush.msra.mxu0 %v160
    %2005 = vmatpush.msra.mxu0 %v156
    %2006 = vmatpush.msra.mxu0 %v152
    %2007 = vmatmul.f32.gmra.mxu0 %v1950
    %v2008 = vpop.f32.mrf.mxu0
    %v2009 = vadd.f32 %v437, %v2008
    %2010 = vdwg.mxu0
    %2011 = vmatpush.msra.mxu0 %v276
    %2012 = vmatpush.msra.mxu0 %v272
    %2013 = vmatpush.msra.mxu0 %v268
    %2014 = vmatpush.msra.mxu0 %v264
    %2015 = vmatpush.msra.mxu0 %v260
    %2016 = vmatpush.msra.mxu0 %v256
    %2017 = vmatpush.msra.mxu0 %v252
    %2018 = vmatpush.msra.mxu0 %v248
    %2019 = vmatpush.msra.mxu0 %v244
    %2020 = vmatpush.msra.mxu0 %v240
    %2021 = vmatpush.msra.mxu0 %v236
    %2022 = vmatpush.msra.mxu0 %v232
    %2023 = vmatpush.msra.mxu0 %v228
    %2024 = vmatpush.msra.mxu0 %v224
    %2025 = vmatpush.msra.mxu0 %v220
    %2026 = vmatpush.msra.mxu0 %v216
    %2027 = vmatmul.f32.gmra.mxu0 %v1796
    %v2028 = vpop.f32.mrf.mxu0
    %v2029 = vadd.f32 %v2009, %v2028
    %2030 = vdwg.mxu0
    %2031 = vmatpush.msra.mxu0 %v213
    %2032 = vmatpush.msra.mxu0 %v209
    %2033 = vmatpush.msra.mxu0 %v205
    %2034 = vmatpush.msra.mxu0 %v201
    %2035 = vmatpush.msra.mxu0 %v197
    %2036 = vmatpush.msra.mxu0 %v193
    %2037 = vmatpush.msra.mxu0 %v189
    %2038 = vmatpush.msra.mxu0 %v185
    %2039 = vmatpush.msra.mxu0 %v181
    %2040 = vmatpush.msra.mxu0 %v177
    %2041 = vmatpush.msra.mxu0 %v173
    %2042 = vmatpush.msra.mxu0 %v169
    %2043 = vmatpush.msra.mxu0 %v165
    %2044 = vmatpush.msra.mxu0 %v161
    %2045 = vmatpush.msra.mxu0 %v157
    %2046 = vmatpush.msra.mxu0 %v153
    %2047 = vmatmul.f32.gmra.mxu0 %v1950
    %v2048 = vpop.f32.mrf.mxu0
    %v2049 = vadd.f32 %v438, %v2048
    %2050 = vdwg.mxu0
    %2051 = vmatpush.msra.mxu0 %v277
    %2052 = vmatpush.msra.mxu0 %v273
    %2053 = vmatpush.msra.mxu0 %v269
    %2054 = vmatpush.msra.mxu0 %v265
    %2055 = vmatpush.msra.mxu0 %v261
    %2056 = vmatpush.msra.mxu0 %v257
    %2057 = vmatpush.msra.mxu0 %v253
    %2058 = vmatpush.msra.mxu0 %v249
    %2059 = vmatpush.msra.mxu0 %v245
    %2060 = vmatpush.msra.mxu0 %v241
    %2061 = vmatpush.msra.mxu0 %v237
    %2062 = vmatpush.msra.mxu0 %v233
    %2063 = vmatpush.msra.mxu0 %v229
    %2064 = vmatpush.msra.mxu0 %v225
    %2065 = vmatpush.msra.mxu0 %v221
    %2066 = vmatpush.msra.mxu0 %v217
    %2067 = vmatmul.f32.gmra.mxu0 %v1796
    %v2068 = vpop.f32.mrf.mxu0
    %v2069 = vadd.f32 %v2049, %v2068
    %2070 = vdwg.mxu0
    %2071 = vmatpush.msra.mxu0 %v214
    %2072 = vmatpush.msra.mxu0 %v210
    %2073 = vmatpush.msra.mxu0 %v206
    %2074 = vmatpush.msra.mxu0 %v202
    %2075 = vmatpush.msra.mxu0 %v198
    %2076 = vmatpush.msra.mxu0 %v194
    %2077 = vmatpush.msra.mxu0 %v190
    %2078 = vmatpush.msra.mxu0 %v186
    %2079 = vmatpush.msra.mxu0 %v182
    %2080 = vmatpush.msra.mxu0 %v178
    %2081 = vmatpush.msra.mxu0 %v174
    %2082 = vmatpush.msra.mxu0 %v170
    %2083 = vmatpush.msra.mxu0 %v166
    %2084 = vmatpush.msra.mxu0 %v162
    %2085 = vmatpush.msra.mxu0 %v158
    %2086 = vmatpush.msra.mxu0 %v154
    %2087 = vmatmul.f32.gmra.mxu0 %v1950
    %v2088 = vpop.f32.mrf.mxu0
    %v2089 = vadd.f32 %v439, %v2088
    %2090 = vdwg.mxu0
    %2091 = vmatpush.msra.mxu0 %v278
    %2092 = vmatpush.msra.mxu0 %v274
    %2093 = vmatpush.msra.mxu0 %v270
    %2094 = vmatpush.msra.mxu0 %v266
    %2095 = vmatpush.msra.mxu0 %v262
    %2096 = vmatpush.msra.mxu0 %v258
    %2097 = vmatpush.msra.mxu0 %v254
    %2098 = vmatpush.msra.mxu0 %v250
    %2099 = vmatpush.msra.mxu0 %v246
    %2100 = vmatpush.msra.mxu0 %v242
    %2101 = vmatpush.msra.mxu0 %v238
    %2102 = vmatpush.msra.mxu0 %v234
    %2103 = vmatpush.msra.mxu0 %v230
    %2104 = vmatpush.msra.mxu0 %v226
    %2105 = vmatpush.msra.mxu0 %v222
    %2106 = vmatpush.msra.mxu0 %v218
    %2107 = vmatmul.f32.gmra.mxu0 %v1796
    %v2108 = vpop.f32.mrf.mxu0
    %v2109 = vadd.f32 %v2089, %v2108
    %2110 = vdwg.mxu0
    %v2111 = vxor.u32 %v1989, 2147483648
    %v2112 = vmul.f32 %v2111, 1.442695
    %v2113 = vpow.pop %v2112
    %v2114 = vadd.f32 %v2113, 1.0
    %v2115 = vrcp.pop %v2114
    %v2116 = vmul.f32 %v2114, %v2115
    %v2117 = vsub.f32 1.0, %v2116
    %v2118 = vmul.f32 %v2115, %v2117
    %v2119 = vadd.f32 %v2115, %v2118
    %vm2120 = vweird.f32 %v2114
    %vm2121 = vweird.f32 %v2115
    %vm2122 = vmor %vm2120, %vm2121
    %v2123 = vsel %vm2122, %v2115, %v2119
    %v2124 = vand.u32 2147483647, %v2114
    %vm2125 = vcmp.eq.f32.partialorder %v2124, 8.507059e+37
    %v2126 = vand.u32 %v2114, 2147483648
    %v2127 = vor.u32 1.1754944e-38, %v2126
    %v2128 = vsel %vm2125, %v2127, %v2123
    %v2129 = vmul.f32 1.0, %v2128
    %v2130 = vxor.u32 %v2029, 2147483648
    %v2131 = vmul.f32 %v2130, 1.442695
    %v2132 = vpow.pop %v2131
    %v2133 = vadd.f32 %v2132, 1.0
    %v2134 = vrcp.pop %v2133
    %v2135 = vmul.f32 %v2133, %v2134
    %v2136 = vsub.f32 1.0, %v2135
    %v2137 = vmul.f32 %v2134, %v2136
    %v2138 = vadd.f32 %v2134, %v2137
    %vm2139 = vweird.f32 %v2133
    %vm2140 = vweird.f32 %v2134
    %vm2141 = vmor %vm2139, %vm2140
    %v2142 = vsel %vm2141, %v2134, %v2138
    %v2143 = vand.u32 2147483647, %v2133
    %vm2144 = vcmp.eq.f32.partialorder %v2143, 8.507059e+37
    %v2145 = vand.u32 %v2133, 2147483648
    %v2146 = vor.u32 1.1754944e-38, %v2145
    %v2147 = vsel %vm2144, %v2146, %v2142
    %v2148 = vmul.f32 1.0, %v2147
    %v2149 = vtanh.pop %v2069
    %v2150 = vxor.u32 %v2109, 2147483648
    %v2151 = vmul.f32 %v2150, 1.442695
    %v2152 = vpow.pop %v2151
    %v2153 = vadd.f32 %v2152, 1.0
    %v2154 = vrcp.pop %v2153
    %v2155 = vmul.f32 %v2153, %v2154
    %v2156 = vsub.f32 1.0, %v2155
    %v2157 = vmul.f32 %v2154, %v2156
    %v2158 = vadd.f32 %v2154, %v2157
    %vm2159 = vweird.f32 %v2153
    %vm2160 = vweird.f32 %v2154
    %vm2161 = vmor %vm2159, %vm2160
    %v2162 = vsel %vm2161, %v2154, %v2158
    %v2163 = vand.u32 2147483647, %v2153
    %vm2164 = vcmp.eq.f32.partialorder %v2163, 8.507059e+37
    %v2165 = vand.u32 %v2153, 2147483648
    %v2166 = vor.u32 1.1754944e-38, %v2165
    %v2167 = vsel %vm2164, %v2166, %v2162
    %v2168 = vmul.f32 1.0, %v2167
    %v2169 = vmul.f32 %v2148, %v1794
    %v2170 = vmul.f32 %v2129, %v2149
    %v2171 = vadd.f32 %v2169, %v2170
    %v2172 = vtanh.pop %v2171
    %v2173 = vmul.f32 %v2168, %v2172
    %s2174 = scalar_lea.vmem [#allocation14], 32
    %2175 = vst [vmem:[%s2174] sm:$0xff] %v2173
    %s2176 = scalar_lea.vmem [#allocation6], 160
    %v2177 = vld [vmem:[%s2176] sm:$0xff]
    %v2178 = vld [vmem:[%s2176 + $0x8] sm:$0xff]
    %v2179 = vld [vmem:[%s2176 + $0x10] sm:$0xff]
    %v2180 = vld [vmem:[%s2176 + $0x18] sm:$0xff]
    %2181 = vmatpush.msra.mxu0 %v147
    %2182 = vmatpush.msra.mxu0 %v143
    %2183 = vmatpush.msra.mxu0 %v139
    %2184 = vmatpush.msra.mxu0 %v135
    %2185 = vmatpush.msra.mxu0 %v131
    %2186 = vmatpush.msra.mxu0 %v127
    %2187 = vmatpush.msra.mxu0 %v123
    %2188 = vmatpush.msra.mxu0 %v119
    %2189 = vmatpush.msra.mxu0 %v115
    %2190 = vmatpush.msra.mxu0 %v111
    %2191 = vmatpush.msra.mxu0 %v107
    %2192 = vmatpush.msra.mxu0 %v103
    %2193 = vmatpush.msra.mxu0 %v99
    %2194 = vmatpush.msra.mxu0 %v95
    %2195 = vmatpush.msra.mxu0 %v91
    %2196 = vmatpush.msra.mxu0 %v87
    %2197 = vmatmul.f32.gmra.mxu0 %v1950
    %v2198 = vpop.f32.mrf.mxu0
    %v2199 = vadd.f32 0.0, %v2198
    %2200 = vdwg.mxu0
    %2201 = vmatpush.msra.mxu0 %v148
    %2202 = vmatpush.msra.mxu0 %v144
    %2203 = vmatpush.msra.mxu0 %v140
    %2204 = vmatpush.msra.mxu0 %v136
    %2205 = vmatpush.msra.mxu0 %v132
    %2206 = vmatpush.msra.mxu0 %v128
    %2207 = vmatpush.msra.mxu0 %v124
    %2208 = vmatpush.msra.mxu0 %v120
    %2209 = vmatpush.msra.mxu0 %v116
    %2210 = vmatpush.msra.mxu0 %v112
    %2211 = vmatpush.msra.mxu0 %v108
    %2212 = vmatpush.msra.mxu0 %v104
    %2213 = vmatpush.msra.mxu0 %v100
    %2214 = vmatpush.msra.mxu0 %v96
    %2215 = vmatpush.msra.mxu0 %v92
    %2216 = vmatpush.msra.mxu0 %v88
    %2217 = vmatmul.f32.gmra.mxu0 %v1950
    %v2218 = vpop.f32.mrf.mxu0
    %v2219 = vadd.f32 0.0, %v2218
    %2220 = vdwg.mxu0
    %2221 = vmatpush.msra.mxu0 %v149
    %2222 = vmatpush.msra.mxu0 %v145
    %2223 = vmatpush.msra.mxu0 %v141
    %2224 = vmatpush.msra.mxu0 %v137
    %2225 = vmatpush.msra.mxu0 %v133
    %2226 = vmatpush.msra.mxu0 %v129
    %2227 = vmatpush.msra.mxu0 %v125
    %2228 = vmatpush.msra.mxu0 %v121
    %2229 = vmatpush.msra.mxu0 %v117
    %2230 = vmatpush.msra.mxu0 %v113
    %2231 = vmatpush.msra.mxu0 %v109
    %2232 = vmatpush.msra.mxu0 %v105
    %2233 = vmatpush.msra.mxu0 %v101
    %2234 = vmatpush.msra.mxu0 %v97
    %2235 = vmatpush.msra.mxu0 %v93
    %2236 = vmatpush.msra.mxu0 %v89
    %2237 = vmatmul.f32.gmra.mxu0 %v1950
    %v2238 = vpop.f32.mrf.mxu0
    %v2239 = vadd.f32 0.0, %v2238
    %2240 = vdwg.mxu0
    %2241 = vmatpush.msra.mxu0 %v150
    %2242 = vmatpush.msra.mxu0 %v146
    %2243 = vmatpush.msra.mxu0 %v142
    %2244 = vmatpush.msra.mxu0 %v138
    %2245 = vmatpush.msra.mxu0 %v134
    %2246 = vmatpush.msra.mxu0 %v130
    %2247 = vmatpush.msra.mxu0 %v126
    %2248 = vmatpush.msra.mxu0 %v122
    %2249 = vmatpush.msra.mxu0 %v118
    %2250 = vmatpush.msra.mxu0 %v114
    %2251 = vmatpush.msra.mxu0 %v110
    %2252 = vmatpush.msra.mxu0 %v106
    %2253 = vmatpush.msra.mxu0 %v102
    %2254 = vmatpush.msra.mxu0 %v98
    %2255 = vmatpush.msra.mxu0 %v94
    %2256 = vmatpush.msra.mxu0 %v90
    %2257 = vmatmul.f32.gmra.mxu0 %v1950
    %v2258 = vpop.f32.mrf.mxu0
    %v2259 = vadd.f32 0.0, %v2258
    %2260 = vdwg.mxu0
    %v2261 = vadd.f32 %v2177, %v2199
    %v2262 = vadd.f32 %v2178, %v2219
    %v2263 = vadd.f32 %v2179, %v2239
    %v2264 = vadd.f32 %v2180, %v2259
    %v2265 = vxor.u32 %v2261, 2147483648
    %v2266 = vmul.f32 %v2265, 1.442695
    %v2267 = vpow.pop %v2266
    %v2268 = vadd.f32 %v2267, 1.0
    %v2269 = vrcp.pop %v2268
    %v2270 = vmul.f32 %v2268, %v2269
    %v2271 = vsub.f32 1.0, %v2270
    %v2272 = vmul.f32 %v2269, %v2271
    %v2273 = vadd.f32 %v2269, %v2272
    %vm2274 = vweird.f32 %v2268
    %vm2275 = vweird.f32 %v2269
    %vm2276 = vmor %vm2274, %vm2275
    %v2277 = vsel %vm2276, %v2269, %v2273
    %v2278 = vand.u32 2147483647, %v2268
    %vm2279 = vcmp.eq.f32.partialorder %v2278, 8.507059e+37
    %v2280 = vand.u32 %v2268, 2147483648
    %v2281 = vor.u32 1.1754944e-38, %v2280
    %v2282 = vsel %vm2279, %v2281, %v2277
    %v2283 = vmul.f32 1.0, %v2282
    %v2284 = vxor.u32 %v2262, 2147483648
    %v2285 = vmul.f32 %v2284, 1.442695
    %v2286 = vpow.pop %v2285
    %v2287 = vadd.f32 %v2286, 1.0
    %v2288 = vrcp.pop %v2287
    %v2289 = vmul.f32 %v2287, %v2288
    %v2290 = vsub.f32 1.0, %v2289
    %v2291 = vmul.f32 %v2288, %v2290
    %v2292 = vadd.f32 %v2288, %v2291
    %vm2293 = vweird.f32 %v2287
    %vm2294 = vweird.f32 %v2288
    %vm2295 = vmor %vm2293, %vm2294
    %v2296 = vsel %vm2295, %v2288, %v2292
    %v2297 = vand.u32 2147483647, %v2287
    %vm2298 = vcmp.eq.f32.partialorder %v2297, 8.507059e+37
    %v2299 = vand.u32 %v2287, 2147483648
    %v2300 = vor.u32 1.1754944e-38, %v2299
    %v2301 = vsel %vm2298, %v2300, %v2296
    %v2302 = vmul.f32 1.0, %v2301
    %v2303 = vtanh.pop %v2263
    %v2304 = vxor.u32 %v2264, 2147483648
    %v2305 = vmul.f32 %v2304, 1.442695
    %v2306 = vpow.pop %v2305
    %v2307 = vadd.f32 %v2306, 1.0
    %v2308 = vrcp.pop %v2307
    %v2309 = vmul.f32 %v2307, %v2308
    %v2310 = vsub.f32 1.0, %v2309
    %v2311 = vmul.f32 %v2308, %v2310
    %v2312 = vadd.f32 %v2308, %v2311
    %vm2313 = vweird.f32 %v2307
    %vm2314 = vweird.f32 %v2308
    %vm2315 = vmor %vm2313, %vm2314
    %v2316 = vsel %vm2315, %v2308, %v2312
    %v2317 = vand.u32 2147483647, %v2307
    %vm2318 = vcmp.eq.f32.partialorder %v2317, 8.507059e+37
    %v2319 = vand.u32 %v2307, 2147483648
    %v2320 = vor.u32 1.1754944e-38, %v2319
    %v2321 = vsel %vm2318, %v2320, %v2316
    %v2322 = vmul.f32 1.0, %v2321
    %v2323 = vmul.f32 %v2302, %v1948
    %v2324 = vmul.f32 %v2283, %v2303
    %v2325 = vadd.f32 %v2323, %v2324
    %v2326 = vtanh.pop %v2325
    %v2327 = vmul.f32 %v2322, %v2326
    %2328 = vmatpush.msra.mxu0 %v211
    %2329 = vmatpush.msra.mxu0 %v207
    %2330 = vmatpush.msra.mxu0 %v203
    %2331 = vmatpush.msra.mxu0 %v199
    %2332 = vmatpush.msra.mxu0 %v195
    %2333 = vmatpush.msra.mxu0 %v191
    %2334 = vmatpush.msra.mxu0 %v187
    %2335 = vmatpush.msra.mxu0 %v183
    %2336 = vmatpush.msra.mxu0 %v179
    %2337 = vmatpush.msra.mxu0 %v175
    %2338 = vmatpush.msra.mxu0 %v171
    %2339 = vmatpush.msra.mxu0 %v167
    %2340 = vmatpush.msra.mxu0 %v163
    %2341 = vmatpush.msra.mxu0 %v159
    %2342 = vmatpush.msra.mxu0 %v155
    %2343 = vmatpush.msra.mxu0 %v151
    %2344 = vmatmul.f32.gmra.mxu0 %v2327
    %v2345 = vpop.f32.mrf.mxu0
    %v2346 = vadd.f32 %v436, %v2345
    %2347 = vdwg.mxu0
    %2348 = vmatpush.msra.mxu0 %v275
    %2349 = vmatpush.msra.mxu0 %v271
    %2350 = vmatpush.msra.mxu0 %v267
    %2351 = vmatpush.msra.mxu0 %v263
    %2352 = vmatpush.msra.mxu0 %v259
    %2353 = vmatpush.msra.mxu0 %v255
    %2354 = vmatpush.msra.mxu0 %v251
    %2355 = vmatpush.msra.mxu0 %v247
    %2356 = vmatpush.msra.mxu0 %v243
    %2357 = vmatpush.msra.mxu0 %v239
    %2358 = vmatpush.msra.mxu0 %v235
    %2359 = vmatpush.msra.mxu0 %v231
    %2360 = vmatpush.msra.mxu0 %v227
    %2361 = vmatpush.msra.mxu0 %v223
    %2362 = vmatpush.msra.mxu0 %v219
    %2363 = vmatpush.msra.mxu0 %v215
    %2364 = vmatmul.f32.gmra.mxu0 %v2173
    %v2365 = vpop.f32.mrf.mxu0
    %v2366 = vadd.f32 %v2346, %v2365
    %2367 = vdwg.mxu0
    %2368 = vmatpush.msra.mxu0 %v212
    %2369 = vmatpush.msra.mxu0 %v208
    %2370 = vmatpush.msra.mxu0 %v204
    %2371 = vmatpush.msra.mxu0 %v200
    %2372 = vmatpush.msra.mxu0 %v196
    %2373 = vmatpush.msra.mxu0 %v192
    %2374 = vmatpush.msra.mxu0 %v188
    %2375 = vmatpush.msra.mxu0 %v184
    %2376 = vmatpush.msra.mxu0 %v180
    %2377 = vmatpush.msra.mxu0 %v176
    %2378 = vmatpush.msra.mxu0 %v172
    %2379 = vmatpush.msra.mxu0 %v168
    %2380 = vmatpush.msra.mxu0 %v164
    %2381 = vmatpush.msra.mxu0 %v160
    %2382 = vmatpush.msra.mxu0 %v156
    %2383 = vmatpush.msra.mxu0 %v152
    %2384 = vmatmul.f32.gmra.mxu0 %v2327
    %v2385 = vpop.f32.mrf.mxu0
    %v2386 = vadd.f32 %v437, %v2385
    %2387 = vdwg.mxu0
    %2388 = vmatpush.msra.mxu0 %v276
    %2389 = vmatpush.msra.mxu0 %v272
    %2390 = vmatpush.msra.mxu0 %v268
    %2391 = vmatpush.msra.mxu0 %v264
    %2392 = vmatpush.msra.mxu0 %v260
    %2393 = vmatpush.msra.mxu0 %v256
    %2394 = vmatpush.msra.mxu0 %v252
    %2395 = vmatpush.msra.mxu0 %v248
    %2396 = vmatpush.msra.mxu0 %v244
    %2397 = vmatpush.msra.mxu0 %v240
    %2398 = vmatpush.msra.mxu0 %v236
    %2399 = vmatpush.msra.mxu0 %v232
    %2400 = vmatpush.msra.mxu0 %v228
    %2401 = vmatpush.msra.mxu0 %v224
    %2402 = vmatpush.msra.mxu0 %v220
    %2403 = vmatpush.msra.mxu0 %v216
    %2404 = vmatmul.f32.gmra.mxu0 %v2173
    %v2405 = vpop.f32.mrf.mxu0
    %v2406 = vadd.f32 %v2386, %v2405
    %2407 = vdwg.mxu0
    %2408 = vmatpush.msra.mxu0 %v213
    %2409 = vmatpush.msra.mxu0 %v209
    %2410 = vmatpush.msra.mxu0 %v205
    %2411 = vmatpush.msra.mxu0 %v201
    %2412 = vmatpush.msra.mxu0 %v197
    %2413 = vmatpush.msra.mxu0 %v193
    %2414 = vmatpush.msra.mxu0 %v189
    %2415 = vmatpush.msra.mxu0 %v185
    %2416 = vmatpush.msra.mxu0 %v181
    %2417 = vmatpush.msra.mxu0 %v177
    %2418 = vmatpush.msra.mxu0 %v173
    %2419 = vmatpush.msra.mxu0 %v169
    %2420 = vmatpush.msra.mxu0 %v165
    %2421 = vmatpush.msra.mxu0 %v161
    %2422 = vmatpush.msra.mxu0 %v157
    %2423 = vmatpush.msra.mxu0 %v153
    %2424 = vmatmul.f32.gmra.mxu0 %v2327
    %v2425 = vpop.f32.mrf.mxu0
    %v2426 = vadd.f32 %v438, %v2425
    %2427 = vdwg.mxu0
    %2428 = vmatpush.msra.mxu0 %v277
    %2429 = vmatpush.msra.mxu0 %v273
    %2430 = vmatpush.msra.mxu0 %v269
    %2431 = vmatpush.msra.mxu0 %v265
    %2432 = vmatpush.msra.mxu0 %v261
    %2433 = vmatpush.msra.mxu0 %v257
    %2434 = vmatpush.msra.mxu0 %v253
    %2435 = vmatpush.msra.mxu0 %v249
    %2436 = vmatpush.msra.mxu0 %v245
    %2437 = vmatpush.msra.mxu0 %v241
    %2438 = vmatpush.msra.mxu0 %v237
    %2439 = vmatpush.msra.mxu0 %v233
    %2440 = vmatpush.msra.mxu0 %v229
    %2441 = vmatpush.msra.mxu0 %v225
    %2442 = vmatpush.msra.mxu0 %v221
    %2443 = vmatpush.msra.mxu0 %v217
    %2444 = vmatmul.f32.gmra.mxu0 %v2173
    %v2445 = vpop.f32.mrf.mxu0
    %v2446 = vadd.f32 %v2426, %v2445
    %2447 = vdwg.mxu0
    %2448 = vmatpush.msra.mxu0 %v214
    %2449 = vmatpush.msra.mxu0 %v210
    %2450 = vmatpush.msra.mxu0 %v206
    %2451 = vmatpush.msra.mxu0 %v202
    %2452 = vmatpush.msra.mxu0 %v198
    %2453 = vmatpush.msra.mxu0 %v194
    %2454 = vmatpush.msra.mxu0 %v190
    %2455 = vmatpush.msra.mxu0 %v186
    %2456 = vmatpush.msra.mxu0 %v182
    %2457 = vmatpush.msra.mxu0 %v178
    %2458 = vmatpush.msra.mxu0 %v174
    %2459 = vmatpush.msra.mxu0 %v170
    %2460 = vmatpush.msra.mxu0 %v166
    %2461 = vmatpush.msra.mxu0 %v162
    %2462 = vmatpush.msra.mxu0 %v158
    %2463 = vmatpush.msra.mxu0 %v154
    %2464 = vmatmul.f32.gmra.mxu0 %v2327
    %v2465 = vpop.f32.mrf.mxu0
    %v2466 = vadd.f32 %v439, %v2465
    %2467 = vdwg.mxu0
    %2468 = vmatpush.msra.mxu0 %v278
    %2469 = vmatpush.msra.mxu0 %v274
    %2470 = vmatpush.msra.mxu0 %v270
    %2471 = vmatpush.msra.mxu0 %v266
    %2472 = vmatpush.msra.mxu0 %v262
    %2473 = vmatpush.msra.mxu0 %v258
    %2474 = vmatpush.msra.mxu0 %v254
    %2475 = vmatpush.msra.mxu0 %v250
    %2476 = vmatpush.msra.mxu0 %v246
    %2477 = vmatpush.msra.mxu0 %v242
    %2478 = vmatpush.msra.mxu0 %v238
    %2479 = vmatpush.msra.mxu0 %v234
    %2480 = vmatpush.msra.mxu0 %v230
    %2481 = vmatpush.msra.mxu0 %v226
    %2482 = vmatpush.msra.mxu0 %v222
    %2483 = vmatpush.msra.mxu0 %v218
    %2484 = vmatmul.f32.gmra.mxu0 %v2173
    %v2485 = vpop.f32.mrf.mxu0
    %v2486 = vadd.f32 %v2466, %v2485
    %2487 = vdwg.mxu0
    %v2488 = vxor.u32 %v2366, 2147483648
    %v2489 = vmul.f32 %v2488, 1.442695
    %v2490 = vpow.pop %v2489
    %v2491 = vadd.f32 %v2490, 1.0
    %v2492 = vrcp.pop %v2491
    %v2493 = vmul.f32 %v2491, %v2492
    %v2494 = vsub.f32 1.0, %v2493
    %v2495 = vmul.f32 %v2492, %v2494
    %v2496 = vadd.f32 %v2492, %v2495
    %vm2497 = vweird.f32 %v2491
    %vm2498 = vweird.f32 %v2492
    %vm2499 = vmor %vm2497, %vm2498
    %v2500 = vsel %vm2499, %v2492, %v2496
    %v2501 = vand.u32 2147483647, %v2491
    %vm2502 = vcmp.eq.f32.partialorder %v2501, 8.507059e+37
    %v2503 = vand.u32 %v2491, 2147483648
    %v2504 = vor.u32 1.1754944e-38, %v2503
    %v2505 = vsel %vm2502, %v2504, %v2500
    %v2506 = vmul.f32 1.0, %v2505
    %v2507 = vxor.u32 %v2406, 2147483648
    %v2508 = vmul.f32 %v2507, 1.442695
    %v2509 = vpow.pop %v2508
    %v2510 = vadd.f32 %v2509, 1.0
    %v2511 = vrcp.pop %v2510
    %v2512 = vmul.f32 %v2510, %v2511
    %v2513 = vsub.f32 1.0, %v2512
    %v2514 = vmul.f32 %v2511, %v2513
    %v2515 = vadd.f32 %v2511, %v2514
    %vm2516 = vweird.f32 %v2510
    %vm2517 = vweird.f32 %v2511
    %vm2518 = vmor %vm2516, %vm2517
    %v2519 = vsel %vm2518, %v2511, %v2515
    %v2520 = vand.u32 2147483647, %v2510
    %vm2521 = vcmp.eq.f32.partialorder %v2520, 8.507059e+37
    %v2522 = vand.u32 %v2510, 2147483648
    %v2523 = vor.u32 1.1754944e-38, %v2522
    %v2524 = vsel %vm2521, %v2523, %v2519
    %v2525 = vmul.f32 1.0, %v2524
    %v2526 = vtanh.pop %v2446
    %v2527 = vxor.u32 %v2486, 2147483648
    %v2528 = vmul.f32 %v2527, 1.442695
    %v2529 = vpow.pop %v2528
    %v2530 = vadd.f32 %v2529, 1.0
    %v2531 = vrcp.pop %v2530
    %v2532 = vmul.f32 %v2530, %v2531
    %v2533 = vsub.f32 1.0, %v2532
    %v2534 = vmul.f32 %v2531, %v2533
    %v2535 = vadd.f32 %v2531, %v2534
    %vm2536 = vweird.f32 %v2530
    %vm2537 = vweird.f32 %v2531
    %vm2538 = vmor %vm2536, %vm2537
    %v2539 = vsel %vm2538, %v2531, %v2535
    %v2540 = vand.u32 2147483647, %v2530
    %vm2541 = vcmp.eq.f32.partialorder %v2540, 8.507059e+37
    %v2542 = vand.u32 %v2530, 2147483648
    %v2543 = vor.u32 1.1754944e-38, %v2542
    %v2544 = vsel %vm2541, %v2543, %v2539
    %v2545 = vmul.f32 1.0, %v2544
    %v2546 = vmul.f32 %v2525, %v2171
    %v2547 = vmul.f32 %v2506, %v2526
    %v2548 = vadd.f32 %v2546, %v2547
    %v2549 = vtanh.pop %v2548
    %v2550 = vmul.f32 %v2545, %v2549
    %s2551 = scalar_lea.vmem [#allocation14], 40
    %2552 = vst [vmem:[%s2551] sm:$0xff] %v2550
    %s2553 = scalar_lea.vmem [#allocation6], 192
    %v2554 = vld [vmem:[%s2553] sm:$0xff]
    %v2555 = vld [vmem:[%s2553 + $0x8] sm:$0xff]
    %v2556 = vld [vmem:[%s2553 + $0x10] sm:$0xff]
    %v2557 = vld [vmem:[%s2553 + $0x18] sm:$0xff]
    %2558 = vmatpush.msra.mxu0 %v147
    %2559 = vmatpush.msra.mxu0 %v143
    %2560 = vmatpush.msra.mxu0 %v139
    %2561 = vmatpush.msra.mxu0 %v135
    %2562 = vmatpush.msra.mxu0 %v131
    %2563 = vmatpush.msra.mxu0 %v127
    %2564 = vmatpush.msra.mxu0 %v123
    %2565 = vmatpush.msra.mxu0 %v119
    %2566 = vmatpush.msra.mxu0 %v115
    %2567 = vmatpush.msra.mxu0 %v111
    %2568 = vmatpush.msra.mxu0 %v107
    %2569 = vmatpush.msra.mxu0 %v103
    %2570 = vmatpush.msra.mxu0 %v99
    %2571 = vmatpush.msra.mxu0 %v95
    %2572 = vmatpush.msra.mxu0 %v91
    %2573 = vmatpush.msra.mxu0 %v87
    %2574 = vmatmul.f32.gmra.mxu0 %v2327
    %v2575 = vpop.f32.mrf.mxu0
    %v2576 = vadd.f32 0.0, %v2575
    %2577 = vdwg.mxu0
    %2578 = vmatpush.msra.mxu0 %v148
    %2579 = vmatpush.msra.mxu0 %v144
    %2580 = vmatpush.msra.mxu0 %v140
    %2581 = vmatpush.msra.mxu0 %v136
    %2582 = vmatpush.msra.mxu0 %v132
    %2583 = vmatpush.msra.mxu0 %v128
    %2584 = vmatpush.msra.mxu0 %v124
    %2585 = vmatpush.msra.mxu0 %v120
    %2586 = vmatpush.msra.mxu0 %v116
    %2587 = vmatpush.msra.mxu0 %v112
    %2588 = vmatpush.msra.mxu0 %v108
    %2589 = vmatpush.msra.mxu0 %v104
    %2590 = vmatpush.msra.mxu0 %v100
    %2591 = vmatpush.msra.mxu0 %v96
    %2592 = vmatpush.msra.mxu0 %v92
    %2593 = vmatpush.msra.mxu0 %v88
    %2594 = vmatmul.f32.gmra.mxu0 %v2327
    %v2595 = vpop.f32.mrf.mxu0
    %v2596 = vadd.f32 0.0, %v2595
    %2597 = vdwg.mxu0
    %2598 = vmatpush.msra.mxu0 %v149
    %2599 = vmatpush.msra.mxu0 %v145
    %2600 = vmatpush.msra.mxu0 %v141
    %2601 = vmatpush.msra.mxu0 %v137
    %2602 = vmatpush.msra.mxu0 %v133
    %2603 = vmatpush.msra.mxu0 %v129
    %2604 = vmatpush.msra.mxu0 %v125
    %2605 = vmatpush.msra.mxu0 %v121
    %2606 = vmatpush.msra.mxu0 %v117
    %2607 = vmatpush.msra.mxu0 %v113
    %2608 = vmatpush.msra.mxu0 %v109
    %2609 = vmatpush.msra.mxu0 %v105
    %2610 = vmatpush.msra.mxu0 %v101
    %2611 = vmatpush.msra.mxu0 %v97
    %2612 = vmatpush.msra.mxu0 %v93
    %2613 = vmatpush.msra.mxu0 %v89
    %2614 = vmatmul.f32.gmra.mxu0 %v2327
    %v2615 = vpop.f32.mrf.mxu0
    %v2616 = vadd.f32 0.0, %v2615
    %2617 = vdwg.mxu0
    %2618 = vmatpush.msra.mxu0 %v150
    %2619 = vmatpush.msra.mxu0 %v146
    %2620 = vmatpush.msra.mxu0 %v142
    %2621 = vmatpush.msra.mxu0 %v138
    %2622 = vmatpush.msra.mxu0 %v134
    %2623 = vmatpush.msra.mxu0 %v130
    %2624 = vmatpush.msra.mxu0 %v126
    %2625 = vmatpush.msra.mxu0 %v122
    %2626 = vmatpush.msra.mxu0 %v118
    %2627 = vmatpush.msra.mxu0 %v114
    %2628 = vmatpush.msra.mxu0 %v110
    %2629 = vmatpush.msra.mxu0 %v106
    %2630 = vmatpush.msra.mxu0 %v102
    %2631 = vmatpush.msra.mxu0 %v98
    %2632 = vmatpush.msra.mxu0 %v94
    %2633 = vmatpush.msra.mxu0 %v90
    %2634 = vmatmul.f32.gmra.mxu0 %v2327
    %v2635 = vpop.f32.mrf.mxu0
    %v2636 = vadd.f32 0.0, %v2635
    %2637 = vdwg.mxu0
    %v2638 = vadd.f32 %v2554, %v2576
    %v2639 = vadd.f32 %v2555, %v2596
    %v2640 = vadd.f32 %v2556, %v2616
    %v2641 = vadd.f32 %v2557, %v2636
    %v2642 = vxor.u32 %v2638, 2147483648
    %v2643 = vmul.f32 %v2642, 1.442695
    %v2644 = vpow.pop %v2643
    %v2645 = vadd.f32 %v2644, 1.0
    %v2646 = vrcp.pop %v2645
    %v2647 = vmul.f32 %v2645, %v2646
    %v2648 = vsub.f32 1.0, %v2647
    %v2649 = vmul.f32 %v2646, %v2648
    %v2650 = vadd.f32 %v2646, %v2649
    %vm2651 = vweird.f32 %v2645
    %vm2652 = vweird.f32 %v2646
    %vm2653 = vmor %vm2651, %vm2652
    %v2654 = vsel %vm2653, %v2646, %v2650
    %v2655 = vand.u32 2147483647, %v2645
    %vm2656 = vcmp.eq.f32.partialorder %v2655, 8.507059e+37
    %v2657 = vand.u32 %v2645, 2147483648
    %v2658 = vor.u32 1.1754944e-38, %v2657
    %v2659 = vsel %vm2656, %v2658, %v2654
    %v2660 = vmul.f32 1.0, %v2659
    %v2661 = vxor.u32 %v2639, 2147483648
    %v2662 = vmul.f32 %v2661, 1.442695
    %v2663 = vpow.pop %v2662
    %v2664 = vadd.f32 %v2663, 1.0
    %v2665 = vrcp.pop %v2664
    %v2666 = vmul.f32 %v2664, %v2665
    %v2667 = vsub.f32 1.0, %v2666
    %v2668 = vmul.f32 %v2665, %v2667
    %v2669 = vadd.f32 %v2665, %v2668
    %vm2670 = vweird.f32 %v2664
    %vm2671 = vweird.f32 %v2665
    %vm2672 = vmor %vm2670, %vm2671
    %v2673 = vsel %vm2672, %v2665, %v2669
    %v2674 = vand.u32 2147483647, %v2664
    %vm2675 = vcmp.eq.f32.partialorder %v2674, 8.507059e+37
    %v2676 = vand.u32 %v2664, 2147483648
    %v2677 = vor.u32 1.1754944e-38, %v2676
    %v2678 = vsel %vm2675, %v2677, %v2673
    %v2679 = vmul.f32 1.0, %v2678
    %v2680 = vtanh.pop %v2640
    %v2681 = vxor.u32 %v2641, 2147483648
    %v2682 = vmul.f32 %v2681, 1.442695
    %v2683 = vpow.pop %v2682
    %v2684 = vadd.f32 %v2683, 1.0
    %v2685 = vrcp.pop %v2684
    %v2686 = vmul.f32 %v2684, %v2685
    %v2687 = vsub.f32 1.0, %v2686
    %v2688 = vmul.f32 %v2685, %v2687
    %v2689 = vadd.f32 %v2685, %v2688
    %vm2690 = vweird.f32 %v2684
    %vm2691 = vweird.f32 %v2685
    %vm2692 = vmor %vm2690, %vm2691
    %v2693 = vsel %vm2692, %v2685, %v2689
    %v2694 = vand.u32 2147483647, %v2684
    %vm2695 = vcmp.eq.f32.partialorder %v2694, 8.507059e+37
    %v2696 = vand.u32 %v2684, 2147483648
    %v2697 = vor.u32 1.1754944e-38, %v2696
    %v2698 = vsel %vm2695, %v2697, %v2693
    %v2699 = vmul.f32 1.0, %v2698
    %v2700 = vmul.f32 %v2679, %v2325
    %v2701 = vmul.f32 %v2660, %v2680
    %v2702 = vadd.f32 %v2700, %v2701
    %v2703 = vtanh.pop %v2702
    %v2704 = vmul.f32 %v2699, %v2703
    %2705 = vmatpush.msra.mxu0 %v211
    %2706 = vmatpush.msra.mxu0 %v207
    %2707 = vmatpush.msra.mxu0 %v203
    %2708 = vmatpush.msra.mxu0 %v199
    %2709 = vmatpush.msra.mxu0 %v195
    %2710 = vmatpush.msra.mxu0 %v191
    %2711 = vmatpush.msra.mxu0 %v187
    %2712 = vmatpush.msra.mxu0 %v183
    %2713 = vmatpush.msra.mxu0 %v179
    %2714 = vmatpush.msra.mxu0 %v175
    %2715 = vmatpush.msra.mxu0 %v171
    %2716 = vmatpush.msra.mxu0 %v167
    %2717 = vmatpush.msra.mxu0 %v163
    %2718 = vmatpush.msra.mxu0 %v159
    %2719 = vmatpush.msra.mxu0 %v155
    %2720 = vmatpush.msra.mxu0 %v151
    %2721 = vmatmul.f32.gmra.mxu0 %v2704
    %v2722 = vpop.f32.mrf.mxu0
    %v2723 = vadd.f32 %v436, %v2722
    %2724 = vdwg.mxu0
    %2725 = vmatpush.msra.mxu0 %v275
    %2726 = vmatpush.msra.mxu0 %v271
    %2727 = vmatpush.msra.mxu0 %v267
    %2728 = vmatpush.msra.mxu0 %v263
    %2729 = vmatpush.msra.mxu0 %v259
    %2730 = vmatpush.msra.mxu0 %v255
    %2731 = vmatpush.msra.mxu0 %v251
    %2732 = vmatpush.msra.mxu0 %v247
    %2733 = vmatpush.msra.mxu0 %v243
    %2734 = vmatpush.msra.mxu0 %v239
    %2735 = vmatpush.msra.mxu0 %v235
    %2736 = vmatpush.msra.mxu0 %v231
    %2737 = vmatpush.msra.mxu0 %v227
    %2738 = vmatpush.msra.mxu0 %v223
    %2739 = vmatpush.msra.mxu0 %v219
    %2740 = vmatpush.msra.mxu0 %v215
    %2741 = vmatmul.f32.gmra.mxu0 %v2550
    %v2742 = vpop.f32.mrf.mxu0
    %v2743 = vadd.f32 %v2723, %v2742
    %2744 = vdwg.mxu0
    %2745 = vmatpush.msra.mxu0 %v212
    %2746 = vmatpush.msra.mxu0 %v208
    %2747 = vmatpush.msra.mxu0 %v204
    %2748 = vmatpush.msra.mxu0 %v200
    %2749 = vmatpush.msra.mxu0 %v196
    %2750 = vmatpush.msra.mxu0 %v192
    %2751 = vmatpush.msra.mxu0 %v188
    %2752 = vmatpush.msra.mxu0 %v184
    %2753 = vmatpush.msra.mxu0 %v180
    %2754 = vmatpush.msra.mxu0 %v176
    %2755 = vmatpush.msra.mxu0 %v172
    %2756 = vmatpush.msra.mxu0 %v168
    %2757 = vmatpush.msra.mxu0 %v164
    %2758 = vmatpush.msra.mxu0 %v160
    %2759 = vmatpush.msra.mxu0 %v156
    %2760 = vmatpush.msra.mxu0 %v152
    %2761 = vmatmul.f32.gmra.mxu0 %v2704
    %v2762 = vpop.f32.mrf.mxu0
    %v2763 = vadd.f32 %v437, %v2762
    %2764 = vdwg.mxu0
    %2765 = vmatpush.msra.mxu0 %v276
    %2766 = vmatpush.msra.mxu0 %v272
    %2767 = vmatpush.msra.mxu0 %v268
    %2768 = vmatpush.msra.mxu0 %v264
    %2769 = vmatpush.msra.mxu0 %v260
    %2770 = vmatpush.msra.mxu0 %v256
    %2771 = vmatpush.msra.mxu0 %v252
    %2772 = vmatpush.msra.mxu0 %v248
    %2773 = vmatpush.msra.mxu0 %v244
    %2774 = vmatpush.msra.mxu0 %v240
    %2775 = vmatpush.msra.mxu0 %v236
    %2776 = vmatpush.msra.mxu0 %v232
    %2777 = vmatpush.msra.mxu0 %v228
    %2778 = vmatpush.msra.mxu0 %v224
    %2779 = vmatpush.msra.mxu0 %v220
    %2780 = vmatpush.msra.mxu0 %v216
    %2781 = vmatmul.f32.gmra.mxu0 %v2550
    %v2782 = vpop.f32.mrf.mxu0
    %v2783 = vadd.f32 %v2763, %v2782
    %2784 = vdwg.mxu0
    %2785 = vmatpush.msra.mxu0 %v213
    %2786 = vmatpush.msra.mxu0 %v209
    %2787 = vmatpush.msra.mxu0 %v205
    %2788 = vmatpush.msra.mxu0 %v201
    %2789 = vmatpush.msra.mxu0 %v197
    %2790 = vmatpush.msra.mxu0 %v193
    %2791 = vmatpush.msra.mxu0 %v189
    %2792 = vmatpush.msra.mxu0 %v185
    %2793 = vmatpush.msra.mxu0 %v181
    %2794 = vmatpush.msra.mxu0 %v177
    %2795 = vmatpush.msra.mxu0 %v173
    %2796 = vmatpush.msra.mxu0 %v169
    %2797 = vmatpush.msra.mxu0 %v165
    %2798 = vmatpush.msra.mxu0 %v161
    %2799 = vmatpush.msra.mxu0 %v157
    %2800 = vmatpush.msra.mxu0 %v153
    %2801 = vmatmul.f32.gmra.mxu0 %v2704
    %v2802 = vpop.f32.mrf.mxu0
    %v2803 = vadd.f32 %v438, %v2802
    %2804 = vdwg.mxu0
    %2805 = vmatpush.msra.mxu0 %v277
    %2806 = vmatpush.msra.mxu0 %v273
    %2807 = vmatpush.msra.mxu0 %v269
    %2808 = vmatpush.msra.mxu0 %v265
    %2809 = vmatpush.msra.mxu0 %v261
    %2810 = vmatpush.msra.mxu0 %v257
    %2811 = vmatpush.msra.mxu0 %v253
    %2812 = vmatpush.msra.mxu0 %v249
    %2813 = vmatpush.msra.mxu0 %v245
    %2814 = vmatpush.msra.mxu0 %v241
    %2815 = vmatpush.msra.mxu0 %v237
    %2816 = vmatpush.msra.mxu0 %v233
    %2817 = vmatpush.msra.mxu0 %v229
    %2818 = vmatpush.msra.mxu0 %v225
    %2819 = vmatpush.msra.mxu0 %v221
    %2820 = vmatpush.msra.mxu0 %v217
    %2821 = vmatmul.f32.gmra.mxu0 %v2550
    %v2822 = vpop.f32.mrf.mxu0
    %v2823 = vadd.f32 %v2803, %v2822
    %2824 = vdwg.mxu0
    %2825 = vmatpush.msra.mxu0 %v214
    %2826 = vmatpush.msra.mxu0 %v210
    %2827 = vmatpush.msra.mxu0 %v206
    %2828 = vmatpush.msra.mxu0 %v202
    %2829 = vmatpush.msra.mxu0 %v198
    %2830 = vmatpush.msra.mxu0 %v194
    %2831 = vmatpush.msra.mxu0 %v190
    %2832 = vmatpush.msra.mxu0 %v186
    %2833 = vmatpush.msra.mxu0 %v182
    %2834 = vmatpush.msra.mxu0 %v178
    %2835 = vmatpush.msra.mxu0 %v174
    %2836 = vmatpush.msra.mxu0 %v170
    %2837 = vmatpush.msra.mxu0 %v166
    %2838 = vmatpush.msra.mxu0 %v162
    %2839 = vmatpush.msra.mxu0 %v158
    %2840 = vmatpush.msra.mxu0 %v154
    %2841 = vmatmul.f32.gmra.mxu0 %v2704
    %v2842 = vpop.f32.mrf.mxu0
    %v2843 = vadd.f32 %v439, %v2842
    %2844 = vdwg.mxu0
    %2845 = vmatpush.msra.mxu0 %v278
    %2846 = vmatpush.msra.mxu0 %v274
    %2847 = vmatpush.msra.mxu0 %v270
    %2848 = vmatpush.msra.mxu0 %v266
    %2849 = vmatpush.msra.mxu0 %v262
    %2850 = vmatpush.msra.mxu0 %v258
    %2851 = vmatpush.msra.mxu0 %v254
    %2852 = vmatpush.msra.mxu0 %v250
    %2853 = vmatpush.msra.mxu0 %v246
    %2854 = vmatpush.msra.mxu0 %v242
    %2855 = vmatpush.msra.mxu0 %v238
    %2856 = vmatpush.msra.mxu0 %v234
    %2857 = vmatpush.msra.mxu0 %v230
    %2858 = vmatpush.msra.mxu0 %v226
    %2859 = vmatpush.msra.mxu0 %v222
    %2860 = vmatpush.msra.mxu0 %v218
    %2861 = vmatmul.f32.gmra.mxu0 %v2550
    %v2862 = vpop.f32.mrf.mxu0
    %v2863 = vadd.f32 %v2843, %v2862
    %2864 = vdwg.mxu0
    %v2865 = vxor.u32 %v2743, 2147483648
    %v2866 = vmul.f32 %v2865, 1.442695
    %v2867 = vpow.pop %v2866
    %v2868 = vadd.f32 %v2867, 1.0
    %v2869 = vrcp.pop %v2868
    %v2870 = vmul.f32 %v2868, %v2869
    %v2871 = vsub.f32 1.0, %v2870
    %v2872 = vmul.f32 %v2869, %v2871
    %v2873 = vadd.f32 %v2869, %v2872
    %vm2874 = vweird.f32 %v2868
    %vm2875 = vweird.f32 %v2869
    %vm2876 = vmor %vm2874, %vm2875
    %v2877 = vsel %vm2876, %v2869, %v2873
    %v2878 = vand.u32 2147483647, %v2868
    %vm2879 = vcmp.eq.f32.partialorder %v2878, 8.507059e+37
    %v2880 = vand.u32 %v2868, 2147483648
    %v2881 = vor.u32 1.1754944e-38, %v2880
    %v2882 = vsel %vm2879, %v2881, %v2877
    %v2883 = vmul.f32 1.0, %v2882
    %v2884 = vxor.u32 %v2783, 2147483648
    %v2885 = vmul.f32 %v2884, 1.442695
    %v2886 = vpow.pop %v2885
    %v2887 = vadd.f32 %v2886, 1.0
    %v2888 = vrcp.pop %v2887
    %v2889 = vmul.f32 %v2887, %v2888
    %v2890 = vsub.f32 1.0, %v2889
    %v2891 = vmul.f32 %v2888, %v2890
    %v2892 = vadd.f32 %v2888, %v2891
    %vm2893 = vweird.f32 %v2887
    %vm2894 = vweird.f32 %v2888
    %vm2895 = vmor %vm2893, %vm2894
    %v2896 = vsel %vm2895, %v2888, %v2892
    %v2897 = vand.u32 2147483647, %v2887
    %vm2898 = vcmp.eq.f32.partialorder %v2897, 8.507059e+37
    %v2899 = vand.u32 %v2887, 2147483648
    %v2900 = vor.u32 1.1754944e-38, %v2899
    %v2901 = vsel %vm2898, %v2900, %v2896
    %v2902 = vmul.f32 1.0, %v2901
    %v2903 = vtanh.pop %v2823
    %v2904 = vxor.u32 %v2863, 2147483648
    %v2905 = vmul.f32 %v2904, 1.442695
    %v2906 = vpow.pop %v2905
    %v2907 = vadd.f32 %v2906, 1.0
    %v2908 = vrcp.pop %v2907
    %v2909 = vmul.f32 %v2907, %v2908
    %v2910 = vsub.f32 1.0, %v2909
    %v2911 = vmul.f32 %v2908, %v2910
    %v2912 = vadd.f32 %v2908, %v2911
    %vm2913 = vweird.f32 %v2907
    %vm2914 = vweird.f32 %v2908
    %vm2915 = vmor %vm2913, %vm2914
    %v2916 = vsel %vm2915, %v2908, %v2912
    %v2917 = vand.u32 2147483647, %v2907
    %vm2918 = vcmp.eq.f32.partialorder %v2917, 8.507059e+37
    %v2919 = vand.u32 %v2907, 2147483648
    %v2920 = vor.u32 1.1754944e-38, %v2919
    %v2921 = vsel %vm2918, %v2920, %v2916
    %v2922 = vmul.f32 1.0, %v2921
    %v2923 = vmul.f32 %v2902, %v2548
    %v2924 = vmul.f32 %v2883, %v2903
    %v2925 = vadd.f32 %v2923, %v2924
    %v2926 = vtanh.pop %v2925
    %v2927 = vmul.f32 %v2922, %v2926
    %s2928 = scalar_lea.vmem [#allocation14], 48
    %2929 = vst [vmem:[%s2928] sm:$0xff] %v2927
    %s2930 = scalar_lea.vmem [#allocation6], 224
    %v2931 = vld [vmem:[%s2930] sm:$0xff]
    %v2932 = vld [vmem:[%s2930 + $0x8] sm:$0xff]
    %v2933 = vld [vmem:[%s2930 + $0x10] sm:$0xff]
    %v2934 = vld [vmem:[%s2930 + $0x18] sm:$0xff]
    %2935 = vmatpush.msra.mxu0 %v147
    %2936 = vmatpush.msra.mxu0 %v143
    %2937 = vmatpush.msra.mxu0 %v139
    %2938 = vmatpush.msra.mxu0 %v135
    %2939 = vmatpush.msra.mxu0 %v131
    %2940 = vmatpush.msra.mxu0 %v127
    %2941 = vmatpush.msra.mxu0 %v123
    %2942 = vmatpush.msra.mxu0 %v119
    %2943 = vmatpush.msra.mxu0 %v115
    %2944 = vmatpush.msra.mxu0 %v111
    %2945 = vmatpush.msra.mxu0 %v107
    %2946 = vmatpush.msra.mxu0 %v103
    %2947 = vmatpush.msra.mxu0 %v99
    %2948 = vmatpush.msra.mxu0 %v95
    %2949 = vmatpush.msra.mxu0 %v91
    %2950 = vmatpush.msra.mxu0 %v87
    %2951 = vmatmul.f32.gmra.mxu0 %v2704
    %v2952 = vpop.f32.mrf.mxu0
    %v2953 = vadd.f32 0.0, %v2952
    %2954 = vdwg.mxu0
    %2955 = vmatpush.msra.mxu0 %v148
    %2956 = vmatpush.msra.mxu0 %v144
    %2957 = vmatpush.msra.mxu0 %v140
    %2958 = vmatpush.msra.mxu0 %v136
    %2959 = vmatpush.msra.mxu0 %v132
    %2960 = vmatpush.msra.mxu0 %v128
    %2961 = vmatpush.msra.mxu0 %v124
    %2962 = vmatpush.msra.mxu0 %v120
    %2963 = vmatpush.msra.mxu0 %v116
    %2964 = vmatpush.msra.mxu0 %v112
    %2965 = vmatpush.msra.mxu0 %v108
    %2966 = vmatpush.msra.mxu0 %v104
    %2967 = vmatpush.msra.mxu0 %v100
    %2968 = vmatpush.msra.mxu0 %v96
    %2969 = vmatpush.msra.mxu0 %v92
    %2970 = vmatpush.msra.mxu0 %v88
    %2971 = vmatmul.f32.gmra.mxu0 %v2704
    %v2972 = vpop.f32.mrf.mxu0
    %v2973 = vadd.f32 0.0, %v2972
    %2974 = vdwg.mxu0
    %2975 = vmatpush.msra.mxu0 %v149
    %2976 = vmatpush.msra.mxu0 %v145
    %2977 = vmatpush.msra.mxu0 %v141
    %2978 = vmatpush.msra.mxu0 %v137
    %2979 = vmatpush.msra.mxu0 %v133
    %2980 = vmatpush.msra.mxu0 %v129
    %2981 = vmatpush.msra.mxu0 %v125
    %2982 = vmatpush.msra.mxu0 %v121
    %2983 = vmatpush.msra.mxu0 %v117
    %2984 = vmatpush.msra.mxu0 %v113
    %2985 = vmatpush.msra.mxu0 %v109
    %2986 = vmatpush.msra.mxu0 %v105
    %2987 = vmatpush.msra.mxu0 %v101
    %2988 = vmatpush.msra.mxu0 %v97
    %2989 = vmatpush.msra.mxu0 %v93
    %2990 = vmatpush.msra.mxu0 %v89
    %2991 = vmatmul.f32.gmra.mxu0 %v2704
    %v2992 = vpop.f32.mrf.mxu0
    %v2993 = vadd.f32 0.0, %v2992
    %2994 = vdwg.mxu0
    %2995 = vmatpush.msra.mxu0 %v150
    %2996 = vmatpush.msra.mxu0 %v146
    %2997 = vmatpush.msra.mxu0 %v142
    %2998 = vmatpush.msra.mxu0 %v138
    %2999 = vmatpush.msra.mxu0 %v134
    %3000 = vmatpush.msra.mxu0 %v130
    %3001 = vmatpush.msra.mxu0 %v126
    %3002 = vmatpush.msra.mxu0 %v122
    %3003 = vmatpush.msra.mxu0 %v118
    %3004 = vmatpush.msra.mxu0 %v114
    %3005 = vmatpush.msra.mxu0 %v110
    %3006 = vmatpush.msra.mxu0 %v106
    %3007 = vmatpush.msra.mxu0 %v102
    %3008 = vmatpush.msra.mxu0 %v98
    %3009 = vmatpush.msra.mxu0 %v94
    %3010 = vmatpush.msra.mxu0 %v90
    %3011 = vmatmul.f32.gmra.mxu0 %v2704
    %v3012 = vpop.f32.mrf.mxu0
    %v3013 = vadd.f32 0.0, %v3012
    %3014 = vdwg.mxu0
    %v3015 = vadd.f32 %v2931, %v2953
    %v3016 = vadd.f32 %v2932, %v2973
    %v3017 = vadd.f32 %v2933, %v2993
    %v3018 = vadd.f32 %v2934, %v3013
    %v3019 = vxor.u32 %v3015, 2147483648
    %v3020 = vmul.f32 %v3019, 1.442695
    %v3021 = vpow.pop %v3020
    %v3022 = vadd.f32 %v3021, 1.0
    %v3023 = vrcp.pop %v3022
    %v3024 = vmul.f32 %v3022, %v3023
    %v3025 = vsub.f32 1.0, %v3024
    %v3026 = vmul.f32 %v3023, %v3025
    %v3027 = vadd.f32 %v3023, %v3026
    %vm3028 = vweird.f32 %v3022
    %vm3029 = vweird.f32 %v3023
    %vm3030 = vmor %vm3028, %vm3029
    %v3031 = vsel %vm3030, %v3023, %v3027
    %v3032 = vand.u32 2147483647, %v3022
    %vm3033 = vcmp.eq.f32.partialorder %v3032, 8.507059e+37
    %v3034 = vand.u32 %v3022, 2147483648
    %v3035 = vor.u32 1.1754944e-38, %v3034
    %v3036 = vsel %vm3033, %v3035, %v3031
    %v3037 = vmul.f32 1.0, %v3036
    %v3038 = vxor.u32 %v3016, 2147483648
    %v3039 = vmul.f32 %v3038, 1.442695
    %v3040 = vpow.pop %v3039
    %v3041 = vadd.f32 %v3040, 1.0
    %v3042 = vrcp.pop %v3041
    %v3043 = vmul.f32 %v3041, %v3042
    %v3044 = vsub.f32 1.0, %v3043
    %v3045 = vmul.f32 %v3042, %v3044
    %v3046 = vadd.f32 %v3042, %v3045
    %vm3047 = vweird.f32 %v3041
    %vm3048 = vweird.f32 %v3042
    %vm3049 = vmor %vm3047, %vm3048
    %v3050 = vsel %vm3049, %v3042, %v3046
    %v3051 = vand.u32 2147483647, %v3041
    %vm3052 = vcmp.eq.f32.partialorder %v3051, 8.507059e+37
    %v3053 = vand.u32 %v3041, 2147483648
    %v3054 = vor.u32 1.1754944e-38, %v3053
    %v3055 = vsel %vm3052, %v3054, %v3050
    %v3056 = vmul.f32 1.0, %v3055
    %v3057 = vtanh.pop %v3017
    %v3058 = vxor.u32 %v3018, 2147483648
    %v3059 = vmul.f32 %v3058, 1.442695
    %v3060 = vpow.pop %v3059
    %v3061 = vadd.f32 %v3060, 1.0
    %v3062 = vrcp.pop %v3061
    %v3063 = vmul.f32 %v3061, %v3062
    %v3064 = vsub.f32 1.0, %v3063
    %v3065 = vmul.f32 %v3062, %v3064
    %v3066 = vadd.f32 %v3062, %v3065
    %vm3067 = vweird.f32 %v3061
    %vm3068 = vweird.f32 %v3062
    %vm3069 = vmor %vm3067, %vm3068
    %v3070 = vsel %vm3069, %v3062, %v3066
    %v3071 = vand.u32 2147483647, %v3061
    %vm3072 = vcmp.eq.f32.partialorder %v3071, 8.507059e+37
    %v3073 = vand.u32 %v3061, 2147483648
    %v3074 = vor.u32 1.1754944e-38, %v3073
    %v3075 = vsel %vm3072, %v3074, %v3070
    %v3076 = vmul.f32 1.0, %v3075
    %v3077 = vmul.f32 %v3056, %v2702
    %v3078 = vmul.f32 %v3037, %v3057
    %v3079 = vadd.f32 %v3077, %v3078
    %v3080 = vtanh.pop %v3079
    %v3081 = vmul.f32 %v3076, %v3080
    %3082 = vmatpush.msra.mxu0 %v211
    %3083 = vmatpush.msra.mxu0 %v207
    %3084 = vmatpush.msra.mxu0 %v203
    %3085 = vmatpush.msra.mxu0 %v199
    %3086 = vmatpush.msra.mxu0 %v195
    %3087 = vmatpush.msra.mxu0 %v191
    %3088 = vmatpush.msra.mxu0 %v187
    %3089 = vmatpush.msra.mxu0 %v183
    %3090 = vmatpush.msra.mxu0 %v179
    %3091 = vmatpush.msra.mxu0 %v175
    %3092 = vmatpush.msra.mxu0 %v171
    %3093 = vmatpush.msra.mxu0 %v167
    %3094 = vmatpush.msra.mxu0 %v163
    %3095 = vmatpush.msra.mxu0 %v159
    %3096 = vmatpush.msra.mxu0 %v155
    %3097 = vmatpush.msra.mxu0 %v151
    %3098 = vmatmul.f32.gmra.mxu0 %v3081
    %v3099 = vpop.f32.mrf.mxu0
    %v3100 = vadd.f32 %v436, %v3099
    %3101 = vdwg.mxu0
    %3102 = vmatpush.msra.mxu0 %v275
    %3103 = vmatpush.msra.mxu0 %v271
    %3104 = vmatpush.msra.mxu0 %v267
    %3105 = vmatpush.msra.mxu0 %v263
    %3106 = vmatpush.msra.mxu0 %v259
    %3107 = vmatpush.msra.mxu0 %v255
    %3108 = vmatpush.msra.mxu0 %v251
    %3109 = vmatpush.msra.mxu0 %v247
    %3110 = vmatpush.msra.mxu0 %v243
    %3111 = vmatpush.msra.mxu0 %v239
    %3112 = vmatpush.msra.mxu0 %v235
    %3113 = vmatpush.msra.mxu0 %v231
    %3114 = vmatpush.msra.mxu0 %v227
    %3115 = vmatpush.msra.mxu0 %v223
    %3116 = vmatpush.msra.mxu0 %v219
    %3117 = vmatpush.msra.mxu0 %v215
    %3118 = vmatmul.f32.gmra.mxu0 %v2927
    %v3119 = vpop.f32.mrf.mxu0
    %v3120 = vadd.f32 %v3100, %v3119
    %3121 = vdwg.mxu0
    %3122 = vmatpush.msra.mxu0 %v212
    %3123 = vmatpush.msra.mxu0 %v208
    %3124 = vmatpush.msra.mxu0 %v204
    %3125 = vmatpush.msra.mxu0 %v200
    %3126 = vmatpush.msra.mxu0 %v196
    %3127 = vmatpush.msra.mxu0 %v192
    %3128 = vmatpush.msra.mxu0 %v188
    %3129 = vmatpush.msra.mxu0 %v184
    %3130 = vmatpush.msra.mxu0 %v180
    %3131 = vmatpush.msra.mxu0 %v176
    %3132 = vmatpush.msra.mxu0 %v172
    %3133 = vmatpush.msra.mxu0 %v168
    %3134 = vmatpush.msra.mxu0 %v164
    %3135 = vmatpush.msra.mxu0 %v160
    %3136 = vmatpush.msra.mxu0 %v156
    %3137 = vmatpush.msra.mxu0 %v152
    %3138 = vmatmul.f32.gmra.mxu0 %v3081
    %v3139 = vpop.f32.mrf.mxu0
    %v3140 = vadd.f32 %v437, %v3139
    %3141 = vdwg.mxu0
    %3142 = vmatpush.msra.mxu0 %v276
    %3143 = vmatpush.msra.mxu0 %v272
    %3144 = vmatpush.msra.mxu0 %v268
    %3145 = vmatpush.msra.mxu0 %v264
    %3146 = vmatpush.msra.mxu0 %v260
    %3147 = vmatpush.msra.mxu0 %v256
    %3148 = vmatpush.msra.mxu0 %v252
    %3149 = vmatpush.msra.mxu0 %v248
    %3150 = vmatpush.msra.mxu0 %v244
    %3151 = vmatpush.msra.mxu0 %v240
    %3152 = vmatpush.msra.mxu0 %v236
    %3153 = vmatpush.msra.mxu0 %v232
    %3154 = vmatpush.msra.mxu0 %v228
    %3155 = vmatpush.msra.mxu0 %v224
    %3156 = vmatpush.msra.mxu0 %v220
    %3157 = vmatpush.msra.mxu0 %v216
    %3158 = vmatmul.f32.gmra.mxu0 %v2927
    %v3159 = vpop.f32.mrf.mxu0
    %v3160 = vadd.f32 %v3140, %v3159
    %3161 = vdwg.mxu0
    %3162 = vmatpush.msra.mxu0 %v213
    %3163 = vmatpush.msra.mxu0 %v209
    %3164 = vmatpush.msra.mxu0 %v205
    %3165 = vmatpush.msra.mxu0 %v201
    %3166 = vmatpush.msra.mxu0 %v197
    %3167 = vmatpush.msra.mxu0 %v193
    %3168 = vmatpush.msra.mxu0 %v189
    %3169 = vmatpush.msra.mxu0 %v185
    %3170 = vmatpush.msra.mxu0 %v181
    %3171 = vmatpush.msra.mxu0 %v177
    %3172 = vmatpush.msra.mxu0 %v173
    %3173 = vmatpush.msra.mxu0 %v169
    %3174 = vmatpush.msra.mxu0 %v165
    %3175 = vmatpush.msra.mxu0 %v161
    %3176 = vmatpush.msra.mxu0 %v157
    %3177 = vmatpush.msra.mxu0 %v153
    %3178 = vmatmul.f32.gmra.mxu0 %v3081
    %v3179 = vpop.f32.mrf.mxu0
    %v3180 = vadd.f32 %v438, %v3179
    %3181 = vdwg.mxu0
    %3182 = vmatpush.msra.mxu0 %v277
    %3183 = vmatpush.msra.mxu0 %v273
    %3184 = vmatpush.msra.mxu0 %v269
    %3185 = vmatpush.msra.mxu0 %v265
    %3186 = vmatpush.msra.mxu0 %v261
    %3187 = vmatpush.msra.mxu0 %v257
    %3188 = vmatpush.msra.mxu0 %v253
    %3189 = vmatpush.msra.mxu0 %v249
    %3190 = vmatpush.msra.mxu0 %v245
    %3191 = vmatpush.msra.mxu0 %v241
    %3192 = vmatpush.msra.mxu0 %v237
    %3193 = vmatpush.msra.mxu0 %v233
    %3194 = vmatpush.msra.mxu0 %v229
    %3195 = vmatpush.msra.mxu0 %v225
    %3196 = vmatpush.msra.mxu0 %v221
    %3197 = vmatpush.msra.mxu0 %v217
    %3198 = vmatmul.f32.gmra.mxu0 %v2927
    %v3199 = vpop.f32.mrf.mxu0
    %v3200 = vadd.f32 %v3180, %v3199
    %3201 = vdwg.mxu0
    %3202 = vmatpush.msra.mxu0 %v214
    %3203 = vmatpush.msra.mxu0 %v210
    %3204 = vmatpush.msra.mxu0 %v206
    %3205 = vmatpush.msra.mxu0 %v202
    %3206 = vmatpush.msra.mxu0 %v198
    %3207 = vmatpush.msra.mxu0 %v194
    %3208 = vmatpush.msra.mxu0 %v190
    %3209 = vmatpush.msra.mxu0 %v186
    %3210 = vmatpush.msra.mxu0 %v182
    %3211 = vmatpush.msra.mxu0 %v178
    %3212 = vmatpush.msra.mxu0 %v174
    %3213 = vmatpush.msra.mxu0 %v170
    %3214 = vmatpush.msra.mxu0 %v166
    %3215 = vmatpush.msra.mxu0 %v162
    %3216 = vmatpush.msra.mxu0 %v158
    %3217 = vmatpush.msra.mxu0 %v154
    %3218 = vmatmul.f32.gmra.mxu0 %v3081
    %v3219 = vpop.f32.mrf.mxu0
    %v3220 = vadd.f32 %v439, %v3219
    %3221 = vdwg.mxu0
    %3222 = vmatpush.msra.mxu0 %v278
    %3223 = vmatpush.msra.mxu0 %v274
    %3224 = vmatpush.msra.mxu0 %v270
    %3225 = vmatpush.msra.mxu0 %v266
    %3226 = vmatpush.msra.mxu0 %v262
    %3227 = vmatpush.msra.mxu0 %v258
    %3228 = vmatpush.msra.mxu0 %v254
    %3229 = vmatpush.msra.mxu0 %v250
    %3230 = vmatpush.msra.mxu0 %v246
    %3231 = vmatpush.msra.mxu0 %v242
    %3232 = vmatpush.msra.mxu0 %v238
    %3233 = vmatpush.msra.mxu0 %v234
    %3234 = vmatpush.msra.mxu0 %v230
    %3235 = vmatpush.msra.mxu0 %v226
    %3236 = vmatpush.msra.mxu0 %v222
    %3237 = vmatpush.msra.mxu0 %v218
    %3238 = vmatmul.f32.gmra.mxu0 %v2927
    %v3239 = vpop.f32.mrf.mxu0
    %v3240 = vadd.f32 %v3220, %v3239
    %3241 = vdwg.mxu0
    %v3242 = vxor.u32 %v3120, 2147483648
    %v3243 = vmul.f32 %v3242, 1.442695
    %v3244 = vpow.pop %v3243
    %v3245 = vadd.f32 %v3244, 1.0
    %v3246 = vrcp.pop %v3245
    %v3247 = vmul.f32 %v3245, %v3246
    %v3248 = vsub.f32 1.0, %v3247
    %v3249 = vmul.f32 %v3246, %v3248
    %v3250 = vadd.f32 %v3246, %v3249
    %vm3251 = vweird.f32 %v3245
    %vm3252 = vweird.f32 %v3246
    %vm3253 = vmor %vm3251, %vm3252
    %v3254 = vsel %vm3253, %v3246, %v3250
    %v3255 = vand.u32 2147483647, %v3245
    %vm3256 = vcmp.eq.f32.partialorder %v3255, 8.507059e+37
    %v3257 = vand.u32 %v3245, 2147483648
    %v3258 = vor.u32 1.1754944e-38, %v3257
    %v3259 = vsel %vm3256, %v3258, %v3254
    %v3260 = vmul.f32 1.0, %v3259
    %v3261 = vxor.u32 %v3160, 2147483648
    %v3262 = vmul.f32 %v3261, 1.442695
    %v3263 = vpow.pop %v3262
    %v3264 = vadd.f32 %v3263, 1.0
    %v3265 = vrcp.pop %v3264
    %v3266 = vmul.f32 %v3264, %v3265
    %v3267 = vsub.f32 1.0, %v3266
    %v3268 = vmul.f32 %v3265, %v3267
    %v3269 = vadd.f32 %v3265, %v3268
    %vm3270 = vweird.f32 %v3264
    %vm3271 = vweird.f32 %v3265
    %vm3272 = vmor %vm3270, %vm3271
    %v3273 = vsel %vm3272, %v3265, %v3269
    %v3274 = vand.u32 2147483647, %v3264
    %vm3275 = vcmp.eq.f32.partialorder %v3274, 8.507059e+37
    %v3276 = vand.u32 %v3264, 2147483648
    %v3277 = vor.u32 1.1754944e-38, %v3276
    %v3278 = vsel %vm3275, %v3277, %v3273
    %v3279 = vmul.f32 1.0, %v3278
    %v3280 = vtanh.pop %v3200
    %v3281 = vxor.u32 %v3240, 2147483648
    %v3282 = vmul.f32 %v3281, 1.442695
    %v3283 = vpow.pop %v3282
    %v3284 = vadd.f32 %v3283, 1.0
    %v3285 = vrcp.pop %v3284
    %v3286 = vmul.f32 %v3284, %v3285
    %v3287 = vsub.f32 1.0, %v3286
    %v3288 = vmul.f32 %v3285, %v3287
    %v3289 = vadd.f32 %v3285, %v3288
    %vm3290 = vweird.f32 %v3284
    %vm3291 = vweird.f32 %v3285
    %vm3292 = vmor %vm3290, %vm3291
    %v3293 = vsel %vm3292, %v3285, %v3289
    %v3294 = vand.u32 2147483647, %v3284
    %vm3295 = vcmp.eq.f32.partialorder %v3294, 8.507059e+37
    %v3296 = vand.u32 %v3284, 2147483648
    %v3297 = vor.u32 1.1754944e-38, %v3296
    %v3298 = vsel %vm3295, %v3297, %v3293
    %v3299 = vmul.f32 1.0, %v3298
    %v3300 = vmul.f32 %v3279, %v2925
    %v3301 = vmul.f32 %v3260, %v3280
    %v3302 = vadd.f32 %v3300, %v3301
    %v3303 = vtanh.pop %v3302
    %v3304 = vmul.f32 %v3299, %v3303
    %s3305 = scalar_lea.vmem [#allocation14], 56
    %3306 = vst [vmem:[%s3305] sm:$0xff] %v3304
    %3307 = vst [vmem:[#allocation2] sm:$0xff] %v3081
    %3308 = vst [vmem:[#allocation3] sm:$0xff] %v3079
    %3309 = vst [vmem:[#allocation4] sm:$0xff] %v3304
    %3310 = vst [vmem:[#allocation5] sm:$0xff] %v3302
    // Predicated region
    $region38: #{tpu_custom_call.1} parent=1 // pred_check
      _
    $region39: #{tpu_custom_call.1} parent=1 // pred_check_branch
      %3312 = sbr.rel (0) target = $region41
    $region40: #{tpu_custom_call.1} parent=1 // pred_region
      %3314 = vsyncadd [#allocation8], 0
      %s3315 = sshll.u32 [#allocation14], 4
      %s3316 = int_to_ptr.vmem [resolvable:$true] %s3315
      %s3317 = sshll.u32 %s4, 4
      %s3318 = int_to_ptr.hbm [resolvable:$true] %s3317
      %3323 = dma.vmem_to_hbm [thread:$0]  %s3316, 1024, %s3318, [#allocation8], 128, 128, 8
    $region41: #{tpu_custom_call.1} parent=1 // pred_fallthru
      _
    // Predicated region
    $region42: #{tpu_custom_call.1} parent=1 // pred_check
      _
    $region43: #{tpu_custom_call.1} parent=1 // pred_check_branch
      %3325 = sbr.rel (0) target = $region45
    $region44: #{tpu_custom_call.1} parent=1 // pred_region
      %3327 = dma.done [#allocation8], 1024
    $region45: #{tpu_custom_call.1} parent=1 // pred_fallthru
      _
    %3328 = vsyncpa [#allocation7], 1
    %3329 = vsyncpa [#allocation10], 1
    %3330 = vsyncpa [#allocation13], 1
    %3331 = vsyncpa [#allocation8], 1

</llo_original>
